<compile_context>
chip_gen: v6e
topology: v6e:2x2x1
jax: 0.10.0
libtpu: 0.0.40
codegen_flags: <defaults>
</compile_context>

<pallas_src>
import math

import jax
import jax.numpy as jnp
import numpy as np
from jax import lax
from jax.experimental import pallas as pl
from jax.experimental.pallas import tpu as pltpu

# ---- synthetic miniRBT config (bert_hidden_dim=256 fixed by the module) ----
HIDDEN = 256
NUM_HEADS = 2
HEAD_DIM = HIDDEN // NUM_HEADS          # 128 -> lane-aligned head slices
INTERMEDIATE = 512
NUM_LAYERS = 2
VOCAB = 1000
MAX_POS = 32
DENSE_SIZE = 128                        # fc1 out_features
REG_HIDDEN = 64                         # regression hidden layer
OUT_FEATURES = 1
LN_EPS = 1e-12
OUT_PAD = 128                           # lane-dense output slab width

# -- packed per-layer f32 params (biases / LN / dequant scales): lane offsets --
# every offset is a multiple of 128 -> aligned static lane slices in-kernel
OFF_BQKV = 0                            # 768
OFF_SQKV = OFF_BQKV + 3 * HIDDEN        # 768
OFF_BO = OFF_SQKV + 3 * HIDDEN          # 1536
OFF_SO = OFF_BO + HIDDEN                # 1792
OFF_LN1G = OFF_SO + HIDDEN              # 2048
OFF_LN1B = OFF_LN1G + HIDDEN            # 2304
OFF_B1 = OFF_LN1B + HIDDEN              # 2560
OFF_S1 = OFF_B1 + INTERMEDIATE          # 3072
OFF_B2 = OFF_S1 + INTERMEDIATE          # 3584
OFF_S2 = OFF_B2 + HIDDEN                # 3840
OFF_LN2G = OFF_S2 + HIDDEN              # 4096
OFF_LN2B = OFF_LN2G + HIDDEN            # 4352
LP_WIDTH = OFF_LN2B + HIDDEN            # 4608 = 36 * 128

# misc pack rows (f32, width 256 each)
MISC_EMB_G, MISC_EMB_B, MISC_BFC1, MISC_BR1, MISC_BR2 = range(5)


def _layer_norm(x, g, b):
    # single pass: mean and mean-of-squares are independent reductions
    mu = jnp.mean(x, axis=-1, keepdims=True)
    ms = jnp.mean(x * x, axis=-1, keepdims=True)
    var = ms - mu * mu
    return (x - mu) * lax.rsqrt(var + LN_EPS) * g + b


# ============================== Pallas kernel ===============================

def fused_forward_kernel(x_ref, mask_ref, cat_ref,
                         wqkv_ref, wo_ref, w1_ref, w2_ref, lp_ref,
                         wfc1_ref, wrt_ref, wrc_ref, wr2_ref, misc_ref,
                         out_ref):
    """Whole forward (emb LN + 2 encoder layers + regression head), one call.

    x_ref:   (B*S, H)   f32   summed embeddings (pre-LayerNorm)
    mask_ref:(B, 1, S)  f32   raw 0/1 attention mask
    cat_ref: (B, CAT)   f32   categorical features
    w*_ref:  (L, K, N)  int8  quantized encoder weights
    lp_ref:  (L, 4608)  f32   packed biases / LN params / dequant scales
    wfc1/wrt/wrc/wr2:   bf16  regression-head weights
    misc_ref:(5, 256)   f32   emb-LN gamma/beta + head biases
    out_ref: (B, 128)   f32   lane-dense output slab (result in every lane)
    """
    BS, H = x_ref.shape
    B, _, S = mask_ref.shape

    # ---- embedding LayerNorm (folded from wrapper) ----
    emb_g = misc_ref[MISC_EMB_G:MISC_EMB_G + 1, :]
    emb_b = misc_ref[MISC_EMB_B:MISC_EMB_B + 1, :]
    x = _layer_norm(x_ref[...], emb_g, emb_b)                 # (BS, H) f32

    # ---- additive attention mask computed in-kernel ----
    add_mask = (1.0 - mask_ref[...]) * (-1e9)                 # (B, 1, S)

    # TODO(synk): real miniRBT uses the exact erf GELU; tanh approximation used here.
    for l in range(NUM_LAYERS):                               # static unrolled loop
        bqkv = lp_ref[l:l + 1, OFF_BQKV:OFF_BQKV + 3 * H]
        sqkv = lp_ref[l:l + 1, OFF_SQKV:OFF_SQKV + 3 * H]
        bo = lp_ref[l:l + 1, OFF_BO:OFF_BO + H]
        so = lp_ref[l:l + 1, OFF_SO:OFF_SO + H]
        ln1g = lp_ref[l:l + 1, OFF_LN1G:OFF_LN1G + H]
        ln1b = lp_ref[l:l + 1, OFF_LN1B:OFF_LN1B + H]
        b1 = lp_ref[l:l + 1, OFF_B1:OFF_B1 + INTERMEDIATE]
        s1 = lp_ref[l:l + 1, OFF_S1:OFF_S1 + INTERMEDIATE]
        b2 = lp_ref[l:l + 1, OFF_B2:OFF_B2 + H]
        s2 = lp_ref[l:l + 1, OFF_S2:OFF_S2 + H]
        ln2g = lp_ref[l:l + 1, OFF_LN2G:OFF_LN2G + H]
        ln2b = lp_ref[l:l + 1, OFF_LN2B:OFF_LN2B + H]

        # ---- fused QKV projection (int8 weight, exact bf16 dequant cast,
        #      per-output-channel scale applied to the tiny (BS,3H) result) ----
        xb = x.astype(jnp.bfloat16)
        qkv = jnp.dot(xb, wqkv_ref[l].astype(jnp.bfloat16),
                      preferred_element_type=jnp.float32)
        qkv = qkv * sqkv + bqkv                               # (BS, 3H) f32
        qkv3 = qkv.reshape(B, S, 3 * H)

        # ---- per-head attention; Q already pre-scaled by 1/sqrt(d) via sqkv ----
        ctxs = []
        for h in range(NUM_HEADS):
            lo = h * HEAD_DIM
            qh = qkv3[:, :, lo:lo + HEAD_DIM]
            kh = qkv3[:, :, H + lo:H + lo + HEAD_DIM]
            vh = qkv3[:, :, 2 * H + lo:2 * H + lo + HEAD_DIM]
            s = jnp.einsum('bqd,bkd->bqk', qh, kh,
                           preferred_element_type=jnp.float32) + add_mask
            s = s - jnp.max(s, axis=-1, keepdims=True)
            p = jnp.exp(s)
            p = p * pl.reciprocal(jnp.sum(p, axis=-1, keepdims=True), approx=True)
            ctxs.append(jnp.einsum('bqk,bkd->bqd', p, vh,
                                   preferred_element_type=jnp.float32))
        # 128-wide lane-group concat: register placement, no VMEM round trip
        ctx = jnp.concatenate(ctxs, axis=-1).reshape(BS, H)

        # ---- output projection + residual + LN (f32 stats) ----
        attn = jnp.dot(ctx.astype(jnp.bfloat16), wo_ref[l].astype(jnp.bfloat16),
                       preferred_element_type=jnp.float32) * so + bo
        h1 = _layer_norm(x + attn, ln1g, ln1b)

        # ---- FFN (int8->bf16 weights, f32 accumulate) + residual + LN ----
        ff = jnp.dot(h1.astype(jnp.bfloat16), w1_ref[l].astype(jnp.bfloat16),
                     preferred_element_type=jnp.float32) * s1 + b1
        ff = jax.nn.gelu(ff, approximate=True)
        ff = jnp.dot(ff.astype(jnp.bfloat16), w2_ref[l].astype(jnp.bfloat16),
                     preferred_element_type=jnp.float32) * s2 + b2
        x = _layer_norm(h1 + ff, ln2g, ln2b)

    # ---- regression head (fused; dropout = identity at inference) ----
    cls = x.reshape(B, S, H)[:, 0, :]                          # last_hidden_state[:, 0, :]
    b_fc1 = misc_ref[MISC_BFC1:MISC_BFC1 + 1, 0:DENSE_SIZE]
    b_r1 = misc_ref[MISC_BR1:MISC_BR1 + 1, 0:REG_HIDDEN]
    b_r2 = misc_ref[MISC_BR2:MISC_BR2 + 1, 0:OUT_FEATURES]

    text = jnp.dot(cls.astype(jnp.bfloat16), wfc1_ref[...],
                   preferred_element_type=jnp.float32) + b_fc1
    text = jnp.maximum(text, 0.0)
    # cat([text, categorical]) @ W_r1  ==  text @ W_rt + categorical @ W_rc
    hh = (jnp.dot(text.astype(jnp.bfloat16), wrt_ref[...],
                  preferred_element_type=jnp.float32)
          + jnp.dot(cat_ref[...].astype(jnp.bfloat16), wrc_ref[...],
                    preferred_element_type=jnp.float32)
          + b_r1)
    hh = jnp.maximum(hh, 0.0)
    r = jnp.dot(hh.astype(jnp.bfloat16), wr2_ref[...],
                preferred_element_type=jnp.float32) + b_r2     # (B, 1)
    out_ref[...] = jnp.broadcast_to(r, out_ref.shape)          # lane-dense slab


# ============================== Pallas wrapper ==============================

def bert_duration_regressor(kp, input_ids, attention_mask, categorical):
    B, S = input_ids.shape
    # Embedding gather stays plain-JAX glue (data-dependent gather); the
    # embedding LayerNorm + mask arithmetic happen inside the kernel.
    emb = (kp['word_emb'][input_ids]
           + kp['pos_emb'][None, :S, :]
           + kp['type_emb'][0][None, None, :])
    x2 = emb.reshape(B * S, HIDDEN)
    mask = attention_mask.astype(jnp.float32)[:, None, :]

    inputs = (x2, mask, categorical,
              kp['wqkv_q'], kp['wo_q'], kp['w1_q'], kp['w2_q'], kp['lparams'],
              kp['w_fc1'], kp['w_rt'], kp['w_rc'], kp['w_r2'], kp['misc'])

    vmem = pl.BlockSpec(memory_space=pltpu.MemorySpace.VMEM)
    padded = pl.pallas_call(
        fused_forward_kernel,
        out_shape=jax.ShapeDtypeStruct((B, OUT_PAD), jnp.float32),
        in_specs=[vmem] * len(inputs),
        out_specs=vmem,
    )(*inputs)
    return padded[:, :OUT_FEATURES]


# ============================ Pure-JAX reference ============================
# Mirrors the same mixed precision (int8 weights dequantized to bf16 with
# post-matmul per-channel scales, f32 accumulation / LN / softmax / mask) so
# the comparison verifies the Pallas implementation.

def _ref_encoder_layer(x, add_mask, p, l):
    xb = x.astype(jnp.bfloat16)
    qkv = jnp.einsum('bsh,hf->bsf', xb, p['wqkv_q'][l].astype(jnp.bfloat16),
                     preferred_element_type=jnp.float32)
    qkv = qkv * p['sqkv'][l] + p['bqkv'][l]
    q, k, v = (qkv[..., :HIDDEN], qkv[..., HIDDEN:2 * HIDDEN],
               qkv[..., 2 * HIDDEN:])
    ctxs = []
    for h in range(NUM_HEADS):
        lo = h * HEAD_DIM
        qh, kh, vh = (t[..., lo:lo + HEAD_DIM] for t in (q, k, v))
        # Q was pre-scaled by 1/sqrt(head_dim) via the dequant scale / bias.
        s = jnp.einsum('bqd,bkd->bqk', qh, kh) + add_mask
        ctxs.append(jnp.einsum('bqk,bkd->bqd', jax.nn.softmax(s, axis=-1), vh))
    ctx = jnp.concatenate(ctxs, axis=-1)
    attn = jnp.einsum('bsh,hf->bsf', ctx.astype(jnp.bfloat16),
                      p['wo_q'][l].astype(jnp.bfloat16),
                      preferred_element_type=jnp.float32) * p['so'][l] + p['bo'][l]
    h1 = _layer_norm(x + attn, p['ln1g'][l], p['ln1b'][l])
    ff = jnp.einsum('bsh,hf->bsf', h1.astype(jnp.bfloat16),
                    p['w1_q'][l].astype(jnp.bfloat16),
                    preferred_element_type=jnp.float32) * p['s1'][l] + p['b1'][l]
    ff = jax.nn.gelu(ff, approximate=True)
    ff = jnp.einsum('bsf,fh->bsh', ff.astype(jnp.bfloat16),
                    p['w2_q'][l].astype(jnp.bfloat16),
                    preferred_element_type=jnp.float32) * p['s2'][l] + p['b2'][l]
    return _layer_norm(h1 + ff, p['ln2g'][l], p['ln2b'][l])


def reference_forward(params, input_ids, attention_mask, categorical):
    B, S = input_ids.shape
    emb = (params['word_emb'][input_ids]
           + params['pos_emb'][None, :S, :]
           + params['type_emb'][0][None, None, :])
    x = _layer_norm(emb, params['emb_ln_g'], params['emb_ln_b'])
    add_mask = ((1.0 - attention_mask.astype(jnp.float32)) * -1e9)[:, None, :]
    for l in range(NUM_LAYERS):
        x = _ref_encoder_layer(x, add_mask, params, l)
    cls_tok = x[:, 0, :]
    text = jax.nn.relu(jnp.dot(cls_tok.astype(jnp.bfloat16), params['w_fc1'],
                               preferred_element_type=jnp.float32) + params['b_fc1'])
    # cat([text, categorical]) @ W_r1  ==  text @ W_rt + categorical @ W_rc
    h = jax.nn.relu(jnp.dot(text.astype(jnp.bfloat16), params['w_rt'],
                            preferred_element_type=jnp.float32)
                    + jnp.dot(categorical.astype(jnp.bfloat16), params['w_rc'],
                              preferred_element_type=jnp.float32)
                    + params['b_r1'])
    return jnp.dot(h.astype(jnp.bfloat16), params['w_r2'],
                   preferred_element_type=jnp.float32) + params['b_r2']


# ============================== Param init ==================================

def _quantize_per_col(w):
    """Symmetric per-output-channel int8 quantization. Returns (q_int8, scale)."""
    amax = jnp.max(jnp.abs(w), axis=0, keepdims=True)          # (1, N)
    scale = jnp.maximum(amax, 1e-6) / 127.0
    q = jnp.clip(jnp.round(w / scale), -127.0, 127.0).astype(jnp.int8)
    return q, scale


def init_params(key, cat_size):
    keys = iter(jax.random.split(key, 64))

    def nrm(shape, s=0.02, dtype=jnp.float32):
        return (jax.random.normal(next(keys), shape, jnp.float32) * s).astype(dtype)

    att = 1.0 / math.sqrt(HEAD_DIM)
    per = {k: [] for k in ('wqkv_q', 'sqkv', 'bqkv', 'wo_q', 'so', 'bo',
                           'ln1g', 'ln1b', 'w1_q', 's1', 'b1',
                           'w2_q', 's2', 'b2', 'ln2g', 'ln2b')}
    for _ in range(NUM_LAYERS):
        wqkv_q, sqkv = _quantize_per_col(nrm((HIDDEN, 3 * HIDDEN)))
        # fold attention 1/sqrt(head_dim) into the Q dequant scale and Q bias
        sqkv = sqkv.at[:, :HIDDEN].multiply(att)
        bqkv = nrm((1, 3 * HIDDEN)).at[:, :HIDDEN].multiply(att)
        wo_q, so = _quantize_per_col(nrm((HIDDEN, HIDDEN)))
        bo = nrm((1, HIDDEN))
        w1_q, s1 = _quantize_per_col(nrm((HIDDEN, INTERMEDIATE)))
        b1 = nrm((1, INTERMEDIATE))
        w2_q, s2 = _quantize_per_col(nrm((INTERMEDIATE, HIDDEN)))
        b2 = nrm((1, HIDDEN))
        vals = dict(wqkv_q=wqkv_q, sqkv=sqkv, bqkv=bqkv, wo_q=wo_q, so=so, bo=bo,
                    ln1g=jnp.ones((1, HIDDEN), jnp.float32),
                    ln1b=jnp.zeros((1, HIDDEN), jnp.float32),
                    w1_q=w1_q, s1=s1, b1=b1, w2_q=w2_q, s2=s2, b2=b2,
                    ln2g=jnp.ones((1, HIDDEN), jnp.float32),
                    ln2b=jnp.zeros((1, HIDDEN), jnp.float32))
        for k, v in vals.items():
            per[k].append(v)

    params = {k: jnp.stack(v, axis=0) for k, v in per.items()}
    params.update({
        'word_emb': nrm((VOCAB, HIDDEN)),
        'pos_emb': nrm((MAX_POS, HIDDEN)),
        'type_emb': nrm((2, HIDDEN)),
        'emb_ln_g': jnp.ones((HIDDEN,), jnp.float32),
        'emb_ln_b': jnp.zeros((HIDDEN,), jnp.float32),
        # regression head: bf16 weights (half the bytes), f32 biases
        'w_fc1': nrm((HIDDEN, DENSE_SIZE), dtype=jnp.bfloat16),
        'b_fc1': nrm((1, DENSE_SIZE)),
        'w_rt': nrm((DENSE_SIZE, REG_HIDDEN), dtype=jnp.bfloat16),
        'w_rc': nrm((cat_size, REG_HIDDEN), dtype=jnp.bfloat16),
        'b_r1': nrm((1, REG_HIDDEN)),
        'w_r2': nrm((REG_HIDDEN, OUT_FEATURES), dtype=jnp.bfloat16),
        'b_r2': nrm((1, OUT_FEATURES)),
    })
    return params


def pack_params(p):
    """One-time packing of the tiny f32 vectors into two dense arrays so the
    kernel sees 13 input DMAs instead of 22 (and no (1,N)->8-sublane padding)."""
    rows = [jnp.concatenate(
        [p['bqkv'][l], p['sqkv'][l], p['bo'][l], p['so'][l],
         p['ln1g'][l], p['ln1b'][l], p['b1'][l], p['s1'][l],
         p['b2'][l], p['s2'][l], p['ln2g'][l], p['ln2b'][l]], axis=1)
        for l in range(NUM_LAYERS)]
    lparams = jnp.concatenate(rows, axis=0)                    # (L, 4608) f32
    assert lparams.shape == (NUM_LAYERS, LP_WIDTH)

    def pad256(v):
        return jnp.pad(v, ((0, 0), (0, 256 - v.shape[1])))
    misc = jnp.concatenate([p['emb_ln_g'][None, :], p['emb_ln_b'][None, :],
                            pad256(p['b_fc1']), pad256(p['b_r1']),
                            pad256(p['b_r2'])], axis=0)        # (5, 256) f32

    return {'word_emb': p['word_emb'], 'pos_emb': p['pos_emb'],
            'type_emb': p['type_emb'],
            'wqkv_q': p['wqkv_q'], 'wo_q': p['wo_q'],
            'w1_q': p['w1_q'], 'w2_q': p['w2_q'],
            'lparams': lparams, 'misc': misc,
            'w_fc1': p['w_fc1'], 'w_rt': p['w_rt'],
            'w_rc': p['w_rc'], 'w_r2': p['w_r2']}


# =================================== main ===================================

if __name__ == "__main__":
    # TODO(synk): pretrained miniRBT weights cannot be loaded; synthetic init.
    key = jax.random.PRNGKey(0)
    k_param, k_ids, k_cat = jax.random.split(key, 3)

    B, S, CAT = 2, 8, 8
    params = init_params(k_param, CAT)
    kernel_params = pack_params(params)

    input_ids = jax.random.randint(k_ids, (B, S), 0, VOCAB, dtype=jnp.int32)
    attention_mask = jnp.ones((B, S), dtype=jnp.int32).at[1, 6:].set(0)
    categorical = jax.random.normal(k_cat, (B, CAT), jnp.float32)

    out = bert_duration_regressor(kernel_params, input_ids, attention_mask,
                                  categorical)
    out = jax.block_until_ready(out)

    ref = reference_forward(params, input_ids, attention_mask, categorical)
    # bf16 MXU path + approx softmax reciprocal -> looser tolerance than f32.
    # (int8 quantization error cancels: kernel and reference share the weights.)
    np.testing.assert_allclose(np.asarray(out), np.asarray(ref),
                               rtol=1e-2, atol=1e-2)
    assert out.shape == (B, OUT_FEATURES)
    print("KERNEL_OK")
</pallas_src>

<mosaic_0001>
module attributes {stable_mosaic.version = 11 : i64} {
  func.func @fused_forward_kernel(%arg0: memref<16x256xf32, #tpu.memory_space<vmem>>, %arg1: memref<2x1x8xf32, #tpu.memory_space<vmem>>, %arg2: memref<2x8xf32, #tpu.memory_space<vmem>>, %arg3: memref<2x256x768xi8, #tpu.memory_space<vmem>>, %arg4: memref<2x256x256xi8, #tpu.memory_space<vmem>>, %arg5: memref<2x256x512xi8, #tpu.memory_space<vmem>>, %arg6: memref<2x512x256xi8, #tpu.memory_space<vmem>>, %arg7: memref<2x4608xf32, #tpu.memory_space<vmem>>, %arg8: memref<256x128xbf16, #tpu.memory_space<vmem>>, %arg9: memref<128x64xbf16, #tpu.memory_space<vmem>>, %arg10: memref<8x64xbf16, #tpu.memory_space<vmem>>, %arg11: memref<64x1xbf16, #tpu.memory_space<vmem>>, %arg12: memref<5x256xf32, #tpu.memory_space<vmem>>, %arg13: memref<2x128xf32, #tpu.memory_space<vmem>>) attributes {dimension_semantics = [], scalar_prefetch = 0 : i64, scratch_operands = 0 : i64, tpu.core_type = #tpu.core_type<tc>} {
    %c0 = arith.constant 0 : index
    %c0_0 = arith.constant 0 : index
    %0 = vector.load %arg12[%c0, %c0_0] : memref<5x256xf32, #tpu.memory_space<vmem>>, vector<1x256xf32>
    %c1 = arith.constant 1 : index
    %c0_1 = arith.constant 0 : index
    %1 = vector.load %arg12[%c1, %c0_1] : memref<5x256xf32, #tpu.memory_space<vmem>>, vector<1x256xf32>
    %c0_2 = arith.constant 0 : index
    %c0_3 = arith.constant 0 : index
    %2 = vector.load %arg0[%c0_2, %c0_3] : memref<16x256xf32, #tpu.memory_space<vmem>>, vector<16x256xf32>
    %cst = arith.constant dense<0.000000e+00> : vector<16xf32>
    %3 = vector.multi_reduction <add>, %2, %cst [1] : vector<16x256xf32> to vector<16xf32>
    %4 = vector.shape_cast %3 : vector<16xf32> to vector<16x1xf32>
    %cst_4 = arith.constant 2.560000e+02 : f32
    %5 = vector.broadcast %cst_4 : f32 to vector<16x1xf32>
    %6 = arith.divf %4, %5 : vector<16x1xf32>
    %7 = arith.mulf %2, %2 : vector<16x256xf32>
    %cst_5 = arith.constant dense<0.000000e+00> : vector<16xf32>
    %8 = vector.multi_reduction <add>, %7, %cst_5 [1] : vector<16x256xf32> to vector<16xf32>
    %9 = vector.shape_cast %8 : vector<16xf32> to vector<16x1xf32>
    %cst_6 = arith.constant 2.560000e+02 : f32
    %10 = vector.broadcast %cst_6 : f32 to vector<16x1xf32>
    %11 = arith.divf %9, %10 : vector<16x1xf32>
    %12 = arith.mulf %6, %6 : vector<16x1xf32>
    %13 = arith.subf %11, %12 : vector<16x1xf32>
    %14 = vector.broadcast %6 : vector<16x1xf32> to vector<16x256xf32>
    %15 = arith.subf %2, %14 : vector<16x256xf32>
    %cst_7 = arith.constant 9.99999996E-13 : f32
    %16 = vector.broadcast %cst_7 : f32 to vector<16x1xf32>
    %17 = arith.addf %13, %16 : vector<16x1xf32>
    %18 = math.rsqrt %17 : vector<16x1xf32>
    %19 = vector.broadcast %18 : vector<16x1xf32> to vector<16x256xf32>
    %20 = arith.mulf %15, %19 : vector<16x256xf32>
    %21 = vector.broadcast %0 : vector<1x256xf32> to vector<16x256xf32>
    %22 = arith.mulf %20, %21 : vector<16x256xf32>
    %23 = vector.broadcast %1 : vector<1x256xf32> to vector<16x256xf32>
    %24 = arith.addf %22, %23 : vector<16x256xf32>
    %c0_8 = arith.constant 0 : index
    %c0_9 = arith.constant 0 : index
    %c0_10 = arith.constant 0 : index
    %25 = vector.load %arg1[%c0_8, %c0_9, %c0_10] : memref<2x1x8xf32, #tpu.memory_space<vmem>>, vector<2x1x8xf32>
    %cst_11 = arith.constant 1.000000e+00 : f32
    %26 = vector.broadcast %cst_11 : f32 to vector<2x1x8xf32>
    %27 = arith.subf %26, %25 : vector<2x1x8xf32>
    %cst_12 = arith.constant -1.000000e+09 : f32
    %28 = vector.broadcast %cst_12 : f32 to vector<2x1x8xf32>
    %29 = arith.mulf %27, %28 : vector<2x1x8xf32>
    %c0_13 = arith.constant 0 : index
    %c0_14 = arith.constant 0 : index
    %30 = vector.load %arg7[%c0_13, %c0_14] : memref<2x4608xf32, #tpu.memory_space<vmem>>, vector<1x768xf32>
    %c0_15 = arith.constant 0 : index
    %c768 = arith.constant 768 : index
    %31 = vector.load %arg7[%c0_15, %c768] : memref<2x4608xf32, #tpu.memory_space<vmem>>, vector<1x768xf32>
    %c0_16 = arith.constant 0 : index
    %c1536 = arith.constant 1536 : index
    %32 = vector.load %arg7[%c0_16, %c1536] : memref<2x4608xf32, #tpu.memory_space<vmem>>, vector<1x256xf32>
    %c0_17 = arith.constant 0 : index
    %c1792 = arith.constant 1792 : index
    %33 = vector.load %arg7[%c0_17, %c1792] : memref<2x4608xf32, #tpu.memory_space<vmem>>, vector<1x256xf32>
    %c0_18 = arith.constant 0 : index
    %c2048 = arith.constant 2048 : index
    %34 = vector.load %arg7[%c0_18, %c2048] : memref<2x4608xf32, #tpu.memory_space<vmem>>, vector<1x256xf32>
    %c0_19 = arith.constant 0 : index
    %c2304 = arith.constant 2304 : index
    %35 = vector.load %arg7[%c0_19, %c2304] : memref<2x4608xf32, #tpu.memory_space<vmem>>, vector<1x256xf32>
    %c0_20 = arith.constant 0 : index
    %c2560 = arith.constant 2560 : index
    %36 = vector.load %arg7[%c0_20, %c2560] : memref<2x4608xf32, #tpu.memory_space<vmem>>, vector<1x512xf32>
    %c0_21 = arith.constant 0 : index
    %c3072 = arith.constant 3072 : index
    %37 = vector.load %arg7[%c0_21, %c3072] : memref<2x4608xf32, #tpu.memory_space<vmem>>, vector<1x512xf32>
    %c0_22 = arith.constant 0 : index
    %c3584 = arith.constant 3584 : index
    %38 = vector.load %arg7[%c0_22, %c3584] : memref<2x4608xf32, #tpu.memory_space<vmem>>, vector<1x256xf32>
    %c0_23 = arith.constant 0 : index
    %c3840 = arith.constant 3840 : index
    %39 = vector.load %arg7[%c0_23, %c3840] : memref<2x4608xf32, #tpu.memory_space<vmem>>, vector<1x256xf32>
    %c0_24 = arith.constant 0 : index
    %c4096 = arith.constant 4096 : index
    %40 = vector.load %arg7[%c0_24, %c4096] : memref<2x4608xf32, #tpu.memory_space<vmem>>, vector<1x256xf32>
    %c0_25 = arith.constant 0 : index
    %c4352 = arith.constant 4352 : index
    %41 = vector.load %arg7[%c0_25, %c4352] : memref<2x4608xf32, #tpu.memory_space<vmem>>, vector<1x256xf32>
    %42 = arith.truncf %24 : vector<16x256xf32> to vector<16x256xbf16>
    %c0_26 = arith.constant 0 : index
    %c0_27 = arith.constant 0 : index
    %c0_28 = arith.constant 0 : index
    %43 = vector.load %arg3[%c0_26, %c0_27, %c0_28] : memref<2x256x768xi8, #tpu.memory_space<vmem>>, vector<1x256x768xi8>
    %44 = vector.shape_cast %43 : vector<1x256x768xi8> to vector<256x768xi8>
    %45 = arith.sitofp %44 : vector<256x768xi8> to vector<256x768xbf16>
    %cst_29 = arith.constant dense<0.000000e+00> : vector<16x768xf32>
    %46 = tpu.matmul %42, %45, %cst_29 {dimension_numbers = #tpu.dot_dimension_numbers<[1], [0], [0], [1], [0, 0, 1, 1], [], []>} : vector<16x256xbf16>, vector<256x768xbf16>, vector<16x768xf32> -> vector<16x768xf32>
    %47 = vector.broadcast %31 : vector<1x768xf32> to vector<16x768xf32>
    %48 = arith.mulf %46, %47 : vector<16x768xf32>
    %49 = vector.broadcast %30 : vector<1x768xf32> to vector<16x768xf32>
    %50 = arith.addf %48, %49 : vector<16x768xf32>
    %51 = vector.shape_cast %50 : vector<16x768xf32> to vector<2x8x768xf32>
    %52 = vector.extract_strided_slice %51 {offsets = [0, 0, 0], sizes = [2, 8, 128], strides = [1, 1, 1]} : vector<2x8x768xf32> to vector<2x8x128xf32>
    %53 = vector.extract_strided_slice %51 {offsets = [0, 0, 256], sizes = [2, 8, 128], strides = [1, 1, 1]} : vector<2x8x768xf32> to vector<2x8x128xf32>
    %54 = vector.extract_strided_slice %51 {offsets = [0, 0, 512], sizes = [2, 8, 128], strides = [1, 1, 1]} : vector<2x8x768xf32> to vector<2x8x128xf32>
    "tpu.trace_start"() <{level = 10 : i32, message = "bqd,bkd->bqk"}> : () -> ()
    %cst_30 = arith.constant dense<0.000000e+00> : vector<2x8x8xf32>
    %55 = tpu.matmul %52, %53, %cst_30 {dimension_numbers = #tpu.dot_dimension_numbers<[2], [2], [1], [1], [0, 0, 0, 1, 1, 1], [0], [0]>} : vector<2x8x128xf32>, vector<2x8x128xf32>, vector<2x8x8xf32> -> vector<2x8x8xf32>
    "tpu.trace_stop"() : () -> ()
    %56 = vector.broadcast %29 : vector<2x1x8xf32> to vector<2x8x8xf32>
    %57 = arith.addf %55, %56 : vector<2x8x8xf32>
    %cst_31 = arith.constant dense<0xFF800000> : vector<2x8xf32>
    %58 = vector.multi_reduction <maximumf>, %57, %cst_31 [2] : vector<2x8x8xf32> to vector<2x8xf32>
    %59 = vector.shape_cast %58 : vector<2x8xf32> to vector<2x8x1xf32>
    %60 = vector.broadcast %59 : vector<2x8x1xf32> to vector<2x8x8xf32>
    %61 = arith.subf %57, %60 : vector<2x8x8xf32>
    %62 = math.exp %61 : vector<2x8x8xf32>
    %cst_32 = arith.constant dense<0.000000e+00> : vector<2x8xf32>
    %63 = vector.multi_reduction <add>, %62, %cst_32 [2] : vector<2x8x8xf32> to vector<2x8xf32>
    %64 = vector.shape_cast %63 : vector<2x8xf32> to vector<2x8x1xf32>
    %65 = tpu.reciprocal %64 {approx = true} : vector<2x8x1xf32> -> vector<2x8x1xf32>
    %66 = vector.broadcast %65 : vector<2x8x1xf32> to vector<2x8x8xf32>
    %67 = arith.mulf %62, %66 : vector<2x8x8xf32>
    "tpu.trace_start"() <{level = 10 : i32, message = "bqk,bkd->bqd"}> : () -> ()
    %cst_33 = arith.constant dense<0.000000e+00> : vector<2x8x128xf32>
    %68 = tpu.matmul %67, %54, %cst_33 {dimension_numbers = #tpu.dot_dimension_numbers<[2], [1], [1], [2], [0, 0, 0, 1, 1, 2], [0], [0]>} : vector<2x8x8xf32>, vector<2x8x128xf32>, vector<2x8x128xf32> -> vector<2x8x128xf32>
    "tpu.trace_stop"() : () -> ()
    %69 = vector.extract_strided_slice %51 {offsets = [0, 0, 128], sizes = [2, 8, 128], strides = [1, 1, 1]} : vector<2x8x768xf32> to vector<2x8x128xf32>
    %70 = vector.extract_strided_slice %51 {offsets = [0, 0, 384], sizes = [2, 8, 128], strides = [1, 1, 1]} : vector<2x8x768xf32> to vector<2x8x128xf32>
    %71 = vector.extract_strided_slice %51 {offsets = [0, 0, 640], sizes = [2, 8, 128], strides = [1, 1, 1]} : vector<2x8x768xf32> to vector<2x8x128xf32>
    "tpu.trace_start"() <{level = 10 : i32, message = "bqd,bkd->bqk"}> : () -> ()
    %cst_34 = arith.constant dense<0.000000e+00> : vector<2x8x8xf32>
    %72 = tpu.matmul %69, %70, %cst_34 {dimension_numbers = #tpu.dot_dimension_numbers<[2], [2], [1], [1], [0, 0, 0, 1, 1, 1], [0], [0]>} : vector<2x8x128xf32>, vector<2x8x128xf32>, vector<2x8x8xf32> -> vector<2x8x8xf32>
    "tpu.trace_stop"() : () -> ()
    %73 = vector.broadcast %29 : vector<2x1x8xf32> to vector<2x8x8xf32>
    %74 = arith.addf %72, %73 : vector<2x8x8xf32>
    %cst_35 = arith.constant dense<0xFF800000> : vector<2x8xf32>
    %75 = vector.multi_reduction <maximumf>, %74, %cst_35 [2] : vector<2x8x8xf32> to vector<2x8xf32>
    %76 = vector.shape_cast %75 : vector<2x8xf32> to vector<2x8x1xf32>
    %77 = vector.broadcast %76 : vector<2x8x1xf32> to vector<2x8x8xf32>
    %78 = arith.subf %74, %77 : vector<2x8x8xf32>
    %79 = math.exp %78 : vector<2x8x8xf32>
    %cst_36 = arith.constant dense<0.000000e+00> : vector<2x8xf32>
    %80 = vector.multi_reduction <add>, %79, %cst_36 [2] : vector<2x8x8xf32> to vector<2x8xf32>
    %81 = vector.shape_cast %80 : vector<2x8xf32> to vector<2x8x1xf32>
    %82 = tpu.reciprocal %81 {approx = true} : vector<2x8x1xf32> -> vector<2x8x1xf32>
    %83 = vector.broadcast %82 : vector<2x8x1xf32> to vector<2x8x8xf32>
    %84 = arith.mulf %79, %83 : vector<2x8x8xf32>
    "tpu.trace_start"() <{level = 10 : i32, message = "bqk,bkd->bqd"}> : () -> ()
    %cst_37 = arith.constant dense<0.000000e+00> : vector<2x8x128xf32>
    %85 = tpu.matmul %84, %71, %cst_37 {dimension_numbers = #tpu.dot_dimension_numbers<[2], [1], [1], [2], [0, 0, 0, 1, 1, 2], [0], [0]>} : vector<2x8x8xf32>, vector<2x8x128xf32>, vector<2x8x128xf32> -> vector<2x8x128xf32>
    "tpu.trace_stop"() : () -> ()
    %86 = tpu.concatenate %68, %85 in 2 : vector<2x8x128xf32>, vector<2x8x128xf32> -> vector<2x8x256xf32>
    %87 = vector.shape_cast %86 : vector<2x8x256xf32> to vector<16x256xf32>
    %88 = arith.truncf %87 : vector<16x256xf32> to vector<16x256xbf16>
    %c0_38 = arith.constant 0 : index
    %c0_39 = arith.constant 0 : index
    %c0_40 = arith.constant 0 : index
    %89 = vector.load %arg4[%c0_38, %c0_39, %c0_40] : memref<2x256x256xi8, #tpu.memory_space<vmem>>, vector<1x256x256xi8>
    %90 = vector.shape_cast %89 : vector<1x256x256xi8> to vector<256x256xi8>
    %91 = arith.sitofp %90 : vector<256x256xi8> to vector<256x256xbf16>
    %cst_41 = arith.constant dense<0.000000e+00> : vector<16x256xf32>
    %92 = tpu.matmul %88, %91, %cst_41 {dimension_numbers = #tpu.dot_dimension_numbers<[1], [0], [0], [1], [0, 0, 1, 1], [], []>} : vector<16x256xbf16>, vector<256x256xbf16>, vector<16x256xf32> -> vector<16x256xf32>
    %93 = vector.broadcast %33 : vector<1x256xf32> to vector<16x256xf32>
    %94 = arith.mulf %92, %93 : vector<16x256xf32>
    %95 = vector.broadcast %32 : vector<1x256xf32> to vector<16x256xf32>
    %96 = arith.addf %94, %95 : vector<16x256xf32>
    %97 = arith.addf %24, %96 : vector<16x256xf32>
    %cst_42 = arith.constant dense<0.000000e+00> : vector<16xf32>
    %98 = vector.multi_reduction <add>, %97, %cst_42 [1] : vector<16x256xf32> to vector<16xf32>
    %99 = vector.shape_cast %98 : vector<16xf32> to vector<16x1xf32>
    %cst_43 = arith.constant 2.560000e+02 : f32
    %100 = vector.broadcast %cst_43 : f32 to vector<16x1xf32>
    %101 = arith.divf %99, %100 : vector<16x1xf32>
    %102 = arith.mulf %97, %97 : vector<16x256xf32>
    %cst_44 = arith.constant dense<0.000000e+00> : vector<16xf32>
    %103 = vector.multi_reduction <add>, %102, %cst_44 [1] : vector<16x256xf32> to vector<16xf32>
    %104 = vector.shape_cast %103 : vector<16xf32> to vector<16x1xf32>
    %cst_45 = arith.constant 2.560000e+02 : f32
    %105 = vector.broadcast %cst_45 : f32 to vector<16x1xf32>
    %106 = arith.divf %104, %105 : vector<16x1xf32>
    %107 = arith.mulf %101, %101 : vector<16x1xf32>
    %108 = arith.subf %106, %107 : vector<16x1xf32>
    %109 = vector.broadcast %101 : vector<16x1xf32> to vector<16x256xf32>
    %110 = arith.subf %97, %109 : vector<16x256xf32>
    %cst_46 = arith.constant 9.99999996E-13 : f32
    %111 = vector.broadcast %cst_46 : f32 to vector<16x1xf32>
    %112 = arith.addf %108, %111 : vector<16x1xf32>
    %113 = math.rsqrt %112 : vector<16x1xf32>
    %114 = vector.broadcast %113 : vector<16x1xf32> to vector<16x256xf32>
    %115 = arith.mulf %110, %114 : vector<16x256xf32>
    %116 = vector.broadcast %34 : vector<1x256xf32> to vector<16x256xf32>
    %117 = arith.mulf %115, %116 : vector<16x256xf32>
    %118 = vector.broadcast %35 : vector<1x256xf32> to vector<16x256xf32>
    %119 = arith.addf %117, %118 : vector<16x256xf32>
    %120 = arith.truncf %119 : vector<16x256xf32> to vector<16x256xbf16>
    %c0_47 = arith.constant 0 : index
    %c0_48 = arith.constant 0 : index
    %c0_49 = arith.constant 0 : index
    %121 = vector.load %arg5[%c0_47, %c0_48, %c0_49] : memref<2x256x512xi8, #tpu.memory_space<vmem>>, vector<1x256x512xi8>
    %122 = vector.shape_cast %121 : vector<1x256x512xi8> to vector<256x512xi8>
    %123 = arith.sitofp %122 : vector<256x512xi8> to vector<256x512xbf16>
    %cst_50 = arith.constant dense<0.000000e+00> : vector<16x512xf32>
    %124 = tpu.matmul %120, %123, %cst_50 {dimension_numbers = #tpu.dot_dimension_numbers<[1], [0], [0], [1], [0, 0, 1, 1], [], []>} : vector<16x256xbf16>, vector<256x512xbf16>, vector<16x512xf32> -> vector<16x512xf32>
    %125 = vector.broadcast %37 : vector<1x512xf32> to vector<16x512xf32>
    %126 = arith.mulf %124, %125 : vector<16x512xf32>
    %127 = vector.broadcast %36 : vector<1x512xf32> to vector<16x512xf32>
    %128 = arith.addf %126, %127 : vector<16x512xf32>
    %129 = arith.mulf %128, %128 : vector<16x512xf32>
    %130 = arith.mulf %128, %129 : vector<16x512xf32>
    %cst_51 = arith.constant 4.471500e-02 : f32
    %131 = vector.broadcast %cst_51 : f32 to vector<16x512xf32>
    %132 = arith.mulf %131, %130 : vector<16x512xf32>
    %133 = arith.addf %128, %132 : vector<16x512xf32>
    %cst_52 = arith.constant 0.797884583 : f32
    %134 = vector.broadcast %cst_52 : f32 to vector<16x512xf32>
    %135 = arith.mulf %134, %133 : vector<16x512xf32>
    %136 = math.tanh %135 : vector<16x512xf32>
    %cst_53 = arith.constant 1.000000e+00 : f32
    %137 = vector.broadcast %cst_53 : f32 to vector<16x512xf32>
    %138 = arith.addf %137, %136 : vector<16x512xf32>
    %cst_54 = arith.constant 5.000000e-01 : f32
    %139 = vector.broadcast %cst_54 : f32 to vector<16x512xf32>
    %140 = arith.mulf %139, %138 : vector<16x512xf32>
    %141 = arith.mulf %128, %140 : vector<16x512xf32>
    %142 = arith.truncf %141 : vector<16x512xf32> to vector<16x512xbf16>
    %c0_55 = arith.constant 0 : index
    %c0_56 = arith.constant 0 : index
    %c0_57 = arith.constant 0 : index
    %143 = vector.load %arg6[%c0_55, %c0_56, %c0_57] : memref<2x512x256xi8, #tpu.memory_space<vmem>>, vector<1x512x256xi8>
    %144 = vector.shape_cast %143 : vector<1x512x256xi8> to vector<512x256xi8>
    %145 = arith.sitofp %144 : vector<512x256xi8> to vector<512x256xbf16>
    %cst_58 = arith.constant dense<0.000000e+00> : vector<16x256xf32>
    %146 = tpu.matmul %142, %145, %cst_58 {dimension_numbers = #tpu.dot_dimension_numbers<[1], [0], [0], [1], [0, 0, 1, 1], [], []>} : vector<16x512xbf16>, vector<512x256xbf16>, vector<16x256xf32> -> vector<16x256xf32>
    %147 = vector.broadcast %39 : vector<1x256xf32> to vector<16x256xf32>
    %148 = arith.mulf %146, %147 : vector<16x256xf32>
    %149 = vector.broadcast %38 : vector<1x256xf32> to vector<16x256xf32>
    %150 = arith.addf %148, %149 : vector<16x256xf32>
    %151 = arith.addf %119, %150 : vector<16x256xf32>
    %cst_59 = arith.constant dense<0.000000e+00> : vector<16xf32>
    %152 = vector.multi_reduction <add>, %151, %cst_59 [1] : vector<16x256xf32> to vector<16xf32>
    %153 = vector.shape_cast %152 : vector<16xf32> to vector<16x1xf32>
    %cst_60 = arith.constant 2.560000e+02 : f32
    %154 = vector.broadcast %cst_60 : f32 to vector<16x1xf32>
    %155 = arith.divf %153, %154 : vector<16x1xf32>
    %156 = arith.mulf %151, %151 : vector<16x256xf32>
    %cst_61 = arith.constant dense<0.000000e+00> : vector<16xf32>
    %157 = vector.multi_reduction <add>, %156, %cst_61 [1] : vector<16x256xf32> to vector<16xf32>
    %158 = vector.shape_cast %157 : vector<16xf32> to vector<16x1xf32>
    %cst_62 = arith.constant 2.560000e+02 : f32
    %159 = vector.broadcast %cst_62 : f32 to vector<16x1xf32>
    %160 = arith.divf %158, %159 : vector<16x1xf32>
    %161 = arith.mulf %155, %155 : vector<16x1xf32>
    %162 = arith.subf %160, %161 : vector<16x1xf32>
    %163 = vector.broadcast %155 : vector<16x1xf32> to vector<16x256xf32>
    %164 = arith.subf %151, %163 : vector<16x256xf32>
    %cst_63 = arith.constant 9.99999996E-13 : f32
    %165 = vector.broadcast %cst_63 : f32 to vector<16x1xf32>
    %166 = arith.addf %162, %165 : vector<16x1xf32>
    %167 = math.rsqrt %166 : vector<16x1xf32>
    %168 = vector.broadcast %167 : vector<16x1xf32> to vector<16x256xf32>
    %169 = arith.mulf %164, %168 : vector<16x256xf32>
    %170 = vector.broadcast %40 : vector<1x256xf32> to vector<16x256xf32>
    %171 = arith.mulf %169, %170 : vector<16x256xf32>
    %172 = vector.broadcast %41 : vector<1x256xf32> to vector<16x256xf32>
    %173 = arith.addf %171, %172 : vector<16x256xf32>
    %c1_64 = arith.constant 1 : index
    %c0_65 = arith.constant 0 : index
    %174 = vector.load %arg7[%c1_64, %c0_65] : memref<2x4608xf32, #tpu.memory_space<vmem>>, vector<1x768xf32>
    %c1_66 = arith.constant 1 : index
    %c768_67 = arith.constant 768 : index
    %175 = vector.load %arg7[%c1_66, %c768_67] : memref<2x4608xf32, #tpu.memory_space<vmem>>, vector<1x768xf32>
    %c1_68 = arith.constant 1 : index
    %c1536_69 = arith.constant 1536 : index
    %176 = vector.load %arg7[%c1_68, %c1536_69] : memref<2x4608xf32, #tpu.memory_space<vmem>>, vector<1x256xf32>
    %c1_70 = arith.constant 1 : index
    %c1792_71 = arith.constant 1792 : index
    %177 = vector.load %arg7[%c1_70, %c1792_71] : memref<2x4608xf32, #tpu.memory_space<vmem>>, vector<1x256xf32>
    %c1_72 = arith.constant 1 : index
    %c2048_73 = arith.constant 2048 : index
    %178 = vector.load %arg7[%c1_72, %c2048_73] : memref<2x4608xf32, #tpu.memory_space<vmem>>, vector<1x256xf32>
    %c1_74 = arith.constant 1 : index
    %c2304_75 = arith.constant 2304 : index
    %179 = vector.load %arg7[%c1_74, %c2304_75] : memref<2x4608xf32, #tpu.memory_space<vmem>>, vector<1x256xf32>
    %c1_76 = arith.constant 1 : index
    %c2560_77 = arith.constant 2560 : index
    %180 = vector.load %arg7[%c1_76, %c2560_77] : memref<2x4608xf32, #tpu.memory_space<vmem>>, vector<1x512xf32>
    %c1_78 = arith.constant 1 : index
    %c3072_79 = arith.constant 3072 : index
    %181 = vector.load %arg7[%c1_78, %c3072_79] : memref<2x4608xf32, #tpu.memory_space<vmem>>, vector<1x512xf32>
    %c1_80 = arith.constant 1 : index
    %c3584_81 = arith.constant 3584 : index
    %182 = vector.load %arg7[%c1_80, %c3584_81] : memref<2x4608xf32, #tpu.memory_space<vmem>>, vector<1x256xf32>
    %c1_82 = arith.constant 1 : index
    %c3840_83 = arith.constant 3840 : index
    %183 = vector.load %arg7[%c1_82, %c3840_83] : memref<2x4608xf32, #tpu.memory_space<vmem>>, vector<1x256xf32>
    %c1_84 = arith.constant 1 : index
    %c4096_85 = arith.constant 4096 : index
    %184 = vector.load %arg7[%c1_84, %c4096_85] : memref<2x4608xf32, #tpu.memory_space<vmem>>, vector<1x256xf32>
    %c1_86 = arith.constant 1 : index
    %c4352_87 = arith.constant 4352 : index
    %185 = vector.load %arg7[%c1_86, %c4352_87] : memref<2x4608xf32, #tpu.memory_space<vmem>>, vector<1x256xf32>
    %186 = arith.truncf %173 : vector<16x256xf32> to vector<16x256xbf16>
    %c1_88 = arith.constant 1 : index
    %c0_89 = arith.constant 0 : index
    %c0_90 = arith.constant 0 : index
    %187 = vector.load %arg3[%c1_88, %c0_89, %c0_90] : memref<2x256x768xi8, #tpu.memory_space<vmem>>, vector<1x256x768xi8>
    %188 = vector.shape_cast %187 : vector<1x256x768xi8> to vector<256x768xi8>
    %189 = arith.sitofp %188 : vector<256x768xi8> to vector<256x768xbf16>
    %cst_91 = arith.constant dense<0.000000e+00> : vector<16x768xf32>
    %190 = tpu.matmul %186, %189, %cst_91 {dimension_numbers = #tpu.dot_dimension_numbers<[1], [0], [0], [1], [0, 0, 1, 1], [], []>} : vector<16x256xbf16>, vector<256x768xbf16>, vector<16x768xf32> -> vector<16x768xf32>
    %191 = vector.broadcast %175 : vector<1x768xf32> to vector<16x768xf32>
    %192 = arith.mulf %190, %191 : vector<16x768xf32>
    %193 = vector.broadcast %174 : vector<1x768xf32> to vector<16x768xf32>
    %194 = arith.addf %192, %193 : vector<16x768xf32>
    %195 = vector.shape_cast %194 : vector<16x768xf32> to vector<2x8x768xf32>
    %196 = vector.extract_strided_slice %195 {offsets = [0, 0, 0], sizes = [2, 8, 128], strides = [1, 1, 1]} : vector<2x8x768xf32> to vector<2x8x128xf32>
    %197 = vector.extract_strided_slice %195 {offsets = [0, 0, 256], sizes = [2, 8, 128], strides = [1, 1, 1]} : vector<2x8x768xf32> to vector<2x8x128xf32>
    %198 = vector.extract_strided_slice %195 {offsets = [0, 0, 512], sizes = [2, 8, 128], strides = [1, 1, 1]} : vector<2x8x768xf32> to vector<2x8x128xf32>
    "tpu.trace_start"() <{level = 10 : i32, message = "bqd,bkd->bqk"}> : () -> ()
    %cst_92 = arith.constant dense<0.000000e+00> : vector<2x8x8xf32>
    %199 = tpu.matmul %196, %197, %cst_92 {dimension_numbers = #tpu.dot_dimension_numbers<[2], [2], [1], [1], [0, 0, 0, 1, 1, 1], [0], [0]>} : vector<2x8x128xf32>, vector<2x8x128xf32>, vector<2x8x8xf32> -> vector<2x8x8xf32>
    "tpu.trace_stop"() : () -> ()
    %200 = vector.broadcast %29 : vector<2x1x8xf32> to vector<2x8x8xf32>
    %201 = arith.addf %199, %200 : vector<2x8x8xf32>
    %cst_93 = arith.constant dense<0xFF800000> : vector<2x8xf32>
    %202 = vector.multi_reduction <maximumf>, %201, %cst_93 [2] : vector<2x8x8xf32> to vector<2x8xf32>
    %203 = vector.shape_cast %202 : vector<2x8xf32> to vector<2x8x1xf32>
    %204 = vector.broadcast %203 : vector<2x8x1xf32> to vector<2x8x8xf32>
    %205 = arith.subf %201, %204 : vector<2x8x8xf32>
    %206 = math.exp %205 : vector<2x8x8xf32>
    %cst_94 = arith.constant dense<0.000000e+00> : vector<2x8xf32>
    %207 = vector.multi_reduction <add>, %206, %cst_94 [2] : vector<2x8x8xf32> to vector<2x8xf32>
    %208 = vector.shape_cast %207 : vector<2x8xf32> to vector<2x8x1xf32>
    %209 = tpu.reciprocal %208 {approx = true} : vector<2x8x1xf32> -> vector<2x8x1xf32>
    %210 = vector.broadcast %209 : vector<2x8x1xf32> to vector<2x8x8xf32>
    %211 = arith.mulf %206, %210 : vector<2x8x8xf32>
    "tpu.trace_start"() <{level = 10 : i32, message = "bqk,bkd->bqd"}> : () -> ()
    %cst_95 = arith.constant dense<0.000000e+00> : vector<2x8x128xf32>
    %212 = tpu.matmul %211, %198, %cst_95 {dimension_numbers = #tpu.dot_dimension_numbers<[2], [1], [1], [2], [0, 0, 0, 1, 1, 2], [0], [0]>} : vector<2x8x8xf32>, vector<2x8x128xf32>, vector<2x8x128xf32> -> vector<2x8x128xf32>
    "tpu.trace_stop"() : () -> ()
    %213 = vector.extract_strided_slice %195 {offsets = [0, 0, 128], sizes = [2, 8, 128], strides = [1, 1, 1]} : vector<2x8x768xf32> to vector<2x8x128xf32>
    %214 = vector.extract_strided_slice %195 {offsets = [0, 0, 384], sizes = [2, 8, 128], strides = [1, 1, 1]} : vector<2x8x768xf32> to vector<2x8x128xf32>
    %215 = vector.extract_strided_slice %195 {offsets = [0, 0, 640], sizes = [2, 8, 128], strides = [1, 1, 1]} : vector<2x8x768xf32> to vector<2x8x128xf32>
    "tpu.trace_start"() <{level = 10 : i32, message = "bqd,bkd->bqk"}> : () -> ()
    %cst_96 = arith.constant dense<0.000000e+00> : vector<2x8x8xf32>
    %216 = tpu.matmul %213, %214, %cst_96 {dimension_numbers = #tpu.dot_dimension_numbers<[2], [2], [1], [1], [0, 0, 0, 1, 1, 1], [0], [0]>} : vector<2x8x128xf32>, vector<2x8x128xf32>, vector<2x8x8xf32> -> vector<2x8x8xf32>
    "tpu.trace_stop"() : () -> ()
    %217 = vector.broadcast %29 : vector<2x1x8xf32> to vector<2x8x8xf32>
    %218 = arith.addf %216, %217 : vector<2x8x8xf32>
    %cst_97 = arith.constant dense<0xFF800000> : vector<2x8xf32>
    %219 = vector.multi_reduction <maximumf>, %218, %cst_97 [2] : vector<2x8x8xf32> to vector<2x8xf32>
    %220 = vector.shape_cast %219 : vector<2x8xf32> to vector<2x8x1xf32>
    %221 = vector.broadcast %220 : vector<2x8x1xf32> to vector<2x8x8xf32>
    %222 = arith.subf %218, %221 : vector<2x8x8xf32>
    %223 = math.exp %222 : vector<2x8x8xf32>
    %cst_98 = arith.constant dense<0.000000e+00> : vector<2x8xf32>
    %224 = vector.multi_reduction <add>, %223, %cst_98 [2] : vector<2x8x8xf32> to vector<2x8xf32>
    %225 = vector.shape_cast %224 : vector<2x8xf32> to vector<2x8x1xf32>
    %226 = tpu.reciprocal %225 {approx = true} : vector<2x8x1xf32> -> vector<2x8x1xf32>
    %227 = vector.broadcast %226 : vector<2x8x1xf32> to vector<2x8x8xf32>
    %228 = arith.mulf %223, %227 : vector<2x8x8xf32>
    "tpu.trace_start"() <{level = 10 : i32, message = "bqk,bkd->bqd"}> : () -> ()
    %cst_99 = arith.constant dense<0.000000e+00> : vector<2x8x128xf32>
    %229 = tpu.matmul %228, %215, %cst_99 {dimension_numbers = #tpu.dot_dimension_numbers<[2], [1], [1], [2], [0, 0, 0, 1, 1, 2], [0], [0]>} : vector<2x8x8xf32>, vector<2x8x128xf32>, vector<2x8x128xf32> -> vector<2x8x128xf32>
    "tpu.trace_stop"() : () -> ()
    %230 = tpu.concatenate %212, %229 in 2 : vector<2x8x128xf32>, vector<2x8x128xf32> -> vector<2x8x256xf32>
    %231 = vector.shape_cast %230 : vector<2x8x256xf32> to vector<16x256xf32>
    %232 = arith.truncf %231 : vector<16x256xf32> to vector<16x256xbf16>
    %c1_100 = arith.constant 1 : index
    %c0_101 = arith.constant 0 : index
    %c0_102 = arith.constant 0 : index
    %233 = vector.load %arg4[%c1_100, %c0_101, %c0_102] : memref<2x256x256xi8, #tpu.memory_space<vmem>>, vector<1x256x256xi8>
    %234 = vector.shape_cast %233 : vector<1x256x256xi8> to vector<256x256xi8>
    %235 = arith.sitofp %234 : vector<256x256xi8> to vector<256x256xbf16>
    %cst_103 = arith.constant dense<0.000000e+00> : vector<16x256xf32>
    %236 = tpu.matmul %232, %235, %cst_103 {dimension_numbers = #tpu.dot_dimension_numbers<[1], [0], [0], [1], [0, 0, 1, 1], [], []>} : vector<16x256xbf16>, vector<256x256xbf16>, vector<16x256xf32> -> vector<16x256xf32>
    %237 = vector.broadcast %177 : vector<1x256xf32> to vector<16x256xf32>
    %238 = arith.mulf %236, %237 : vector<16x256xf32>
    %239 = vector.broadcast %176 : vector<1x256xf32> to vector<16x256xf32>
    %240 = arith.addf %238, %239 : vector<16x256xf32>
    %241 = arith.addf %173, %240 : vector<16x256xf32>
    %cst_104 = arith.constant dense<0.000000e+00> : vector<16xf32>
    %242 = vector.multi_reduction <add>, %241, %cst_104 [1] : vector<16x256xf32> to vector<16xf32>
    %243 = vector.shape_cast %242 : vector<16xf32> to vector<16x1xf32>
    %cst_105 = arith.constant 2.560000e+02 : f32
    %244 = vector.broadcast %cst_105 : f32 to vector<16x1xf32>
    %245 = arith.divf %243, %244 : vector<16x1xf32>
    %246 = arith.mulf %241, %241 : vector<16x256xf32>
    %cst_106 = arith.constant dense<0.000000e+00> : vector<16xf32>
    %247 = vector.multi_reduction <add>, %246, %cst_106 [1] : vector<16x256xf32> to vector<16xf32>
    %248 = vector.shape_cast %247 : vector<16xf32> to vector<16x1xf32>
    %cst_107 = arith.constant 2.560000e+02 : f32
    %249 = vector.broadcast %cst_107 : f32 to vector<16x1xf32>
    %250 = arith.divf %248, %249 : vector<16x1xf32>
    %251 = arith.mulf %245, %245 : vector<16x1xf32>
    %252 = arith.subf %250, %251 : vector<16x1xf32>
    %253 = vector.broadcast %245 : vector<16x1xf32> to vector<16x256xf32>
    %254 = arith.subf %241, %253 : vector<16x256xf32>
    %cst_108 = arith.constant 9.99999996E-13 : f32
    %255 = vector.broadcast %cst_108 : f32 to vector<16x1xf32>
    %256 = arith.addf %252, %255 : vector<16x1xf32>
    %257 = math.rsqrt %256 : vector<16x1xf32>
    %258 = vector.broadcast %257 : vector<16x1xf32> to vector<16x256xf32>
    %259 = arith.mulf %254, %258 : vector<16x256xf32>
    %260 = vector.broadcast %178 : vector<1x256xf32> to vector<16x256xf32>
    %261 = arith.mulf %259, %260 : vector<16x256xf32>
    %262 = vector.broadcast %179 : vector<1x256xf32> to vector<16x256xf32>
    %263 = arith.addf %261, %262 : vector<16x256xf32>
    %264 = arith.truncf %263 : vector<16x256xf32> to vector<16x256xbf16>
    %c1_109 = arith.constant 1 : index
    %c0_110 = arith.constant 0 : index
    %c0_111 = arith.constant 0 : index
    %265 = vector.load %arg5[%c1_109, %c0_110, %c0_111] : memref<2x256x512xi8, #tpu.memory_space<vmem>>, vector<1x256x512xi8>
    %266 = vector.shape_cast %265 : vector<1x256x512xi8> to vector<256x512xi8>
    %267 = arith.sitofp %266 : vector<256x512xi8> to vector<256x512xbf16>
    %cst_112 = arith.constant dense<0.000000e+00> : vector<16x512xf32>
    %268 = tpu.matmul %264, %267, %cst_112 {dimension_numbers = #tpu.dot_dimension_numbers<[1], [0], [0], [1], [0, 0, 1, 1], [], []>} : vector<16x256xbf16>, vector<256x512xbf16>, vector<16x512xf32> -> vector<16x512xf32>
    %269 = vector.broadcast %181 : vector<1x512xf32> to vector<16x512xf32>
    %270 = arith.mulf %268, %269 : vector<16x512xf32>
    %271 = vector.broadcast %180 : vector<1x512xf32> to vector<16x512xf32>
    %272 = arith.addf %270, %271 : vector<16x512xf32>
    %273 = arith.mulf %272, %272 : vector<16x512xf32>
    %274 = arith.mulf %272, %273 : vector<16x512xf32>
    %cst_113 = arith.constant 4.471500e-02 : f32
    %275 = vector.broadcast %cst_113 : f32 to vector<16x512xf32>
    %276 = arith.mulf %275, %274 : vector<16x512xf32>
    %277 = arith.addf %272, %276 : vector<16x512xf32>
    %cst_114 = arith.constant 0.797884583 : f32
    %278 = vector.broadcast %cst_114 : f32 to vector<16x512xf32>
    %279 = arith.mulf %278, %277 : vector<16x512xf32>
    %280 = math.tanh %279 : vector<16x512xf32>
    %cst_115 = arith.constant 1.000000e+00 : f32
    %281 = vector.broadcast %cst_115 : f32 to vector<16x512xf32>
    %282 = arith.addf %281, %280 : vector<16x512xf32>
    %cst_116 = arith.constant 5.000000e-01 : f32
    %283 = vector.broadcast %cst_116 : f32 to vector<16x512xf32>
    %284 = arith.mulf %283, %282 : vector<16x512xf32>
    %285 = arith.mulf %272, %284 : vector<16x512xf32>
    %286 = arith.truncf %285 : vector<16x512xf32> to vector<16x512xbf16>
    %c1_117 = arith.constant 1 : index
    %c0_118 = arith.constant 0 : index
    %c0_119 = arith.constant 0 : index
    %287 = vector.load %arg6[%c1_117, %c0_118, %c0_119] : memref<2x512x256xi8, #tpu.memory_space<vmem>>, vector<1x512x256xi8>
    %288 = vector.shape_cast %287 : vector<1x512x256xi8> to vector<512x256xi8>
    %289 = arith.sitofp %288 : vector<512x256xi8> to vector<512x256xbf16>
    %cst_120 = arith.constant dense<0.000000e+00> : vector<16x256xf32>
    %290 = tpu.matmul %286, %289, %cst_120 {dimension_numbers = #tpu.dot_dimension_numbers<[1], [0], [0], [1], [0, 0, 1, 1], [], []>} : vector<16x512xbf16>, vector<512x256xbf16>, vector<16x256xf32> -> vector<16x256xf32>
    %291 = vector.broadcast %183 : vector<1x256xf32> to vector<16x256xf32>
    %292 = arith.mulf %290, %291 : vector<16x256xf32>
    %293 = vector.broadcast %182 : vector<1x256xf32> to vector<16x256xf32>
    %294 = arith.addf %292, %293 : vector<16x256xf32>
    %295 = arith.addf %263, %294 : vector<16x256xf32>
    %cst_121 = arith.constant dense<0.000000e+00> : vector<16xf32>
    %296 = vector.multi_reduction <add>, %295, %cst_121 [1] : vector<16x256xf32> to vector<16xf32>
    %297 = vector.shape_cast %296 : vector<16xf32> to vector<16x1xf32>
    %cst_122 = arith.constant 2.560000e+02 : f32
    %298 = vector.broadcast %cst_122 : f32 to vector<16x1xf32>
    %299 = arith.divf %297, %298 : vector<16x1xf32>
    %300 = arith.mulf %295, %295 : vector<16x256xf32>
    %cst_123 = arith.constant dense<0.000000e+00> : vector<16xf32>
    %301 = vector.multi_reduction <add>, %300, %cst_123 [1] : vector<16x256xf32> to vector<16xf32>
    %302 = vector.shape_cast %301 : vector<16xf32> to vector<16x1xf32>
    %cst_124 = arith.constant 2.560000e+02 : f32
    %303 = vector.broadcast %cst_124 : f32 to vector<16x1xf32>
    %304 = arith.divf %302, %303 : vector<16x1xf32>
    %305 = arith.mulf %299, %299 : vector<16x1xf32>
    %306 = arith.subf %304, %305 : vector<16x1xf32>
    %307 = vector.broadcast %299 : vector<16x1xf32> to vector<16x256xf32>
    %308 = arith.subf %295, %307 : vector<16x256xf32>
    %cst_125 = arith.constant 9.99999996E-13 : f32
    %309 = vector.broadcast %cst_125 : f32 to vector<16x1xf32>
    %310 = arith.addf %306, %309 : vector<16x1xf32>
    %311 = math.rsqrt %310 : vector<16x1xf32>
    %312 = vector.broadcast %311 : vector<16x1xf32> to vector<16x256xf32>
    %313 = arith.mulf %308, %312 : vector<16x256xf32>
    %314 = vector.broadcast %184 : vector<1x256xf32> to vector<16x256xf32>
    %315 = arith.mulf %313, %314 : vector<16x256xf32>
    %316 = vector.broadcast %185 : vector<1x256xf32> to vector<16x256xf32>
    %317 = arith.addf %315, %316 : vector<16x256xf32>
    %318 = vector.shape_cast %317 : vector<16x256xf32> to vector<2x8x256xf32>
    %319 = vector.extract_strided_slice %318 {offsets = [0, 0, 0], sizes = [2, 1, 256], strides = [1, 1, 1]} : vector<2x8x256xf32> to vector<2x1x256xf32>
    %320 = vector.shape_cast %319 : vector<2x1x256xf32> to vector<2x256xf32>
    %c2 = arith.constant 2 : index
    %c0_126 = arith.constant 0 : index
    %321 = vector.load %arg12[%c2, %c0_126] : memref<5x256xf32, #tpu.memory_space<vmem>>, vector<1x128xf32>
    %c3 = arith.constant 3 : index
    %c0_127 = arith.constant 0 : index
    %322 = vector.load %arg12[%c3, %c0_127] : memref<5x256xf32, #tpu.memory_space<vmem>>, vector<1x64xf32>
    %c4 = arith.constant 4 : index
    %c0_128 = arith.constant 0 : index
    %323 = vector.load %arg12[%c4, %c0_128] : memref<5x256xf32, #tpu.memory_space<vmem>>, vector<1x1xf32>
    %324 = arith.truncf %320 : vector<2x256xf32> to vector<2x256xbf16>
    %c0_129 = arith.constant 0 : index
    %c0_130 = arith.constant 0 : index
    %325 = vector.load %arg8[%c0_129, %c0_130] : memref<256x128xbf16, #tpu.memory_space<vmem>>, vector<256x128xbf16>
    %cst_131 = arith.constant dense<0.000000e+00> : vector<2x128xf32>
    %326 = tpu.matmul %324, %325, %cst_131 {dimension_numbers = #tpu.dot_dimension_numbers<[1], [0], [0], [1], [0, 0, 1, 1], [], []>} : vector<2x256xbf16>, vector<256x128xbf16>, vector<2x128xf32> -> vector<2x128xf32>
    %327 = vector.broadcast %321 : vector<1x128xf32> to vector<2x128xf32>
    %328 = arith.addf %326, %327 : vector<2x128xf32>
    %cst_132 = arith.constant 0.000000e+00 : f32
    %329 = vector.broadcast %cst_132 : f32 to vector<2x128xf32>
    %330 = arith.maximumf %328, %329 : vector<2x128xf32>
    %331 = arith.truncf %330 : vector<2x128xf32> to vector<2x128xbf16>
    %c0_133 = arith.constant 0 : index
    %c0_134 = arith.constant 0 : index
    %332 = vector.load %arg9[%c0_133, %c0_134] : memref<128x64xbf16, #tpu.memory_space<vmem>>, vector<128x64xbf16>
    %cst_135 = arith.constant dense<0.000000e+00> : vector<2x64xf32>
    %333 = tpu.matmul %331, %332, %cst_135 {dimension_numbers = #tpu.dot_dimension_numbers<[1], [0], [0], [1], [0, 0, 1, 1], [], []>} : vector<2x128xbf16>, vector<128x64xbf16>, vector<2x64xf32> -> vector<2x64xf32>
    %c0_136 = arith.constant 0 : index
    %c0_137 = arith.constant 0 : index
    %334 = vector.load %arg2[%c0_136, %c0_137] : memref<2x8xf32, #tpu.memory_space<vmem>>, vector<2x8xf32>
    %335 = arith.truncf %334 : vector<2x8xf32> to vector<2x8xbf16>
    %c0_138 = arith.constant 0 : index
    %c0_139 = arith.constant 0 : index
    %336 = vector.load %arg10[%c0_138, %c0_139] : memref<8x64xbf16, #tpu.memory_space<vmem>>, vector<8x64xbf16>
    %cst_140 = arith.constant dense<0.000000e+00> : vector<2x64xf32>
    %337 = tpu.matmul %335, %336, %cst_140 {dimension_numbers = #tpu.dot_dimension_numbers<[1], [0], [0], [1], [0, 0, 1, 1], [], []>} : vector<2x8xbf16>, vector<8x64xbf16>, vector<2x64xf32> -> vector<2x64xf32>
    %338 = arith.addf %333, %337 : vector<2x64xf32>
    %339 = vector.broadcast %322 : vector<1x64xf32> to vector<2x64xf32>
    %340 = arith.addf %338, %339 : vector<2x64xf32>
    %cst_141 = arith.constant 0.000000e+00 : f32
    %341 = vector.broadcast %cst_141 : f32 to vector<2x64xf32>
    %342 = arith.maximumf %340, %341 : vector<2x64xf32>
    %343 = arith.truncf %342 : vector<2x64xf32> to vector<2x64xbf16>
    %c0_142 = arith.constant 0 : index
    %c0_143 = arith.constant 0 : index
    %344 = vector.load %arg11[%c0_142, %c0_143] : memref<64x1xbf16, #tpu.memory_space<vmem>>, vector<64x1xbf16>
    %cst_144 = arith.constant dense<0.000000e+00> : vector<2x1xf32>
    %345 = tpu.matmul %343, %344, %cst_144 {dimension_numbers = #tpu.dot_dimension_numbers<[1], [0], [0], [1], [0, 0, 1, 1], [], []>} : vector<2x64xbf16>, vector<64x1xbf16>, vector<2x1xf32> -> vector<2x1xf32>
    %346 = vector.broadcast %323 : vector<1x1xf32> to vector<2x1xf32>
    %347 = arith.addf %345, %346 : vector<2x1xf32>
    %348 = vector.shape_cast %347 : vector<2x1xf32> to vector<2x1xf32>
    %349 = vector.broadcast %348 : vector<2x1xf32> to vector<2x128xf32>
    %c0_145 = arith.constant 0 : index
    %c0_146 = arith.constant 0 : index
    %350 = vector.load %arg13[%c0_145, %c0_146] : memref<2x128xf32, #tpu.memory_space<vmem>>, vector<2x128xf32>
    tpu.vector_store %arg13[%c0_145, %c0_146], %349 {strides = array<i32>} : memref<2x128xf32, #tpu.memory_space<vmem>>, vector<2x128xf32>,
    return
  }
}

</mosaic_0001>

<llo_original>
// kernel: tpu_custom_call.1
$region0: #{tpu_custom_call.1}
  #allocation0 [shape = 'u32[]', space=smem, size = 0x4, offset = 0x4, fixed_abs, tag = 'smem constant byte address 0x4 - core index']
  #allocation1 [shape = 'u32[144,128]{1,0:T(1,128)}', space=vmem, size = 0x12000, scoped, tag = 'internal scratch']
  %s0 = inlined_call_operand.hbm [shape: f32[16,256], index: 0, kind: input, shape index: {}]
  %s1 = inlined_call_operand.hbm [shape: f32[2,1,8], index: 1, kind: input, shape index: {}]
  %s2 = inlined_call_operand.hbm [shape: f32[2,8], index: 2, kind: input, shape index: {}]
  %s3 = inlined_call_operand.hbm [shape: s8[2,256,768], index: 3, kind: input, shape index: {}]
  %s4 = inlined_call_operand.hbm [shape: s8[2,256,256], index: 4, kind: input, shape index: {}]
  %s5 = inlined_call_operand.hbm [shape: s8[2,256,512], index: 5, kind: input, shape index: {}]
  %s6 = inlined_call_operand.hbm [shape: s8[2,512,256], index: 6, kind: input, shape index: {}]
  %s7 = inlined_call_operand.hbm [shape: f32[2,4608], index: 7, kind: input, shape index: {}]
  %s8 = inlined_call_operand.vmem [shape: bf16[256,128], index: 8, kind: input, shape index: {}]
  %s9 = inlined_call_operand.vmem [shape: bf16[128,64], index: 9, kind: input, shape index: {}]
  %s10 = inlined_call_operand.hbm [shape: bf16[8,64], index: 10, kind: input, shape index: {}]
  %s11 = inlined_call_operand.vmem [shape: bf16[64,1], index: 11, kind: input, shape index: {}]
  %s12 = inlined_call_operand.vmem [shape: f32[5,256], index: 12, kind: input, shape index: {}]
  %s13 = inlined_call_operand.hbm [shape: f32[2,128], index: 13, kind: output, shape index: {}]
  %s14 = sld [smem:[#allocation0]]
  $region98: #{tpu_custom_call.1} parent=0
    _
  %s16 = ssub.s32 1, %s14
  %s17 = scalar_select 0, %s16, %s14
  $region1: #{tpu_custom_call.1} parent=0
    #allocation2 [shape = 'u8[16384]{0}', space=vmem, size = 0x4000, scoped, tag = 'input window, operand 0, single buffered']
    #allocation3 [shape = 's32[1]{0}', space=sflag, size = 0x4, scoped, tag = 'scoped memory for tpu_custom_call.1']
    #allocation4 [shape = 's32[1]{0}', space=sflag, size = 0x4, scoped, tag = 'scoped memory for tpu_custom_call.1']
    #allocation5 [shape = 'u8[1024]{0}', space=vmem, size = 0x400, scoped, tag = 'input window, operand 1, single buffered']
    #allocation6 [shape = 's32[1]{0}', space=sflag, size = 0x4, scoped, tag = 'scoped memory for tpu_custom_call.1']
    #allocation7 [shape = 'u8[1024]{0}', space=vmem, size = 0x400, scoped, tag = 'input window, operand 2, single buffered']
    #allocation8 [shape = 'u8[393216]{0}', space=vmem, size = 0x60000, scoped, tag = 'input window, operand 3, single buffered']
    #allocation9 [shape = 's32[1]{0}', space=sflag, size = 0x4, scoped, tag = 'scoped memory for tpu_custom_call.1']
    #allocation10 [shape = 'u8[131072]{0}', space=vmem, size = 0x20000, scoped, tag = 'input window, operand 4, single buffered']
    #allocation11 [shape = 'u8[262144]{0}', space=vmem, size = 0x40000, scoped, tag = 'input window, operand 5, single buffered']
    #allocation12 [shape = 's32[1]{0}', space=sflag, size = 0x4, scoped, tag = 'scoped memory for tpu_custom_call.1']
    #allocation13 [shape = 'u8[262144]{0}', space=vmem, size = 0x40000, scoped, tag = 'input window, operand 6, single buffered']
    #allocation14 [shape = 'u8[36864]{0}', space=vmem, size = 0x9000, scoped, tag = 'input window, operand 7, single buffered']
    #allocation15 [shape = 's32[1]{0}', space=sflag, size = 0x4, scoped, tag = 'scoped memory for tpu_custom_call.1']
    #allocation16 [shape = 'u8[2048]{0}', space=vmem, size = 0x800, scoped, tag = 'input window, operand 10, single buffered']
    #allocation17 [shape = 'u8[1024]{0}', space=vmem, size = 0x400, scoped, tag = 'output window, operand 0, single buffered']
    %18 = vsyncpa [#allocation3], 0
    %19 = vsyncpa [#allocation6], 0
    %20 = vsyncpa [#allocation9], 0
    %21 = vsyncpa [#allocation12], 0
    %22 = vsyncpa [#allocation15], 0
    %23 = vsyncpa [#allocation4], 0
    // Predicated region
    $region2: #{tpu_custom_call.1} parent=1 // pred_check
      _
    $region3: #{tpu_custom_call.1} parent=1 // pred_check_branch
      %25 = sbr.rel (0) target = $region5
    $region4: #{tpu_custom_call.1} parent=1 // pred_region
      %s27 = ssub.s32 512, 512
      %28 = vsyncadd [#allocation3], %s27
      %s29 = sshll.u32 [#allocation2], 4
      %s30 = int_to_ptr.vmem [resolvable:$true] %s29
      %35 = dma.hbm_to_vmem [thread:$0]  %s0, 512, %s30, [#allocation3], 256, 256, 16
    $region5: #{tpu_custom_call.1} parent=1 // pred_fallthru
      _
    // Predicated region
    $region6: #{tpu_custom_call.1} parent=1 // pred_check
      _
    $region7: #{tpu_custom_call.1} parent=1 // pred_check_branch
      %37 = sbr.rel (0) target = $region9
    $region8: #{tpu_custom_call.1} parent=1 // pred_region
      %s39 = ssub.s32 32, 32
      %40 = vsyncadd [#allocation6], %s39
      %s41 = sshll.u32 [#allocation5], 4
      %s42 = int_to_ptr.vmem [resolvable:$true] %s41
      %47 = dma.hbm_to_vmem [thread:$0]  %s1, 32, %s42, [#allocation6], 16, 16, 1
    $region9: #{tpu_custom_call.1} parent=1 // pred_fallthru
      _
    // Predicated region
    $region10: #{tpu_custom_call.1} parent=1 // pred_check
      _
    $region11: #{tpu_custom_call.1} parent=1 // pred_check_branch
      %49 = sbr.rel (0) target = $region13
    $region12: #{tpu_custom_call.1} parent=1 // pred_region
      %s51 = ssub.s32 32, 32
      %52 = vsyncadd [#allocation6], %s51
      %s54 = sshll.u32 [#allocation7], 4
      %s55 = int_to_ptr.vmem [resolvable:$true] %s54
      %57 = dma.hbm_to_vmem [thread:$0]  %s2, 32, %s55, [#allocation6]
    $region13: #{tpu_custom_call.1} parent=1 // pred_fallthru
      _
    // Predicated region
    $region14: #{tpu_custom_call.1} parent=1 // pred_check
      _
    $region15: #{tpu_custom_call.1} parent=1 // pred_check_branch
      %59 = sbr.rel (0) target = $region17
    $region16: #{tpu_custom_call.1} parent=1 // pred_region
      %s61 = ssub.s32 12288, 12288
      %62 = vsyncadd [#allocation9], %s61
      %s63 = sshll.u32 [#allocation8], 4
      %s64 = int_to_ptr.vmem [resolvable:$true] %s63
      %69 = dma.hbm_to_vmem [thread:$0]  %s3, 12288, %s64, [#allocation9], 768, 768, 48
    $region17: #{tpu_custom_call.1} parent=1 // pred_fallthru
      _
    // Predicated region
    $region18: #{tpu_custom_call.1} parent=1 // pred_check
      _
    $region19: #{tpu_custom_call.1} parent=1 // pred_check_branch
      %71 = sbr.rel (0) target = $region21
    $region20: #{tpu_custom_call.1} parent=1 // pred_region
      %s73 = ssub.s32 4096, 4096
      %74 = vsyncadd [#allocation9], %s73
      %s75 = sshll.u32 [#allocation10], 4
      %s76 = int_to_ptr.vmem [resolvable:$true] %s75
      %81 = dma.hbm_to_vmem [thread:$0]  %s4, 4096, %s76, [#allocation9], 256, 256, 16
    $region21: #{tpu_custom_call.1} parent=1 // pred_fallthru
      _
    // Predicated region
    $region22: #{tpu_custom_call.1} parent=1 // pred_check
      _
    $region23: #{tpu_custom_call.1} parent=1 // pred_check_branch
      %83 = sbr.rel (0) target = $region25
    $region24: #{tpu_custom_call.1} parent=1 // pred_region
      %s85 = ssub.s32 8192, 8192
      %86 = vsyncadd [#allocation12], %s85
      %s87 = sshll.u32 [#allocation11], 4
      %s88 = int_to_ptr.vmem [resolvable:$true] %s87
      %93 = dma.hbm_to_vmem [thread:$0]  %s5, 8192, %s88, [#allocation12], 512, 512, 32
    $region25: #{tpu_custom_call.1} parent=1 // pred_fallthru
      _
    // Predicated region
    $region26: #{tpu_custom_call.1} parent=1 // pred_check
      _
    $region27: #{tpu_custom_call.1} parent=1 // pred_check_branch
      %95 = sbr.rel (0) target = $region29
    $region28: #{tpu_custom_call.1} parent=1 // pred_region
      %s97 = ssub.s32 8192, 8192
      %98 = vsyncadd [#allocation12], %s97
      %s99 = sshll.u32 [#allocation13], 4
      %s100 = int_to_ptr.vmem [resolvable:$true] %s99
      %105 = dma.hbm_to_vmem [thread:$0]  %s6, 8192, %s100, [#allocation12], 256, 256, 16
    $region29: #{tpu_custom_call.1} parent=1 // pred_fallthru
      _
    // Predicated region
    $region30: #{tpu_custom_call.1} parent=1 // pred_check
      _
    $region31: #{tpu_custom_call.1} parent=1 // pred_check_branch
      %107 = sbr.rel (0) target = $region33
    $region32: #{tpu_custom_call.1} parent=1 // pred_region
      %s109 = ssub.s32 1152, 1152
      %110 = vsyncadd [#allocation15], %s109
      %s112 = sshll.u32 [#allocation14], 4
      %s113 = int_to_ptr.vmem [resolvable:$true] %s112
      %115 = dma.hbm_to_vmem [thread:$0]  %s7, 1152, %s113, [#allocation15]
    $region33: #{tpu_custom_call.1} parent=1 // pred_fallthru
      _
    // Predicated region
    $region34: #{tpu_custom_call.1} parent=1 // pred_check
      _
    $region35: #{tpu_custom_call.1} parent=1 // pred_check_branch
      %117 = sbr.rel (0) target = $region37
    $region36: #{tpu_custom_call.1} parent=1 // pred_region
      _
    $region37: #{tpu_custom_call.1} parent=1 // pred_fallthru
      _
    // Predicated region
    $region38: #{tpu_custom_call.1} parent=1 // pred_check
      _
    $region39: #{tpu_custom_call.1} parent=1 // pred_check_branch
      %119 = sbr.rel (0) target = $region41
    $region40: #{tpu_custom_call.1} parent=1 // pred_region
      _
    $region41: #{tpu_custom_call.1} parent=1 // pred_fallthru
      _
    // Predicated region
    $region42: #{tpu_custom_call.1} parent=1 // pred_check
      _
    $region43: #{tpu_custom_call.1} parent=1 // pred_check_branch
      %121 = sbr.rel (0) target = $region45
    $region44: #{tpu_custom_call.1} parent=1 // pred_region
      %s123 = ssub.s32 64, 64
      %124 = vsyncadd [#allocation15], %s123
      %s126 = sshll.u32 [#allocation16], 4
      %s127 = int_to_ptr.vmem [resolvable:$true] %s126
      %129 = dma.hbm_to_vmem [thread:$0]  %s10, 64, %s127, [#allocation15]
    $region45: #{tpu_custom_call.1} parent=1 // pred_fallthru
      _
    // Predicated region
    $region46: #{tpu_custom_call.1} parent=1 // pred_check
      _
    $region47: #{tpu_custom_call.1} parent=1 // pred_check_branch
      %131 = sbr.rel (0) target = $region49
    $region48: #{tpu_custom_call.1} parent=1 // pred_region
      _
    $region49: #{tpu_custom_call.1} parent=1 // pred_fallthru
      _
    // Predicated region
    $region50: #{tpu_custom_call.1} parent=1 // pred_check
      _
    $region51: #{tpu_custom_call.1} parent=1 // pred_check_branch
      %133 = sbr.rel (0) target = $region53
    $region52: #{tpu_custom_call.1} parent=1 // pred_region
      _
    $region53: #{tpu_custom_call.1} parent=1 // pred_fallthru
      _
    // Predicated region
    $region54: #{tpu_custom_call.1} parent=1 // pred_check
      _
    $region55: #{tpu_custom_call.1} parent=1 // pred_check_branch
      %135 = sbr.rel (0) target = $region57
    $region56: #{tpu_custom_call.1} parent=1 // pred_region
      %136 = dma.done [#allocation3], 512
    $region57: #{tpu_custom_call.1} parent=1 // pred_fallthru
      _
    // Predicated region
    $region58: #{tpu_custom_call.1} parent=1 // pred_check
      _
    $region59: #{tpu_custom_call.1} parent=1 // pred_check_branch
      %138 = sbr.rel (0) target = $region61
    $region60: #{tpu_custom_call.1} parent=1 // pred_region
      %139 = dma.done [#allocation6], 32
    $region61: #{tpu_custom_call.1} parent=1 // pred_fallthru
      _
    // Predicated region
    $region62: #{tpu_custom_call.1} parent=1 // pred_check
      _
    $region63: #{tpu_custom_call.1} parent=1 // pred_check_branch
      %141 = sbr.rel (0) target = $region65
    $region64: #{tpu_custom_call.1} parent=1 // pred_region
      %142 = dma.done [#allocation6], 32
    $region65: #{tpu_custom_call.1} parent=1 // pred_fallthru
      _
    // Predicated region
    $region66: #{tpu_custom_call.1} parent=1 // pred_check
      _
    $region67: #{tpu_custom_call.1} parent=1 // pred_check_branch
      %144 = sbr.rel (0) target = $region69
    $region68: #{tpu_custom_call.1} parent=1 // pred_region
      %145 = dma.done [#allocation9], 12288
    $region69: #{tpu_custom_call.1} parent=1 // pred_fallthru
      _
    // Predicated region
    $region70: #{tpu_custom_call.1} parent=1 // pred_check
      _
    $region71: #{tpu_custom_call.1} parent=1 // pred_check_branch
      %147 = sbr.rel (0) target = $region73
    $region72: #{tpu_custom_call.1} parent=1 // pred_region
      %148 = dma.done [#allocation9], 4096
    $region73: #{tpu_custom_call.1} parent=1 // pred_fallthru
      _
    // Predicated region
    $region74: #{tpu_custom_call.1} parent=1 // pred_check
      _
    $region75: #{tpu_custom_call.1} parent=1 // pred_check_branch
      %150 = sbr.rel (0) target = $region77
    $region76: #{tpu_custom_call.1} parent=1 // pred_region
      %151 = dma.done [#allocation12], 8192
    $region77: #{tpu_custom_call.1} parent=1 // pred_fallthru
      _
    // Predicated region
    $region78: #{tpu_custom_call.1} parent=1 // pred_check
      _
    $region79: #{tpu_custom_call.1} parent=1 // pred_check_branch
      %153 = sbr.rel (0) target = $region81
    $region80: #{tpu_custom_call.1} parent=1 // pred_region
      %154 = dma.done [#allocation12], 8192
    $region81: #{tpu_custom_call.1} parent=1 // pred_fallthru
      _
    // Predicated region
    $region82: #{tpu_custom_call.1} parent=1 // pred_check
      _
    $region83: #{tpu_custom_call.1} parent=1 // pred_check_branch
      %156 = sbr.rel (0) target = $region85
    $region84: #{tpu_custom_call.1} parent=1 // pred_region
      %157 = dma.done [#allocation15], 1152
    $region85: #{tpu_custom_call.1} parent=1 // pred_fallthru
      _
    // Predicated region
    $region86: #{tpu_custom_call.1} parent=1 // pred_check
      _
    $region87: #{tpu_custom_call.1} parent=1 // pred_check_branch
      %159 = sbr.rel (0) target = $region89
    $region88: #{tpu_custom_call.1} parent=1 // pred_region
      %160 = dma.done [#allocation15], 64
    $region89: #{tpu_custom_call.1} parent=1 // pred_fallthru
      _
    %v162 = vld [vmem:[%s12] ss:$8 sm:$0x3]
    %s163 = scalar_lea.vmem %s12, 1
    %v164 = vld [vmem:[%s163] ss:$8 sm:$0x3]
    %v165 = vld [vmem:[#allocation2] sm:$0xff]
    %v166 = vld [vmem:[#allocation2 + $0x8] sm:$0xff]
    %v167 = vld [vmem:[#allocation2 + $0x10] sm:$0xff]
    %v168 = vld [vmem:[#allocation2 + $0x18] sm:$0xff]
    %v169 = vadd.f32 %v165, %v166
    %170 = vadd.xlane.f32.xlu0 %v169
    %v171 = vpop.xlane.xlu0 %170
    %v172 = vadd.f32 %v167, %v168
    %173 = vadd.xlane.f32.xlu0 %v172
    %v174 = vpop.xlane.xlu0 %173
    %v175 = vrcp.pop 256.0
    %v176 = vmul.f32 %v171, %v175
    %v177 = vmul.f32 %v174, %v175
    %v178 = vmul.f32 %v165, %v165
    %v179 = vmul.f32 %v166, %v166
    %v180 = vmul.f32 %v167, %v167
    %v181 = vmul.f32 %v168, %v168
    %v182 = vadd.f32 %v178, %v179
    %183 = vadd.xlane.f32.xlu0 %v182
    %v184 = vpop.xlane.xlu0 %183
    %v185 = vadd.f32 %v180, %v181
    %186 = vadd.xlane.f32.xlu0 %v185
    %v187 = vpop.xlane.xlu0 %186
    %v188 = vmul.f32 %v184, %v175
    %v189 = vmul.f32 %v187, %v175
    %v190 = vmul.f32 %v176, %v176
    %v191 = vmul.f32 %v177, %v177
    %v192 = vsub.f32 %v188, %v190
    %v193 = vsub.f32 %v189, %v191
    %v194 = vsub.f32 %v165, %v176
    %v195 = vsub.f32 %v166, %v176
    %v196 = vsub.f32 %v167, %v177
    %v197 = vsub.f32 %v168, %v177
    %v198 = vadd.f32 %v192, 1e-12
    %v199 = vadd.f32 %v193, 1e-12
    %v200 = vrsqrt.pop %v198
    %v201 = vrsqrt.pop %v199
    %v202 = vmul.f32 %v194, %v200
    %v203 = vmul.f32 %v195, %v200
    %v204 = vmul.f32 %v196, %v201
    %v205 = vmul.f32 %v197, %v201
    %v207 = vlaneseq
    %v208 = vshrl.u32 %v207, 7
    %v209 = vsub.s32 0, %v208
    %v210 = vrot.slane %v162, %v209
    %v211 = vlaneseq
    %v212 = vshrl.u32 %v211, 7
    %v213 = vsub.s32 1, %v212
    %v214 = vrot.slane %v162, %v213
    %v217 = vmul.f32 %v202, %v210
    %v218 = vmul.f32 %v203, %v214
    %v219 = vmul.f32 %v204, %v210
    %v220 = vmul.f32 %v205, %v214
    %v222 = vlaneseq
    %v223 = vshrl.u32 %v222, 7
    %v224 = vsub.s32 0, %v223
    %v225 = vrot.slane %v164, %v224
    %v226 = vlaneseq
    %v227 = vshrl.u32 %v226, 7
    %v228 = vsub.s32 1, %v227
    %v229 = vrot.slane %v164, %v228
    %v232 = vadd.f32 %v217, %v225
    %v233 = vadd.f32 %v218, %v229
    %v234 = vadd.f32 %v219, %v225
    %v235 = vadd.f32 %v220, %v229
    %v236 = vld [vmem:[#allocation5] sm:$0x1]
    %v237 = vld [vmem:[#allocation5 + $0x1] sm:$0x1]
    %v238 = vsub.f32 1.0, %v236
    %v239 = vsub.f32 1.0, %v237
    %v240 = vmul.f32 %v238, -1e+09
    %v241 = vmul.f32 %v239, -1e+09
    %v242 = vld [vmem:[#allocation14] ss:$2 sm:$0x3f]
    %s243 = scalar_lea.vmem [#allocation14], 12
    %v244 = vld [vmem:[%s243] ss:$2 sm:$0x3f]
    %s245 = scalar_lea.vmem [#allocation14], 24
    %v246 = vld [vmem:[%s245] ss:$2 sm:$0x3]
    %s247 = scalar_lea.vmem [#allocation14], 28
    %v248 = vld [vmem:[%s247] ss:$2 sm:$0x3]
    %s249 = scalar_lea.vmem [#allocation14], 32
    %v250 = vld [vmem:[%s249] ss:$2 sm:$0x3]
    %s251 = scalar_lea.vmem [#allocation14], 36
    %v252 = vld [vmem:[%s251] ss:$2 sm:$0x3]
    %s253 = scalar_lea.vmem [#allocation14], 40
    %v254 = vld [vmem:[%s253] ss:$2 sm:$0xf]
    %s255 = scalar_lea.vmem [#allocation14], 48
    %v256 = vld [vmem:[%s255] ss:$2 sm:$0xf]
    %s257 = scalar_lea.vmem [#allocation14], 56
    %v258 = vld [vmem:[%s257] ss:$2 sm:$0x3]
    %s259 = scalar_lea.vmem [#allocation14], 60
    %v260 = vld [vmem:[%s259] ss:$2 sm:$0x3]
    %s261 = scalar_lea.vmem [#allocation14], 64
    %v262 = vld [vmem:[%s261] ss:$2 sm:$0x3]
    %s263 = scalar_lea.vmem [#allocation14], 68
    %v264 = vld [vmem:[%s263] ss:$2 sm:$0x3]
    %v265 = vpack.c.bf16 %v234, %v232
    %v266 = vpack.c.bf16 %v235, %v233
    %v267 = vld [vmem:[#allocation8] sm:$0xff]
    %v268 = vld [vmem:[#allocation8 + $0x8] sm:$0xff]
    %v269 = vld [vmem:[#allocation8 + $0x10] sm:$0xff]
    %v270 = vld [vmem:[#allocation8 + $0x18] sm:$0xff]
    %v271 = vld [vmem:[#allocation8 + $0x20] sm:$0xff]
    %v272 = vld [vmem:[#allocation8 + $0x28] sm:$0xff]
    %v273 = vld [vmem:[#allocation8 + $0x30] sm:$0xff]
    %v274 = vld [vmem:[#allocation8 + $0x38] sm:$0xff]
    %v275 = vld [vmem:[#allocation8 + $0x40] sm:$0xff]
    %v276 = vld [vmem:[#allocation8 + $0x48] sm:$0xff]
    %v277 = vld [vmem:[#allocation8 + $0x50] sm:$0xff]
    %v278 = vld [vmem:[#allocation8 + $0x58] sm:$0xff]
    %v279 = vld [vmem:[#allocation8 + $0x60] sm:$0xff]
    %v280 = vld [vmem:[#allocation8 + $0x68] sm:$0xff]
    %v281 = vld [vmem:[#allocation8 + $0x70] sm:$0xff]
    %v282 = vld [vmem:[#allocation8 + $0x78] sm:$0xff]
    %v283 = vld [vmem:[#allocation8 + $0x80] sm:$0xff]
    %v284 = vld [vmem:[#allocation8 + $0x88] sm:$0xff]
    %v285 = vld [vmem:[#allocation8 + $0x90] sm:$0xff]
    %v286 = vld [vmem:[#allocation8 + $0x98] sm:$0xff]
    %v287 = vld [vmem:[#allocation8 + $0xa0] sm:$0xff]
    %v288 = vld [vmem:[#allocation8 + $0xa8] sm:$0xff]
    %v289 = vld [vmem:[#allocation8 + $0xb0] sm:$0xff]
    %v290 = vld [vmem:[#allocation8 + $0xb8] sm:$0xff]
    %v291 = vld [vmem:[#allocation8 + $0xc0] sm:$0xff]
    %v292 = vld [vmem:[#allocation8 + $0xc8] sm:$0xff]
    %v293 = vld [vmem:[#allocation8 + $0xd0] sm:$0xff]
    %v294 = vld [vmem:[#allocation8 + $0xd8] sm:$0xff]
    %v295 = vld [vmem:[#allocation8 + $0xe0] sm:$0xff]
    %v296 = vld [vmem:[#allocation8 + $0xe8] sm:$0xff]
    %v297 = vld [vmem:[#allocation8 + $0xf0] sm:$0xff]
    %v298 = vld [vmem:[#allocation8 + $0xf8] sm:$0xff]
    %v299 = vld [vmem:[#allocation8 + $0x100] sm:$0xff]
    %v300 = vld [vmem:[#allocation8 + $0x108] sm:$0xff]
    %v301 = vld [vmem:[#allocation8 + $0x110] sm:$0xff]
    %v302 = vld [vmem:[#allocation8 + $0x118] sm:$0xff]
    %v303 = vld [vmem:[#allocation8 + $0x120] sm:$0xff]
    %v304 = vld [vmem:[#allocation8 + $0x128] sm:$0xff]
    %v305 = vld [vmem:[#allocation8 + $0x130] sm:$0xff]
    %v306 = vld [vmem:[#allocation8 + $0x138] sm:$0xff]
    %v307 = vld [vmem:[#allocation8 + $0x140] sm:$0xff]
    %v308 = vld [vmem:[#allocation8 + $0x148] sm:$0xff]
    %v309 = vld [vmem:[#allocation8 + $0x150] sm:$0xff]
    %v310 = vld [vmem:[#allocation8 + $0x158] sm:$0xff]
    %v311 = vld [vmem:[#allocation8 + $0x160] sm:$0xff]
    %v312 = vld [vmem:[#allocation8 + $0x168] sm:$0xff]
    %v313 = vld [vmem:[#allocation8 + $0x170] sm:$0xff]
    %v314 = vld [vmem:[#allocation8 + $0x178] sm:$0xff]
    %v315 = vunpack.c.l.s8.bf16 %v267
    %v316 = vunpack.c.l.s8.bf16 %v268
    %v317 = vunpack.c.l.s8.bf16 %v269
    %v318 = vunpack.c.l.s8.bf16 %v270
    %v319 = vunpack.c.l.s8.bf16 %v271
    %v320 = vunpack.c.l.s8.bf16 %v272
    %v321 = vunpack.c.h.s8.bf16 %v267
    %v322 = vunpack.c.h.s8.bf16 %v268
    %v323 = vunpack.c.h.s8.bf16 %v269
    %v324 = vunpack.c.h.s8.bf16 %v270
    %v325 = vunpack.c.h.s8.bf16 %v271
    %v326 = vunpack.c.h.s8.bf16 %v272
    %v327 = vunpack.c.l.s8.bf16 %v273
    %v328 = vunpack.c.l.s8.bf16 %v274
    %v329 = vunpack.c.l.s8.bf16 %v275
    %v330 = vunpack.c.l.s8.bf16 %v276
    %v331 = vunpack.c.l.s8.bf16 %v277
    %v332 = vunpack.c.l.s8.bf16 %v278
    %v333 = vunpack.c.h.s8.bf16 %v273
    %v334 = vunpack.c.h.s8.bf16 %v274
    %v335 = vunpack.c.h.s8.bf16 %v275
    %v336 = vunpack.c.h.s8.bf16 %v276
    %v337 = vunpack.c.h.s8.bf16 %v277
    %v338 = vunpack.c.h.s8.bf16 %v278
    %v339 = vunpack.c.l.s8.bf16 %v279
    %v340 = vunpack.c.l.s8.bf16 %v280
    %v341 = vunpack.c.l.s8.bf16 %v281
    %v342 = vunpack.c.l.s8.bf16 %v282
    %v343 = vunpack.c.l.s8.bf16 %v283
    %v344 = vunpack.c.l.s8.bf16 %v284
    %v345 = vunpack.c.h.s8.bf16 %v279
    %v346 = vunpack.c.h.s8.bf16 %v280
    %v347 = vunpack.c.h.s8.bf16 %v281
    %v348 = vunpack.c.h.s8.bf16 %v282
    %v349 = vunpack.c.h.s8.bf16 %v283
    %v350 = vunpack.c.h.s8.bf16 %v284
    %v351 = vunpack.c.l.s8.bf16 %v285
    %v352 = vunpack.c.l.s8.bf16 %v286
    %v353 = vunpack.c.l.s8.bf16 %v287
    %v354 = vunpack.c.l.s8.bf16 %v288
    %v355 = vunpack.c.l.s8.bf16 %v289
    %v356 = vunpack.c.l.s8.bf16 %v290
    %v357 = vunpack.c.h.s8.bf16 %v285
    %v358 = vunpack.c.h.s8.bf16 %v286
    %v359 = vunpack.c.h.s8.bf16 %v287
    %v360 = vunpack.c.h.s8.bf16 %v288
    %v361 = vunpack.c.h.s8.bf16 %v289
    %v362 = vunpack.c.h.s8.bf16 %v290
    %v363 = vunpack.c.l.s8.bf16 %v291
    %v364 = vunpack.c.l.s8.bf16 %v292
    %v365 = vunpack.c.l.s8.bf16 %v293
    %v366 = vunpack.c.l.s8.bf16 %v294
    %v367 = vunpack.c.l.s8.bf16 %v295
    %v368 = vunpack.c.l.s8.bf16 %v296
    %v369 = vunpack.c.h.s8.bf16 %v291
    %v370 = vunpack.c.h.s8.bf16 %v292
    %v371 = vunpack.c.h.s8.bf16 %v293
    %v372 = vunpack.c.h.s8.bf16 %v294
    %v373 = vunpack.c.h.s8.bf16 %v295
    %v374 = vunpack.c.h.s8.bf16 %v296
    %v375 = vunpack.c.l.s8.bf16 %v297
    %v376 = vunpack.c.l.s8.bf16 %v298
    %v377 = vunpack.c.l.s8.bf16 %v299
    %v378 = vunpack.c.l.s8.bf16 %v300
    %v379 = vunpack.c.l.s8.bf16 %v301
    %v380 = vunpack.c.l.s8.bf16 %v302
    %v381 = vunpack.c.h.s8.bf16 %v297
    %v382 = vunpack.c.h.s8.bf16 %v298
    %v383 = vunpack.c.h.s8.bf16 %v299
    %v384 = vunpack.c.h.s8.bf16 %v300
    %v385 = vunpack.c.h.s8.bf16 %v301
    %v386 = vunpack.c.h.s8.bf16 %v302
    %v387 = vunpack.c.l.s8.bf16 %v303
    %v388 = vunpack.c.l.s8.bf16 %v304
    %v389 = vunpack.c.l.s8.bf16 %v305
    %v390 = vunpack.c.l.s8.bf16 %v306
    %v391 = vunpack.c.l.s8.bf16 %v307
    %v392 = vunpack.c.l.s8.bf16 %v308
    %v393 = vunpack.c.h.s8.bf16 %v303
    %v394 = vunpack.c.h.s8.bf16 %v304
    %v395 = vunpack.c.h.s8.bf16 %v305
    %v396 = vunpack.c.h.s8.bf16 %v306
    %v397 = vunpack.c.h.s8.bf16 %v307
    %v398 = vunpack.c.h.s8.bf16 %v308
    %v399 = vunpack.c.l.s8.bf16 %v309
    %v400 = vunpack.c.l.s8.bf16 %v310
    %v401 = vunpack.c.l.s8.bf16 %v311
    %v402 = vunpack.c.l.s8.bf16 %v312
    %v403 = vunpack.c.l.s8.bf16 %v313
    %v404 = vunpack.c.l.s8.bf16 %v314
    %v405 = vunpack.c.h.s8.bf16 %v309
    %v406 = vunpack.c.h.s8.bf16 %v310
    %v407 = vunpack.c.h.s8.bf16 %v311
    %v408 = vunpack.c.h.s8.bf16 %v312
    %v409 = vunpack.c.h.s8.bf16 %v313
    %v410 = vunpack.c.h.s8.bf16 %v314
    %411 = vmatprep.subr.bf16.mxu0 %v358
    %412 = vmatpush1.bf16.msra.mxu0 %v357
    %413 = vmatprep.subr.bf16.mxu0 %v352
    %414 = vmatpush1.bf16.msra.mxu0 %v351
    %415 = vmatprep.subr.bf16.mxu0 %v346
    %416 = vmatpush1.bf16.msra.mxu0 %v345
    %417 = vmatprep.subr.bf16.mxu0 %v340
    %418 = vmatpush1.bf16.msra.mxu0 %v339
    %419 = vmatprep.subr.bf16.mxu0 %v334
    %420 = vmatpush1.bf16.msra.mxu0 %v333
    %421 = vmatprep.subr.bf16.mxu0 %v328
    %422 = vmatpush1.bf16.msra.mxu0 %v327
    %423 = vmatprep.subr.bf16.mxu0 %v322
    %424 = vmatpush1.bf16.msra.mxu0 %v321
    %425 = vmatprep.subr.bf16.mxu0 %v316
    %426 = vmatpush1.bf16.msra.mxu0 %v315
    %427 = vmatprep.subr.bf16.mxu0 %v406
    %428 = vmatpush2.bf16.msra.mxu0 %v405
    %429 = vmatprep.subr.bf16.mxu0 %v400
    %430 = vmatpush2.bf16.msra.mxu0 %v399
    %431 = vmatprep.subr.bf16.mxu0 %v394
    %432 = vmatpush2.bf16.msra.mxu0 %v393
    %433 = vmatprep.subr.bf16.mxu0 %v388
    %434 = vmatpush2.bf16.msra.mxu0 %v387
    %435 = vmatprep.subr.bf16.mxu0 %v382
    %436 = vmatpush2.bf16.msra.mxu0 %v381
    %437 = vmatprep.subr.bf16.mxu0 %v376
    %438 = vmatpush2.bf16.msra.mxu0 %v375
    %439 = vmatprep.subr.bf16.mxu0 %v370
    %440 = vmatpush2.bf16.msra.mxu0 %v369
    %441 = vmatprep.subr.bf16.mxu0 %v364
    %442 = vmatpush2.bf16.msra.mxu0 %v363
    %443 = vmatprep.mubr.bf16.mxu0 %v266
    %444 = vmatmul.mubr.bf16.gmra.mxu0 %v265
    %v445 = vpop.f32.mrf.mxu0
    %v446 = vadd.f32 0.0, %v445
    %v447 = vpop.f32.mrf.mxu0
    %v448 = vadd.f32 0.0, %v447
    %v449 = vpop.f32.mrf.mxu0
    %v450 = vadd.f32 0.0, %v449
    %v451 = vpop.f32.mrf.mxu0
    %v452 = vadd.f32 0.0, %v451
    %453 = vdwg.mxu0
    %454 = vmatprep.subr.bf16.mxu0 %v360
    %455 = vmatpush1.bf16.msra.mxu0 %v359
    %456 = vmatprep.subr.bf16.mxu0 %v354
    %457 = vmatpush1.bf16.msra.mxu0 %v353
    %458 = vmatprep.subr.bf16.mxu0 %v348
    %459 = vmatpush1.bf16.msra.mxu0 %v347
    %460 = vmatprep.subr.bf16.mxu0 %v342
    %461 = vmatpush1.bf16.msra.mxu0 %v341
    %462 = vmatprep.subr.bf16.mxu0 %v336
    %463 = vmatpush1.bf16.msra.mxu0 %v335
    %464 = vmatprep.subr.bf16.mxu0 %v330
    %465 = vmatpush1.bf16.msra.mxu0 %v329
    %466 = vmatprep.subr.bf16.mxu0 %v324
    %467 = vmatpush1.bf16.msra.mxu0 %v323
    %468 = vmatprep.subr.bf16.mxu0 %v318
    %469 = vmatpush1.bf16.msra.mxu0 %v317
    %470 = vmatprep.subr.bf16.mxu0 %v408
    %471 = vmatpush2.bf16.msra.mxu0 %v407
    %472 = vmatprep.subr.bf16.mxu0 %v402
    %473 = vmatpush2.bf16.msra.mxu0 %v401
    %474 = vmatprep.subr.bf16.mxu0 %v396
    %475 = vmatpush2.bf16.msra.mxu0 %v395
    %476 = vmatprep.subr.bf16.mxu0 %v390
    %477 = vmatpush2.bf16.msra.mxu0 %v389
    %478 = vmatprep.subr.bf16.mxu0 %v384
    %479 = vmatpush2.bf16.msra.mxu0 %v383
    %480 = vmatprep.subr.bf16.mxu0 %v378
    %481 = vmatpush2.bf16.msra.mxu0 %v377
    %482 = vmatprep.subr.bf16.mxu0 %v372
    %483 = vmatpush2.bf16.msra.mxu0 %v371
    %484 = vmatprep.subr.bf16.mxu0 %v366
    %485 = vmatpush2.bf16.msra.mxu0 %v365
    %486 = vmatprep.mubr.bf16.mxu0 %v266
    %487 = vmatmul.mubr.bf16.gmra.mxu0 %v265
    %v488 = vpop.f32.mrf.mxu0
    %v489 = vadd.f32 0.0, %v488
    %v490 = vpop.f32.mrf.mxu0
    %v491 = vadd.f32 0.0, %v490
    %v492 = vpop.f32.mrf.mxu0
    %v493 = vadd.f32 0.0, %v492
    %v494 = vpop.f32.mrf.mxu0
    %v495 = vadd.f32 0.0, %v494
    %496 = vdwg.mxu0
    %497 = vmatprep.subr.bf16.mxu0 %v362
    %498 = vmatpush1.bf16.msra.mxu0 %v361
    %499 = vmatprep.subr.bf16.mxu0 %v356
    %500 = vmatpush1.bf16.msra.mxu0 %v355
    %501 = vmatprep.subr.bf16.mxu0 %v350
    %502 = vmatpush1.bf16.msra.mxu0 %v349
    %503 = vmatprep.subr.bf16.mxu0 %v344
    %504 = vmatpush1.bf16.msra.mxu0 %v343
    %505 = vmatprep.subr.bf16.mxu0 %v338
    %506 = vmatpush1.bf16.msra.mxu0 %v337
    %507 = vmatprep.subr.bf16.mxu0 %v332
    %508 = vmatpush1.bf16.msra.mxu0 %v331
    %509 = vmatprep.subr.bf16.mxu0 %v326
    %510 = vmatpush1.bf16.msra.mxu0 %v325
    %511 = vmatprep.subr.bf16.mxu0 %v320
    %512 = vmatpush1.bf16.msra.mxu0 %v319
    %513 = vmatprep.subr.bf16.mxu0 %v410
    %514 = vmatpush2.bf16.msra.mxu0 %v409
    %515 = vmatprep.subr.bf16.mxu0 %v404
    %516 = vmatpush2.bf16.msra.mxu0 %v403
    %517 = vmatprep.subr.bf16.mxu0 %v398
    %518 = vmatpush2.bf16.msra.mxu0 %v397
    %519 = vmatprep.subr.bf16.mxu0 %v392
    %520 = vmatpush2.bf16.msra.mxu0 %v391
    %521 = vmatprep.subr.bf16.mxu0 %v386
    %522 = vmatpush2.bf16.msra.mxu0 %v385
    %523 = vmatprep.subr.bf16.mxu0 %v380
    %524 = vmatpush2.bf16.msra.mxu0 %v379
    %525 = vmatprep.subr.bf16.mxu0 %v374
    %526 = vmatpush2.bf16.msra.mxu0 %v373
    %527 = vmatprep.subr.bf16.mxu0 %v368
    %528 = vmatpush2.bf16.msra.mxu0 %v367
    %529 = vmatprep.mubr.bf16.mxu0 %v266
    %530 = vmatmul.mubr.bf16.gmra.mxu0 %v265
    %v531 = vpop.f32.mrf.mxu0
    %v532 = vadd.f32 0.0, %v531
    %v533 = vpop.f32.mrf.mxu0
    %v534 = vadd.f32 0.0, %v533
    %v535 = vpop.f32.mrf.mxu0
    %v536 = vadd.f32 0.0, %v535
    %v537 = vpop.f32.mrf.mxu0
    %v538 = vadd.f32 0.0, %v537
    %539 = vdwg.mxu0
    %v541 = vlaneseq
    %v542 = vshrl.u32 %v541, 7
    %v543 = vsub.s32 0, %v542
    %v544 = vrot.slane %v244, %v543
    %v545 = vlaneseq
    %v546 = vshrl.u32 %v545, 7
    %v547 = vsub.s32 1, %v546
    %v548 = vrot.slane %v244, %v547
    %v549 = vlaneseq
    %v550 = vshrl.u32 %v549, 7
    %v551 = vsub.s32 2, %v550
    %v552 = vrot.slane %v244, %v551
    %v553 = vlaneseq
    %v554 = vshrl.u32 %v553, 7
    %v555 = vsub.s32 3, %v554
    %v556 = vrot.slane %v244, %v555
    %v557 = vlaneseq
    %v558 = vshrl.u32 %v557, 7
    %v559 = vsub.s32 4, %v558
    %v560 = vrot.slane %v244, %v559
    %v561 = vlaneseq
    %v562 = vshrl.u32 %v561, 7
    %v563 = vsub.s32 5, %v562
    %v564 = vrot.slane %v244, %v563
    %v571 = vmul.f32 %v446, %v544
    %v572 = vmul.f32 %v448, %v548
    %v573 = vmul.f32 %v489, %v552
    %v574 = vmul.f32 %v491, %v556
    %v575 = vmul.f32 %v532, %v560
    %v576 = vmul.f32 %v534, %v564
    %v577 = vmul.f32 %v450, %v544
    %v578 = vmul.f32 %v452, %v548
    %v579 = vmul.f32 %v493, %v552
    %v580 = vmul.f32 %v495, %v556
    %v581 = vmul.f32 %v536, %v560
    %v582 = vmul.f32 %v538, %v564
    %v584 = vlaneseq
    %v585 = vshrl.u32 %v584, 7
    %v586 = vsub.s32 0, %v585
    %v587 = vrot.slane %v242, %v586
    %v588 = vlaneseq
    %v589 = vshrl.u32 %v588, 7
    %v590 = vsub.s32 1, %v589
    %v591 = vrot.slane %v242, %v590
    %v592 = vlaneseq
    %v593 = vshrl.u32 %v592, 7
    %v594 = vsub.s32 2, %v593
    %v595 = vrot.slane %v242, %v594
    %v596 = vlaneseq
    %v597 = vshrl.u32 %v596, 7
    %v598 = vsub.s32 3, %v597
    %v599 = vrot.slane %v242, %v598
    %v600 = vlaneseq
    %v601 = vshrl.u32 %v600, 7
    %v602 = vsub.s32 4, %v601
    %v603 = vrot.slane %v242, %v602
    %v604 = vlaneseq
    %v605 = vshrl.u32 %v604, 7
    %v606 = vsub.s32 5, %v605
    %v607 = vrot.slane %v242, %v606
    %v614 = vadd.f32 %v571, %v587
    %v615 = vadd.f32 %v572, %v591
    %v616 = vadd.f32 %v573, %v595
    %v617 = vadd.f32 %v574, %v599
    %v618 = vadd.f32 %v575, %v603
    %v619 = vadd.f32 %v576, %v607
    %v620 = vadd.f32 %v577, %v587
    %v621 = vadd.f32 %v578, %v591
    %v622 = vadd.f32 %v579, %v595
    %v623 = vadd.f32 %v580, %v599
    %v624 = vadd.f32 %v581, %v603
    %v625 = vadd.f32 %v582, %v607
    %v628 = vlaneseq
    %v629 = vshrl.u32 %v628, 7
    %v630 = vsub.s32 0, %v629
    %v631 = vrot.slane %v240, %v630
    %v632 = vlaneseq
    %v633 = vshrl.u32 %v632, 7
    %v634 = vsub.s32 0, %v633
    %v635 = vrot.slane %v241, %v634
    %638 = vmatprep.subr.mxu0 0.0
    %639 = vmatpush1.xpose.msra.mxu0 0.0
    %640 = vmatprep.subr.mxu0 0.0
    %641 = vmatpush1.xpose.msra.mxu0 0.0
    %642 = vmatprep.subr.mxu0 0.0
    %643 = vmatpush1.xpose.msra.mxu0 0.0
    %644 = vmatprep.subr.mxu0 0.0
    %645 = vmatpush1.xpose.msra.mxu0 0.0
    %646 = vmatprep.subr.mxu0 0.0
    %647 = vmatpush1.xpose.msra.mxu0 0.0
    %648 = vmatprep.subr.mxu0 0.0
    %649 = vmatpush1.xpose.msra.mxu0 0.0
    %650 = vmatprep.subr.mxu0 0.0
    %651 = vmatpush1.xpose.msra.mxu0 0.0
    %652 = vmatprep.subr.mxu0 0.0
    %653 = vmatpush1.xpose.msra.mxu0 0.0
    %654 = vmatprep.subr.mxu0 0.0
    %655 = vmatpush1.xpose.msra.mxu0 0.0
    %656 = vmatprep.subr.mxu0 0.0
    %657 = vmatpush1.xpose.msra.mxu0 0.0
    %658 = vmatprep.subr.mxu0 0.0
    %659 = vmatpush1.xpose.msra.mxu0 0.0
    %660 = vmatprep.subr.mxu0 0.0
    %661 = vmatpush1.xpose.msra.mxu0 0.0
    %662 = vmatprep.subr.mxu0 0.0
    %663 = vmatpush1.xpose.msra.mxu0 0.0
    %664 = vmatprep.subr.mxu0 0.0
    %665 = vmatpush1.xpose.msra.mxu0 0.0
    %666 = vmatprep.subr.mxu0 0.0
    %667 = vmatpush1.xpose.msra.mxu0 0.0
    %668 = vmatprep.subr.mxu0 0.0
    %669 = vmatpush1.xpose.msra.mxu0 %v616
    %670 = vmatprep.subr.mxu0 0.0
    %671 = vmatpush2.xpose.msra.mxu0 0.0
    %672 = vmatprep.subr.mxu0 0.0
    %673 = vmatpush2.xpose.msra.mxu0 0.0
    %674 = vmatprep.subr.mxu0 0.0
    %675 = vmatpush2.xpose.msra.mxu0 0.0
    %676 = vmatprep.subr.mxu0 0.0
    %677 = vmatpush2.xpose.msra.mxu0 0.0
    %678 = vmatprep.subr.mxu0 0.0
    %679 = vmatpush2.xpose.msra.mxu0 0.0
    %680 = vmatprep.subr.mxu0 0.0
    %681 = vmatpush2.xpose.msra.mxu0 0.0
    %682 = vmatprep.subr.mxu0 0.0
    %683 = vmatpush2.xpose.msra.mxu0 0.0
    %684 = vmatprep.subr.mxu0 0.0
    %685 = vmatpush2.xpose.msra.mxu0 0.0
    %686 = vmatprep.subr.mxu0 0.0
    %687 = vmatpush2.xpose.msra.mxu0 0.0
    %688 = vmatprep.subr.mxu0 0.0
    %689 = vmatpush2.xpose.msra.mxu0 0.0
    %690 = vmatprep.subr.mxu0 0.0
    %691 = vmatpush2.xpose.msra.mxu0 0.0
    %692 = vmatprep.subr.mxu0 0.0
    %693 = vmatpush2.xpose.msra.mxu0 0.0
    %694 = vmatprep.subr.mxu0 0.0
    %695 = vmatpush2.xpose.msra.mxu0 0.0
    %696 = vmatprep.subr.mxu0 0.0
    %697 = vmatpush2.xpose.msra.mxu0 0.0
    %698 = vmatprep.subr.mxu0 0.0
    %699 = vmatpush2.xpose.msra.mxu0 0.0
    %700 = vmatprep.subr.mxu0 0.0
    %701 = vmatpush2.xpose.msra.mxu0 0.0
    %702 = vmatprep.mubr.f32.mxu0 0.0
    %703 = vmatmul.mubr.f32.gmra.mxu0 %v614
    %v704 = vpop.f32.mrf.mxu0
    %v705 = vadd.f32 %v631, %v704
    %v706 = vpop.f32.mrf.mxu0
    %707 = vdwg.mxu0
    %708 = vmatprep.subr.mxu0 0.0
    %709 = vmatpush1.xpose.msra.mxu0 0.0
    %710 = vmatprep.subr.mxu0 0.0
    %711 = vmatpush1.xpose.msra.mxu0 0.0
    %712 = vmatprep.subr.mxu0 0.0
    %713 = vmatpush1.xpose.msra.mxu0 0.0
    %714 = vmatprep.subr.mxu0 0.0
    %715 = vmatpush1.xpose.msra.mxu0 0.0
    %716 = vmatprep.subr.mxu0 0.0
    %717 = vmatpush1.xpose.msra.mxu0 0.0
    %718 = vmatprep.subr.mxu0 0.0
    %719 = vmatpush1.xpose.msra.mxu0 0.0
    %720 = vmatprep.subr.mxu0 0.0
    %721 = vmatpush1.xpose.msra.mxu0 0.0
    %722 = vmatprep.subr.mxu0 0.0
    %723 = vmatpush1.xpose.msra.mxu0 0.0
    %724 = vmatprep.subr.mxu0 0.0
    %725 = vmatpush1.xpose.msra.mxu0 0.0
    %726 = vmatprep.subr.mxu0 0.0
    %727 = vmatpush1.xpose.msra.mxu0 0.0
    %728 = vmatprep.subr.mxu0 0.0
    %729 = vmatpush1.xpose.msra.mxu0 0.0
    %730 = vmatprep.subr.mxu0 0.0
    %731 = vmatpush1.xpose.msra.mxu0 0.0
    %732 = vmatprep.subr.mxu0 0.0
    %733 = vmatpush1.xpose.msra.mxu0 0.0
    %734 = vmatprep.subr.mxu0 0.0
    %735 = vmatpush1.xpose.msra.mxu0 0.0
    %736 = vmatprep.subr.mxu0 0.0
    %737 = vmatpush1.xpose.msra.mxu0 0.0
    %738 = vmatprep.subr.mxu0 0.0
    %739 = vmatpush1.xpose.msra.mxu0 %v622
    %740 = vmatprep.subr.mxu0 0.0
    %741 = vmatpush2.xpose.msra.mxu0 0.0
    %742 = vmatprep.subr.mxu0 0.0
    %743 = vmatpush2.xpose.msra.mxu0 0.0
    %744 = vmatprep.subr.mxu0 0.0
    %745 = vmatpush2.xpose.msra.mxu0 0.0
    %746 = vmatprep.subr.mxu0 0.0
    %747 = vmatpush2.xpose.msra.mxu0 0.0
    %748 = vmatprep.subr.mxu0 0.0
    %749 = vmatpush2.xpose.msra.mxu0 0.0
    %750 = vmatprep.subr.mxu0 0.0
    %751 = vmatpush2.xpose.msra.mxu0 0.0
    %752 = vmatprep.subr.mxu0 0.0
    %753 = vmatpush2.xpose.msra.mxu0 0.0
    %754 = vmatprep.subr.mxu0 0.0
    %755 = vmatpush2.xpose.msra.mxu0 0.0
    %756 = vmatprep.subr.mxu0 0.0
    %757 = vmatpush2.xpose.msra.mxu0 0.0
    %758 = vmatprep.subr.mxu0 0.0
    %759 = vmatpush2.xpose.msra.mxu0 0.0
    %760 = vmatprep.subr.mxu0 0.0
    %761 = vmatpush2.xpose.msra.mxu0 0.0
    %762 = vmatprep.subr.mxu0 0.0
    %763 = vmatpush2.xpose.msra.mxu0 0.0
    %764 = vmatprep.subr.mxu0 0.0
    %765 = vmatpush2.xpose.msra.mxu0 0.0
    %766 = vmatprep.subr.mxu0 0.0
    %767 = vmatpush2.xpose.msra.mxu0 0.0
    %768 = vmatprep.subr.mxu0 0.0
    %769 = vmatpush2.xpose.msra.mxu0 0.0
    %770 = vmatprep.subr.mxu0 0.0
    %771 = vmatpush2.xpose.msra.mxu0 0.0
    %772 = vmatprep.mubr.f32.mxu0 0.0
    %773 = vmatmul.mubr.f32.gmra.mxu0 %v620
    %v774 = vpop.f32.mrf.mxu0
    %v775 = vadd.f32 %v635, %v774
    %v776 = vpop.f32.mrf.mxu0
    %777 = vdwg.mxu0
    %vm778 = vcmask 64512
    %v779 = vsel %vm778, %v705, -inf
    %780 = vmax.xlane.f32.xlu0 %v779
    %v781 = vpop.xlane.xlu0 %780
    %v782 = vsel %vm778, %v775, -inf
    %783 = vmax.xlane.f32.xlu0 %v782
    %v784 = vpop.xlane.xlu0 %783
    %v785 = vsub.f32 %v705, %v781
    %v786 = vsub.f32 %v775, %v784
    %v787 = vmul.f32 %v785, 1.442695
    %v788 = vpow.pop %v787
    %v789 = vmul.f32 %v786, 1.442695
    %v790 = vpow.pop %v789
    %v791 = vsel %vm778, %v788, 0.0
    %792 = vadd.xlane.f32.xlu0 %v791
    %v793 = vpop.xlane.xlu0 %792
    %v794 = vsel %vm778, %v790, 0.0
    %795 = vadd.xlane.f32.xlu0 %v794
    %v796 = vpop.xlane.xlu0 %795
    %v797 = vrcp.pop %v793
    %v798 = vrcp.pop %v796
    %v799 = vmul.f32 %v788, %v797
    %v800 = vmul.f32 %v790, %v798
    %v802 = vsel %vm778, %v799, 0
    %804 = vmatprep.subr.mxu0 0.0
    %805 = vmatpush1.msra.mxu0 0.0
    %806 = vmatprep.subr.mxu0 0.0
    %807 = vmatpush1.msra.mxu0 0.0
    %808 = vmatprep.subr.mxu0 0.0
    %809 = vmatpush1.msra.mxu0 0.0
    %810 = vmatprep.subr.mxu0 0.0
    %811 = vmatpush1.msra.mxu0 0.0
    %812 = vmatprep.subr.mxu0 0.0
    %813 = vmatpush1.msra.mxu0 0.0
    %814 = vmatprep.subr.mxu0 0.0
    %815 = vmatpush1.msra.mxu0 0.0
    %816 = vmatprep.subr.mxu0 0.0
    %817 = vmatpush1.msra.mxu0 0.0
    %818 = vmatprep.subr.mxu0 0.0
    %819 = vmatpush1.msra.mxu0 0.0
    %820 = vmatprep.subr.mxu0 0.0
    %821 = vmatpush1.msra.mxu0 0.0
    %822 = vmatprep.subr.mxu0 0.0
    %823 = vmatpush1.msra.mxu0 0.0
    %824 = vmatprep.subr.mxu0 0.0
    %825 = vmatpush1.msra.mxu0 0.0
    %826 = vmatprep.subr.mxu0 0.0
    %827 = vmatpush1.msra.mxu0 0.0
    %828 = vmatprep.subr.mxu0 0.0
    %829 = vmatpush1.msra.mxu0 0.0
    %830 = vmatprep.subr.mxu0 0.0
    %831 = vmatpush1.msra.mxu0 0.0
    %832 = vmatprep.subr.mxu0 0.0
    %833 = vmatpush1.msra.mxu0 0.0
    %834 = vmatprep.subr.mxu0 0.0
    %835 = vmatpush1.msra.mxu0 %v618
    %836 = vmatprep.subr.mxu0 0.0
    %837 = vmatpush2.msra.mxu0 0.0
    %838 = vmatprep.subr.mxu0 0.0
    %839 = vmatpush2.msra.mxu0 0.0
    %840 = vmatprep.subr.mxu0 0.0
    %841 = vmatpush2.msra.mxu0 0.0
    %842 = vmatprep.subr.mxu0 0.0
    %843 = vmatpush2.msra.mxu0 0.0
    %844 = vmatprep.subr.mxu0 0.0
    %845 = vmatpush2.msra.mxu0 0.0
    %846 = vmatprep.subr.mxu0 0.0
    %847 = vmatpush2.msra.mxu0 0.0
    %848 = vmatprep.subr.mxu0 0.0
    %849 = vmatpush2.msra.mxu0 0.0
    %850 = vmatprep.subr.mxu0 0.0
    %851 = vmatpush2.msra.mxu0 0.0
    %852 = vmatprep.subr.mxu0 0.0
    %853 = vmatpush2.msra.mxu0 0.0
    %854 = vmatprep.subr.mxu0 0.0
    %855 = vmatpush2.msra.mxu0 0.0
    %856 = vmatprep.subr.mxu0 0.0
    %857 = vmatpush2.msra.mxu0 0.0
    %858 = vmatprep.subr.mxu0 0.0
    %859 = vmatpush2.msra.mxu0 0.0
    %860 = vmatprep.subr.mxu0 0.0
    %861 = vmatpush2.msra.mxu0 0.0
    %862 = vmatprep.subr.mxu0 0.0
    %863 = vmatpush2.msra.mxu0 0.0
    %864 = vmatprep.subr.mxu0 0.0
    %865 = vmatpush2.msra.mxu0 0.0
    %866 = vmatprep.subr.mxu0 0.0
    %867 = vmatpush2.msra.mxu0 0.0
    %868 = vmatprep.mubr.f32.mxu0 0.0
    %869 = vmatmul.mubr.f32.gmra.mxu0 %v802
    %v870 = vpop.f32.mrf.mxu0
    %v871 = vadd.f32 0.0, %v870
    %v872 = vpop.f32.mrf.mxu0
    %873 = vdwg.mxu0
    %v875 = vsel %vm778, %v800, 0
    %877 = vmatprep.subr.mxu0 0.0
    %878 = vmatpush1.msra.mxu0 0.0
    %879 = vmatprep.subr.mxu0 0.0
    %880 = vmatpush1.msra.mxu0 0.0
    %881 = vmatprep.subr.mxu0 0.0
    %882 = vmatpush1.msra.mxu0 0.0
    %883 = vmatprep.subr.mxu0 0.0
    %884 = vmatpush1.msra.mxu0 0.0
    %885 = vmatprep.subr.mxu0 0.0
    %886 = vmatpush1.msra.mxu0 0.0
    %887 = vmatprep.subr.mxu0 0.0
    %888 = vmatpush1.msra.mxu0 0.0
    %889 = vmatprep.subr.mxu0 0.0
    %890 = vmatpush1.msra.mxu0 0.0
    %891 = vmatprep.subr.mxu0 0.0
    %892 = vmatpush1.msra.mxu0 0.0
    %893 = vmatprep.subr.mxu0 0.0
    %894 = vmatpush1.msra.mxu0 0.0
    %895 = vmatprep.subr.mxu0 0.0
    %896 = vmatpush1.msra.mxu0 0.0
    %897 = vmatprep.subr.mxu0 0.0
    %898 = vmatpush1.msra.mxu0 0.0
    %899 = vmatprep.subr.mxu0 0.0
    %900 = vmatpush1.msra.mxu0 0.0
    %901 = vmatprep.subr.mxu0 0.0
    %902 = vmatpush1.msra.mxu0 0.0
    %903 = vmatprep.subr.mxu0 0.0
    %904 = vmatpush1.msra.mxu0 0.0
    %905 = vmatprep.subr.mxu0 0.0
    %906 = vmatpush1.msra.mxu0 0.0
    %907 = vmatprep.subr.mxu0 0.0
    %908 = vmatpush1.msra.mxu0 %v624
    %909 = vmatprep.subr.mxu0 0.0
    %910 = vmatpush2.msra.mxu0 0.0
    %911 = vmatprep.subr.mxu0 0.0
    %912 = vmatpush2.msra.mxu0 0.0
    %913 = vmatprep.subr.mxu0 0.0
    %914 = vmatpush2.msra.mxu0 0.0
    %915 = vmatprep.subr.mxu0 0.0
    %916 = vmatpush2.msra.mxu0 0.0
    %917 = vmatprep.subr.mxu0 0.0
    %918 = vmatpush2.msra.mxu0 0.0
    %919 = vmatprep.subr.mxu0 0.0
    %920 = vmatpush2.msra.mxu0 0.0
    %921 = vmatprep.subr.mxu0 0.0
    %922 = vmatpush2.msra.mxu0 0.0
    %923 = vmatprep.subr.mxu0 0.0
    %924 = vmatpush2.msra.mxu0 0.0
    %925 = vmatprep.subr.mxu0 0.0
    %926 = vmatpush2.msra.mxu0 0.0
    %927 = vmatprep.subr.mxu0 0.0
    %928 = vmatpush2.msra.mxu0 0.0
    %929 = vmatprep.subr.mxu0 0.0
    %930 = vmatpush2.msra.mxu0 0.0
    %931 = vmatprep.subr.mxu0 0.0
    %932 = vmatpush2.msra.mxu0 0.0
    %933 = vmatprep.subr.mxu0 0.0
    %934 = vmatpush2.msra.mxu0 0.0
    %935 = vmatprep.subr.mxu0 0.0
    %936 = vmatpush2.msra.mxu0 0.0
    %937 = vmatprep.subr.mxu0 0.0
    %938 = vmatpush2.msra.mxu0 0.0
    %939 = vmatprep.subr.mxu0 0.0
    %940 = vmatpush2.msra.mxu0 0.0
    %941 = vmatprep.mubr.f32.mxu0 0.0
    %942 = vmatmul.mubr.f32.gmra.mxu0 %v875
    %v943 = vpop.f32.mrf.mxu0
    %v944 = vadd.f32 0.0, %v943
    %v945 = vpop.f32.mrf.mxu0
    %946 = vdwg.mxu0
    %947 = vmatprep.subr.mxu0 0.0
    %948 = vmatpush1.xpose.msra.mxu0 0.0
    %949 = vmatprep.subr.mxu0 0.0
    %950 = vmatpush1.xpose.msra.mxu0 0.0
    %951 = vmatprep.subr.mxu0 0.0
    %952 = vmatpush1.xpose.msra.mxu0 0.0
    %953 = vmatprep.subr.mxu0 0.0
    %954 = vmatpush1.xpose.msra.mxu0 0.0
    %955 = vmatprep.subr.mxu0 0.0
    %956 = vmatpush1.xpose.msra.mxu0 0.0
    %957 = vmatprep.subr.mxu0 0.0
    %958 = vmatpush1.xpose.msra.mxu0 0.0
    %959 = vmatprep.subr.mxu0 0.0
    %960 = vmatpush1.xpose.msra.mxu0 0.0
    %961 = vmatprep.subr.mxu0 0.0
    %962 = vmatpush1.xpose.msra.mxu0 0.0
    %963 = vmatprep.subr.mxu0 0.0
    %964 = vmatpush1.xpose.msra.mxu0 0.0
    %965 = vmatprep.subr.mxu0 0.0
    %966 = vmatpush1.xpose.msra.mxu0 0.0
    %967 = vmatprep.subr.mxu0 0.0
    %968 = vmatpush1.xpose.msra.mxu0 0.0
    %969 = vmatprep.subr.mxu0 0.0
    %970 = vmatpush1.xpose.msra.mxu0 0.0
    %971 = vmatprep.subr.mxu0 0.0
    %972 = vmatpush1.xpose.msra.mxu0 0.0
    %973 = vmatprep.subr.mxu0 0.0
    %974 = vmatpush1.xpose.msra.mxu0 0.0
    %975 = vmatprep.subr.mxu0 0.0
    %976 = vmatpush1.xpose.msra.mxu0 0.0
    %977 = vmatprep.subr.mxu0 0.0
    %978 = vmatpush1.xpose.msra.mxu0 %v617
    %979 = vmatprep.subr.mxu0 0.0
    %980 = vmatpush2.xpose.msra.mxu0 0.0
    %981 = vmatprep.subr.mxu0 0.0
    %982 = vmatpush2.xpose.msra.mxu0 0.0
    %983 = vmatprep.subr.mxu0 0.0
    %984 = vmatpush2.xpose.msra.mxu0 0.0
    %985 = vmatprep.subr.mxu0 0.0
    %986 = vmatpush2.xpose.msra.mxu0 0.0
    %987 = vmatprep.subr.mxu0 0.0
    %988 = vmatpush2.xpose.msra.mxu0 0.0
    %989 = vmatprep.subr.mxu0 0.0
    %990 = vmatpush2.xpose.msra.mxu0 0.0
    %991 = vmatprep.subr.mxu0 0.0
    %992 = vmatpush2.xpose.msra.mxu0 0.0
    %993 = vmatprep.subr.mxu0 0.0
    %994 = vmatpush2.xpose.msra.mxu0 0.0
    %995 = vmatprep.subr.mxu0 0.0
    %996 = vmatpush2.xpose.msra.mxu0 0.0
    %997 = vmatprep.subr.mxu0 0.0
    %998 = vmatpush2.xpose.msra.mxu0 0.0
    %999 = vmatprep.subr.mxu0 0.0
    %1000 = vmatpush2.xpose.msra.mxu0 0.0
    %1001 = vmatprep.subr.mxu0 0.0
    %1002 = vmatpush2.xpose.msra.mxu0 0.0
    %1003 = vmatprep.subr.mxu0 0.0
    %1004 = vmatpush2.xpose.msra.mxu0 0.0
    %1005 = vmatprep.subr.mxu0 0.0
    %1006 = vmatpush2.xpose.msra.mxu0 0.0
    %1007 = vmatprep.subr.mxu0 0.0
    %1008 = vmatpush2.xpose.msra.mxu0 0.0
    %1009 = vmatprep.subr.mxu0 0.0
    %1010 = vmatpush2.xpose.msra.mxu0 0.0
    %1011 = vmatprep.mubr.f32.mxu0 0.0
    %1012 = vmatmul.mubr.f32.gmra.mxu0 %v615
    %v1013 = vpop.f32.mrf.mxu0
    %v1014 = vadd.f32 %v631, %v1013
    %v1015 = vpop.f32.mrf.mxu0
    %1016 = vdwg.mxu0
    %1017 = vmatprep.subr.mxu0 0.0
    %1018 = vmatpush1.xpose.msra.mxu0 0.0
    %1019 = vmatprep.subr.mxu0 0.0
    %1020 = vmatpush1.xpose.msra.mxu0 0.0
    %1021 = vmatprep.subr.mxu0 0.0
    %1022 = vmatpush1.xpose.msra.mxu0 0.0
    %1023 = vmatprep.subr.mxu0 0.0
    %1024 = vmatpush1.xpose.msra.mxu0 0.0
    %1025 = vmatprep.subr.mxu0 0.0
    %1026 = vmatpush1.xpose.msra.mxu0 0.0
    %1027 = vmatprep.subr.mxu0 0.0
    %1028 = vmatpush1.xpose.msra.mxu0 0.0
    %1029 = vmatprep.subr.mxu0 0.0
    %1030 = vmatpush1.xpose.msra.mxu0 0.0
    %1031 = vmatprep.subr.mxu0 0.0
    %1032 = vmatpush1.xpose.msra.mxu0 0.0
    %1033 = vmatprep.subr.mxu0 0.0
    %1034 = vmatpush1.xpose.msra.mxu0 0.0
    %1035 = vmatprep.subr.mxu0 0.0
    %1036 = vmatpush1.xpose.msra.mxu0 0.0
    %1037 = vmatprep.subr.mxu0 0.0
    %1038 = vmatpush1.xpose.msra.mxu0 0.0
    %1039 = vmatprep.subr.mxu0 0.0
    %1040 = vmatpush1.xpose.msra.mxu0 0.0
    %1041 = vmatprep.subr.mxu0 0.0
    %1042 = vmatpush1.xpose.msra.mxu0 0.0
    %1043 = vmatprep.subr.mxu0 0.0
    %1044 = vmatpush1.xpose.msra.mxu0 0.0
    %1045 = vmatprep.subr.mxu0 0.0
    %1046 = vmatpush1.xpose.msra.mxu0 0.0
    %1047 = vmatprep.subr.mxu0 0.0
    %1048 = vmatpush1.xpose.msra.mxu0 %v623
    %1049 = vmatprep.subr.mxu0 0.0
    %1050 = vmatpush2.xpose.msra.mxu0 0.0
    %1051 = vmatprep.subr.mxu0 0.0
    %1052 = vmatpush2.xpose.msra.mxu0 0.0
    %1053 = vmatprep.subr.mxu0 0.0
    %1054 = vmatpush2.xpose.msra.mxu0 0.0
    %1055 = vmatprep.subr.mxu0 0.0
    %1056 = vmatpush2.xpose.msra.mxu0 0.0
    %1057 = vmatprep.subr.mxu0 0.0
    %1058 = vmatpush2.xpose.msra.mxu0 0.0
    %1059 = vmatprep.subr.mxu0 0.0
    %1060 = vmatpush2.xpose.msra.mxu0 0.0
    %1061 = vmatprep.subr.mxu0 0.0
    %1062 = vmatpush2.xpose.msra.mxu0 0.0
    %1063 = vmatprep.subr.mxu0 0.0
    %1064 = vmatpush2.xpose.msra.mxu0 0.0
    %1065 = vmatprep.subr.mxu0 0.0
    %1066 = vmatpush2.xpose.msra.mxu0 0.0
    %1067 = vmatprep.subr.mxu0 0.0
    %1068 = vmatpush2.xpose.msra.mxu0 0.0
    %1069 = vmatprep.subr.mxu0 0.0
    %1070 = vmatpush2.xpose.msra.mxu0 0.0
    %1071 = vmatprep.subr.mxu0 0.0
    %1072 = vmatpush2.xpose.msra.mxu0 0.0
    %1073 = vmatprep.subr.mxu0 0.0
    %1074 = vmatpush2.xpose.msra.mxu0 0.0
    %1075 = vmatprep.subr.mxu0 0.0
    %1076 = vmatpush2.xpose.msra.mxu0 0.0
    %1077 = vmatprep.subr.mxu0 0.0
    %1078 = vmatpush2.xpose.msra.mxu0 0.0
    %1079 = vmatprep.subr.mxu0 0.0
    %1080 = vmatpush2.xpose.msra.mxu0 0.0
    %1081 = vmatprep.mubr.f32.mxu0 0.0
    %1082 = vmatmul.mubr.f32.gmra.mxu0 %v621
    %v1083 = vpop.f32.mrf.mxu0
    %v1084 = vadd.f32 %v635, %v1083
    %v1085 = vpop.f32.mrf.mxu0
    %1086 = vdwg.mxu0
    %v1087 = vsel %vm778, %v1014, -inf
    %1088 = vmax.xlane.f32.xlu0 %v1087
    %v1089 = vpop.xlane.xlu0 %1088
    %v1090 = vsel %vm778, %v1084, -inf
    %1091 = vmax.xlane.f32.xlu0 %v1090
    %v1092 = vpop.xlane.xlu0 %1091
    %v1093 = vsub.f32 %v1014, %v1089
    %v1094 = vsub.f32 %v1084, %v1092
    %v1095 = vmul.f32 %v1093, 1.442695
    %v1096 = vpow.pop %v1095
    %v1097 = vmul.f32 %v1094, 1.442695
    %v1098 = vpow.pop %v1097
    %v1099 = vsel %vm778, %v1096, 0.0
    %1100 = vadd.xlane.f32.xlu0 %v1099
    %v1101 = vpop.xlane.xlu0 %1100
    %v1102 = vsel %vm778, %v1098, 0.0
    %1103 = vadd.xlane.f32.xlu0 %v1102
    %v1104 = vpop.xlane.xlu0 %1103
    %v1105 = vrcp.pop %v1101
    %v1106 = vrcp.pop %v1104
    %v1107 = vmul.f32 %v1096, %v1105
    %v1108 = vmul.f32 %v1098, %v1106
    %v1110 = vsel %vm778, %v1107, 0
    %1112 = vmatprep.subr.mxu0 0.0
    %1113 = vmatpush1.msra.mxu0 0.0
    %1114 = vmatprep.subr.mxu0 0.0
    %1115 = vmatpush1.msra.mxu0 0.0
    %1116 = vmatprep.subr.mxu0 0.0
    %1117 = vmatpush1.msra.mxu0 0.0
    %1118 = vmatprep.subr.mxu0 0.0
    %1119 = vmatpush1.msra.mxu0 0.0
    %1120 = vmatprep.subr.mxu0 0.0
    %1121 = vmatpush1.msra.mxu0 0.0
    %1122 = vmatprep.subr.mxu0 0.0
    %1123 = vmatpush1.msra.mxu0 0.0
    %1124 = vmatprep.subr.mxu0 0.0
    %1125 = vmatpush1.msra.mxu0 0.0
    %1126 = vmatprep.subr.mxu0 0.0
    %1127 = vmatpush1.msra.mxu0 0.0
    %1128 = vmatprep.subr.mxu0 0.0
    %1129 = vmatpush1.msra.mxu0 0.0
    %1130 = vmatprep.subr.mxu0 0.0
    %1131 = vmatpush1.msra.mxu0 0.0
    %1132 = vmatprep.subr.mxu0 0.0
    %1133 = vmatpush1.msra.mxu0 0.0
    %1134 = vmatprep.subr.mxu0 0.0
    %1135 = vmatpush1.msra.mxu0 0.0
    %1136 = vmatprep.subr.mxu0 0.0
    %1137 = vmatpush1.msra.mxu0 0.0
    %1138 = vmatprep.subr.mxu0 0.0
    %1139 = vmatpush1.msra.mxu0 0.0
    %1140 = vmatprep.subr.mxu0 0.0
    %1141 = vmatpush1.msra.mxu0 0.0
    %1142 = vmatprep.subr.mxu0 0.0
    %1143 = vmatpush1.msra.mxu0 %v619
    %1144 = vmatprep.subr.mxu0 0.0
    %1145 = vmatpush2.msra.mxu0 0.0
    %1146 = vmatprep.subr.mxu0 0.0
    %1147 = vmatpush2.msra.mxu0 0.0
    %1148 = vmatprep.subr.mxu0 0.0
    %1149 = vmatpush2.msra.mxu0 0.0
    %1150 = vmatprep.subr.mxu0 0.0
    %1151 = vmatpush2.msra.mxu0 0.0
    %1152 = vmatprep.subr.mxu0 0.0
    %1153 = vmatpush2.msra.mxu0 0.0
    %1154 = vmatprep.subr.mxu0 0.0
    %1155 = vmatpush2.msra.mxu0 0.0
    %1156 = vmatprep.subr.mxu0 0.0
    %1157 = vmatpush2.msra.mxu0 0.0
    %1158 = vmatprep.subr.mxu0 0.0
    %1159 = vmatpush2.msra.mxu0 0.0
    %1160 = vmatprep.subr.mxu0 0.0
    %1161 = vmatpush2.msra.mxu0 0.0
    %1162 = vmatprep.subr.mxu0 0.0
    %1163 = vmatpush2.msra.mxu0 0.0
    %1164 = vmatprep.subr.mxu0 0.0
    %1165 = vmatpush2.msra.mxu0 0.0
    %1166 = vmatprep.subr.mxu0 0.0
    %1167 = vmatpush2.msra.mxu0 0.0
    %1168 = vmatprep.subr.mxu0 0.0
    %1169 = vmatpush2.msra.mxu0 0.0
    %1170 = vmatprep.subr.mxu0 0.0
    %1171 = vmatpush2.msra.mxu0 0.0
    %1172 = vmatprep.subr.mxu0 0.0
    %1173 = vmatpush2.msra.mxu0 0.0
    %1174 = vmatprep.subr.mxu0 0.0
    %1175 = vmatpush2.msra.mxu0 0.0
    %1176 = vmatprep.mubr.f32.mxu0 0.0
    %1177 = vmatmul.mubr.f32.gmra.mxu0 %v1110
    %v1178 = vpop.f32.mrf.mxu0
    %v1179 = vadd.f32 0.0, %v1178
    %v1180 = vpop.f32.mrf.mxu0
    %1181 = vdwg.mxu0
    %v1183 = vsel %vm778, %v1108, 0
    %1185 = vmatprep.subr.mxu0 0.0
    %1186 = vmatpush1.msra.mxu0 0.0
    %1187 = vmatprep.subr.mxu0 0.0
    %1188 = vmatpush1.msra.mxu0 0.0
    %1189 = vmatprep.subr.mxu0 0.0
    %1190 = vmatpush1.msra.mxu0 0.0
    %1191 = vmatprep.subr.mxu0 0.0
    %1192 = vmatpush1.msra.mxu0 0.0
    %1193 = vmatprep.subr.mxu0 0.0
    %1194 = vmatpush1.msra.mxu0 0.0
    %1195 = vmatprep.subr.mxu0 0.0
    %1196 = vmatpush1.msra.mxu0 0.0
    %1197 = vmatprep.subr.mxu0 0.0
    %1198 = vmatpush1.msra.mxu0 0.0
    %1199 = vmatprep.subr.mxu0 0.0
    %1200 = vmatpush1.msra.mxu0 0.0
    %1201 = vmatprep.subr.mxu0 0.0
    %1202 = vmatpush1.msra.mxu0 0.0
    %1203 = vmatprep.subr.mxu0 0.0
    %1204 = vmatpush1.msra.mxu0 0.0
    %1205 = vmatprep.subr.mxu0 0.0
    %1206 = vmatpush1.msra.mxu0 0.0
    %1207 = vmatprep.subr.mxu0 0.0
    %1208 = vmatpush1.msra.mxu0 0.0
    %1209 = vmatprep.subr.mxu0 0.0
    %1210 = vmatpush1.msra.mxu0 0.0
    %1211 = vmatprep.subr.mxu0 0.0
    %1212 = vmatpush1.msra.mxu0 0.0
    %1213 = vmatprep.subr.mxu0 0.0
    %1214 = vmatpush1.msra.mxu0 0.0
    %1215 = vmatprep.subr.mxu0 0.0
    %1216 = vmatpush1.msra.mxu0 %v625
    %1217 = vmatprep.subr.mxu0 0.0
    %1218 = vmatpush2.msra.mxu0 0.0
    %1219 = vmatprep.subr.mxu0 0.0
    %1220 = vmatpush2.msra.mxu0 0.0
    %1221 = vmatprep.subr.mxu0 0.0
    %1222 = vmatpush2.msra.mxu0 0.0
    %1223 = vmatprep.subr.mxu0 0.0
    %1224 = vmatpush2.msra.mxu0 0.0
    %1225 = vmatprep.subr.mxu0 0.0
    %1226 = vmatpush2.msra.mxu0 0.0
    %1227 = vmatprep.subr.mxu0 0.0
    %1228 = vmatpush2.msra.mxu0 0.0
    %1229 = vmatprep.subr.mxu0 0.0
    %1230 = vmatpush2.msra.mxu0 0.0
    %1231 = vmatprep.subr.mxu0 0.0
    %1232 = vmatpush2.msra.mxu0 0.0
    %1233 = vmatprep.subr.mxu0 0.0
    %1234 = vmatpush2.msra.mxu0 0.0
    %1235 = vmatprep.subr.mxu0 0.0
    %1236 = vmatpush2.msra.mxu0 0.0
    %1237 = vmatprep.subr.mxu0 0.0
    %1238 = vmatpush2.msra.mxu0 0.0
    %1239 = vmatprep.subr.mxu0 0.0
    %1240 = vmatpush2.msra.mxu0 0.0
    %1241 = vmatprep.subr.mxu0 0.0
    %1242 = vmatpush2.msra.mxu0 0.0
    %1243 = vmatprep.subr.mxu0 0.0
    %1244 = vmatpush2.msra.mxu0 0.0
    %1245 = vmatprep.subr.mxu0 0.0
    %1246 = vmatpush2.msra.mxu0 0.0
    %1247 = vmatprep.subr.mxu0 0.0
    %1248 = vmatpush2.msra.mxu0 0.0
    %1249 = vmatprep.mubr.f32.mxu0 0.0
    %1250 = vmatmul.mubr.f32.gmra.mxu0 %v1183
    %v1251 = vpop.f32.mrf.mxu0
    %v1252 = vadd.f32 0.0, %v1251
    %v1253 = vpop.f32.mrf.mxu0
    %1254 = vdwg.mxu0
    %v1255 = vpack.c.bf16 %v944, %v871
    %v1256 = vpack.c.bf16 %v1252, %v1179
    %v1257 = vld [vmem:[#allocation10] sm:$0xff]
    %v1258 = vld [vmem:[#allocation10 + $0x8] sm:$0xff]
    %v1259 = vld [vmem:[#allocation10 + $0x10] sm:$0xff]
    %v1260 = vld [vmem:[#allocation10 + $0x18] sm:$0xff]
    %v1261 = vld [vmem:[#allocation10 + $0x20] sm:$0xff]
    %v1262 = vld [vmem:[#allocation10 + $0x28] sm:$0xff]
    %v1263 = vld [vmem:[#allocation10 + $0x30] sm:$0xff]
    %v1264 = vld [vmem:[#allocation10 + $0x38] sm:$0xff]
    %v1265 = vld [vmem:[#allocation10 + $0x40] sm:$0xff]
    %v1266 = vld [vmem:[#allocation10 + $0x48] sm:$0xff]
    %v1267 = vld [vmem:[#allocation10 + $0x50] sm:$0xff]
    %v1268 = vld [vmem:[#allocation10 + $0x58] sm:$0xff]
    %v1269 = vld [vmem:[#allocation10 + $0x60] sm:$0xff]
    %v1270 = vld [vmem:[#allocation10 + $0x68] sm:$0xff]
    %v1271 = vld [vmem:[#allocation10 + $0x70] sm:$0xff]
    %v1272 = vld [vmem:[#allocation10 + $0x78] sm:$0xff]
    %v1273 = vunpack.c.l.s8.bf16 %v1257
    %v1274 = vunpack.c.l.s8.bf16 %v1258
    %v1275 = vunpack.c.h.s8.bf16 %v1257
    %v1276 = vunpack.c.h.s8.bf16 %v1258
    %v1277 = vunpack.c.l.s8.bf16 %v1259
    %v1278 = vunpack.c.l.s8.bf16 %v1260
    %v1279 = vunpack.c.h.s8.bf16 %v1259
    %v1280 = vunpack.c.h.s8.bf16 %v1260
    %v1281 = vunpack.c.l.s8.bf16 %v1261
    %v1282 = vunpack.c.l.s8.bf16 %v1262
    %v1283 = vunpack.c.h.s8.bf16 %v1261
    %v1284 = vunpack.c.h.s8.bf16 %v1262
    %v1285 = vunpack.c.l.s8.bf16 %v1263
    %v1286 = vunpack.c.l.s8.bf16 %v1264
    %v1287 = vunpack.c.h.s8.bf16 %v1263
    %v1288 = vunpack.c.h.s8.bf16 %v1264
    %v1289 = vunpack.c.l.s8.bf16 %v1265
    %v1290 = vunpack.c.l.s8.bf16 %v1266
    %v1291 = vunpack.c.h.s8.bf16 %v1265
    %v1292 = vunpack.c.h.s8.bf16 %v1266
    %v1293 = vunpack.c.l.s8.bf16 %v1267
    %v1294 = vunpack.c.l.s8.bf16 %v1268
    %v1295 = vunpack.c.h.s8.bf16 %v1267
    %v1296 = vunpack.c.h.s8.bf16 %v1268
    %v1297 = vunpack.c.l.s8.bf16 %v1269
    %v1298 = vunpack.c.l.s8.bf16 %v1270
    %v1299 = vunpack.c.h.s8.bf16 %v1269
    %v1300 = vunpack.c.h.s8.bf16 %v1270
    %v1301 = vunpack.c.l.s8.bf16 %v1271
    %v1302 = vunpack.c.l.s8.bf16 %v1272
    %v1303 = vunpack.c.h.s8.bf16 %v1271
    %v1304 = vunpack.c.h.s8.bf16 %v1272
    %1305 = vmatprep.subr.bf16.mxu0 %v1288
    %1306 = vmatpush1.bf16.msra.mxu0 %v1287
    %1307 = vmatprep.subr.bf16.mxu0 %v1286
    %1308 = vmatpush1.bf16.msra.mxu0 %v1285
    %1309 = vmatprep.subr.bf16.mxu0 %v1284
    %1310 = vmatpush1.bf16.msra.mxu0 %v1283
    %1311 = vmatprep.subr.bf16.mxu0 %v1282
    %1312 = vmatpush1.bf16.msra.mxu0 %v1281
    %1313 = vmatprep.subr.bf16.mxu0 %v1280
    %1314 = vmatpush1.bf16.msra.mxu0 %v1279
    %1315 = vmatprep.subr.bf16.mxu0 %v1278
    %1316 = vmatpush1.bf16.msra.mxu0 %v1277
    %1317 = vmatprep.subr.bf16.mxu0 %v1276
    %1318 = vmatpush1.bf16.msra.mxu0 %v1275
    %1319 = vmatprep.subr.bf16.mxu0 %v1274
    %1320 = vmatpush1.bf16.msra.mxu0 %v1273
    %1321 = vmatprep.subr.bf16.mxu0 %v1304
    %1322 = vmatpush2.bf16.msra.mxu0 %v1303
    %1323 = vmatprep.subr.bf16.mxu0 %v1302
    %1324 = vmatpush2.bf16.msra.mxu0 %v1301
    %1325 = vmatprep.subr.bf16.mxu0 %v1300
    %1326 = vmatpush2.bf16.msra.mxu0 %v1299
    %1327 = vmatprep.subr.bf16.mxu0 %v1298
    %1328 = vmatpush2.bf16.msra.mxu0 %v1297
    %1329 = vmatprep.subr.bf16.mxu0 %v1296
    %1330 = vmatpush2.bf16.msra.mxu0 %v1295
    %1331 = vmatprep.subr.bf16.mxu0 %v1294
    %1332 = vmatpush2.bf16.msra.mxu0 %v1293
    %1333 = vmatprep.subr.bf16.mxu0 %v1292
    %1334 = vmatpush2.bf16.msra.mxu0 %v1291
    %1335 = vmatprep.subr.bf16.mxu0 %v1290
    %1336 = vmatpush2.bf16.msra.mxu0 %v1289
    %1337 = vmatprep.mubr.bf16.mxu0 %v1256
    %1338 = vmatmul.mubr.bf16.gmra.mxu0 %v1255
    %v1339 = vpop.f32.mrf.mxu0
    %v1340 = vadd.f32 0.0, %v1339
    %v1341 = vpop.f32.mrf.mxu0
    %v1342 = vadd.f32 0.0, %v1341
    %v1343 = vpop.f32.mrf.mxu0
    %v1344 = vadd.f32 0.0, %v1343
    %v1345 = vpop.f32.mrf.mxu0
    %v1346 = vadd.f32 0.0, %v1345
    %1347 = vdwg.mxu0
    %v1349 = vlaneseq
    %v1350 = vshrl.u32 %v1349, 7
    %v1351 = vsub.s32 0, %v1350
    %v1352 = vrot.slane %v248, %v1351
    %v1353 = vlaneseq
    %v1354 = vshrl.u32 %v1353, 7
    %v1355 = vsub.s32 1, %v1354
    %v1356 = vrot.slane %v248, %v1355
    %v1359 = vmul.f32 %v1340, %v1352
    %v1360 = vmul.f32 %v1342, %v1356
    %v1361 = vmul.f32 %v1344, %v1352
    %v1362 = vmul.f32 %v1346, %v1356
    %v1364 = vlaneseq
    %v1365 = vshrl.u32 %v1364, 7
    %v1366 = vsub.s32 0, %v1365
    %v1367 = vrot.slane %v246, %v1366
    %v1368 = vlaneseq
    %v1369 = vshrl.u32 %v1368, 7
    %v1370 = vsub.s32 1, %v1369
    %v1371 = vrot.slane %v246, %v1370
    %v1374 = vadd.f32 %v1359, %v1367
    %v1375 = vadd.f32 %v1360, %v1371
    %v1376 = vadd.f32 %v1361, %v1367
    %v1377 = vadd.f32 %v1362, %v1371
    %v1378 = vadd.f32 %v232, %v1374
    %v1379 = vadd.f32 %v233, %v1375
    %v1380 = vadd.f32 %v234, %v1376
    %v1381 = vadd.f32 %v235, %v1377
    %v1382 = vadd.f32 %v1378, %v1379
    %1383 = vadd.xlane.f32.xlu0 %v1382
    %v1384 = vpop.xlane.xlu0 %1383
    %v1385 = vadd.f32 %v1380, %v1381
    %1386 = vadd.xlane.f32.xlu0 %v1385
    %v1387 = vpop.xlane.xlu0 %1386
    %v1388 = vmul.f32 %v1384, %v175
    %v1389 = vmul.f32 %v1387, %v175
    %v1390 = vmul.f32 %v1378, %v1378
    %v1391 = vmul.f32 %v1379, %v1379
    %v1392 = vmul.f32 %v1380, %v1380
    %v1393 = vmul.f32 %v1381, %v1381
    %v1394 = vadd.f32 %v1390, %v1391
    %1395 = vadd.xlane.f32.xlu0 %v1394
    %v1396 = vpop.xlane.xlu0 %1395
    %v1397 = vadd.f32 %v1392, %v1393
    %1398 = vadd.xlane.f32.xlu0 %v1397
    %v1399 = vpop.xlane.xlu0 %1398
    %v1400 = vmul.f32 %v1396, %v175
    %v1401 = vmul.f32 %v1399, %v175
    %v1402 = vmul.f32 %v1388, %v1388
    %v1403 = vmul.f32 %v1389, %v1389
    %v1404 = vsub.f32 %v1400, %v1402
    %v1405 = vsub.f32 %v1401, %v1403
    %v1406 = vsub.f32 %v1378, %v1388
    %v1407 = vsub.f32 %v1379, %v1388
    %v1408 = vsub.f32 %v1380, %v1389
    %v1409 = vsub.f32 %v1381, %v1389
    %v1410 = vadd.f32 %v1404, 1e-12
    %v1411 = vadd.f32 %v1405, 1e-12
    %v1412 = vrsqrt.pop %v1410
    %v1413 = vrsqrt.pop %v1411
    %v1414 = vmul.f32 %v1406, %v1412
    %v1415 = vmul.f32 %v1407, %v1412
    %v1416 = vmul.f32 %v1408, %v1413
    %v1417 = vmul.f32 %v1409, %v1413
    %v1419 = vlaneseq
    %v1420 = vshrl.u32 %v1419, 7
    %v1421 = vsub.s32 0, %v1420
    %v1422 = vrot.slane %v250, %v1421
    %v1423 = vlaneseq
    %v1424 = vshrl.u32 %v1423, 7
    %v1425 = vsub.s32 1, %v1424
    %v1426 = vrot.slane %v250, %v1425
    %v1429 = vmul.f32 %v1414, %v1422
    %v1430 = vmul.f32 %v1415, %v1426
    %v1431 = vmul.f32 %v1416, %v1422
    %v1432 = vmul.f32 %v1417, %v1426
    %v1434 = vlaneseq
    %v1435 = vshrl.u32 %v1434, 7
    %v1436 = vsub.s32 0, %v1435
    %v1437 = vrot.slane %v252, %v1436
    %v1438 = vlaneseq
    %v1439 = vshrl.u32 %v1438, 7
    %v1440 = vsub.s32 1, %v1439
    %v1441 = vrot.slane %v252, %v1440
    %v1444 = vadd.f32 %v1429, %v1437
    %v1445 = vadd.f32 %v1430, %v1441
    %v1446 = vadd.f32 %v1431, %v1437
    %v1447 = vadd.f32 %v1432, %v1441
    %v1448 = vpack.c.bf16 %v1446, %v1444
    %v1449 = vpack.c.bf16 %v1447, %v1445
    %v1450 = vld [vmem:[#allocation11] sm:$0xff]
    %v1451 = vld [vmem:[#allocation11 + $0x8] sm:$0xff]
    %v1452 = vld [vmem:[#allocation11 + $0x10] sm:$0xff]
    %v1453 = vld [vmem:[#allocation11 + $0x18] sm:$0xff]
    %v1454 = vld [vmem:[#allocation11 + $0x20] sm:$0xff]
    %v1455 = vld [vmem:[#allocation11 + $0x28] sm:$0xff]
    %v1456 = vld [vmem:[#allocation11 + $0x30] sm:$0xff]
    %v1457 = vld [vmem:[#allocation11 + $0x38] sm:$0xff]
    %v1458 = vld [vmem:[#allocation11 + $0x40] sm:$0xff]
    %v1459 = vld [vmem:[#allocation11 + $0x48] sm:$0xff]
    %v1460 = vld [vmem:[#allocation11 + $0x50] sm:$0xff]
    %v1461 = vld [vmem:[#allocation11 + $0x58] sm:$0xff]
    %v1462 = vld [vmem:[#allocation11 + $0x60] sm:$0xff]
    %v1463 = vld [vmem:[#allocation11 + $0x68] sm:$0xff]
    %v1464 = vld [vmem:[#allocation11 + $0x70] sm:$0xff]
    %v1465 = vld [vmem:[#allocation11 + $0x78] sm:$0xff]
    %v1466 = vld [vmem:[#allocation11 + $0x80] sm:$0xff]
    %v1467 = vld [vmem:[#allocation11 + $0x88] sm:$0xff]
    %v1468 = vld [vmem:[#allocation11 + $0x90] sm:$0xff]
    %v1469 = vld [vmem:[#allocation11 + $0x98] sm:$0xff]
    %v1470 = vld [vmem:[#allocation11 + $0xa0] sm:$0xff]
    %v1471 = vld [vmem:[#allocation11 + $0xa8] sm:$0xff]
    %v1472 = vld [vmem:[#allocation11 + $0xb0] sm:$0xff]
    %v1473 = vld [vmem:[#allocation11 + $0xb8] sm:$0xff]
    %v1474 = vld [vmem:[#allocation11 + $0xc0] sm:$0xff]
    %v1475 = vld [vmem:[#allocation11 + $0xc8] sm:$0xff]
    %v1476 = vld [vmem:[#allocation11 + $0xd0] sm:$0xff]
    %v1477 = vld [vmem:[#allocation11 + $0xd8] sm:$0xff]
    %v1478 = vld [vmem:[#allocation11 + $0xe0] sm:$0xff]
    %v1479 = vld [vmem:[#allocation11 + $0xe8] sm:$0xff]
    %v1480 = vld [vmem:[#allocation11 + $0xf0] sm:$0xff]
    %v1481 = vld [vmem:[#allocation11 + $0xf8] sm:$0xff]
    %v1482 = vunpack.c.l.s8.bf16 %v1450
    %v1483 = vunpack.c.l.s8.bf16 %v1451
    %v1484 = vunpack.c.l.s8.bf16 %v1452
    %v1485 = vunpack.c.l.s8.bf16 %v1453
    %v1486 = vunpack.c.h.s8.bf16 %v1450
    %v1487 = vunpack.c.h.s8.bf16 %v1451
    %v1488 = vunpack.c.h.s8.bf16 %v1452
    %v1489 = vunpack.c.h.s8.bf16 %v1453
    %v1490 = vunpack.c.l.s8.bf16 %v1454
    %v1491 = vunpack.c.l.s8.bf16 %v1455
    %v1492 = vunpack.c.l.s8.bf16 %v1456
    %v1493 = vunpack.c.l.s8.bf16 %v1457
    %v1494 = vunpack.c.h.s8.bf16 %v1454
    %v1495 = vunpack.c.h.s8.bf16 %v1455
    %v1496 = vunpack.c.h.s8.bf16 %v1456
    %v1497 = vunpack.c.h.s8.bf16 %v1457
    %v1498 = vunpack.c.l.s8.bf16 %v1458
    %v1499 = vunpack.c.l.s8.bf16 %v1459
    %v1500 = vunpack.c.l.s8.bf16 %v1460
    %v1501 = vunpack.c.l.s8.bf16 %v1461
    %v1502 = vunpack.c.h.s8.bf16 %v1458
    %v1503 = vunpack.c.h.s8.bf16 %v1459
    %v1504 = vunpack.c.h.s8.bf16 %v1460
    %v1505 = vunpack.c.h.s8.bf16 %v1461
    %v1506 = vunpack.c.l.s8.bf16 %v1462
    %v1507 = vunpack.c.l.s8.bf16 %v1463
    %v1508 = vunpack.c.l.s8.bf16 %v1464
    %v1509 = vunpack.c.l.s8.bf16 %v1465
    %v1510 = vunpack.c.h.s8.bf16 %v1462
    %v1511 = vunpack.c.h.s8.bf16 %v1463
    %v1512 = vunpack.c.h.s8.bf16 %v1464
    %v1513 = vunpack.c.h.s8.bf16 %v1465
    %v1514 = vunpack.c.l.s8.bf16 %v1466
    %v1515 = vunpack.c.l.s8.bf16 %v1467
    %v1516 = vunpack.c.l.s8.bf16 %v1468
    %v1517 = vunpack.c.l.s8.bf16 %v1469
    %v1518 = vunpack.c.h.s8.bf16 %v1466
    %v1519 = vunpack.c.h.s8.bf16 %v1467
    %v1520 = vunpack.c.h.s8.bf16 %v1468
    %v1521 = vunpack.c.h.s8.bf16 %v1469
    %v1522 = vunpack.c.l.s8.bf16 %v1470
    %v1523 = vunpack.c.l.s8.bf16 %v1471
    %v1524 = vunpack.c.l.s8.bf16 %v1472
    %v1525 = vunpack.c.l.s8.bf16 %v1473
    %v1526 = vunpack.c.h.s8.bf16 %v1470
    %v1527 = vunpack.c.h.s8.bf16 %v1471
    %v1528 = vunpack.c.h.s8.bf16 %v1472
    %v1529 = vunpack.c.h.s8.bf16 %v1473
    %v1530 = vunpack.c.l.s8.bf16 %v1474
    %v1531 = vunpack.c.l.s8.bf16 %v1475
    %v1532 = vunpack.c.l.s8.bf16 %v1476
    %v1533 = vunpack.c.l.s8.bf16 %v1477
    %v1534 = vunpack.c.h.s8.bf16 %v1474
    %v1535 = vunpack.c.h.s8.bf16 %v1475
    %v1536 = vunpack.c.h.s8.bf16 %v1476
    %v1537 = vunpack.c.h.s8.bf16 %v1477
    %v1538 = vunpack.c.l.s8.bf16 %v1478
    %v1539 = vunpack.c.l.s8.bf16 %v1479
    %v1540 = vunpack.c.l.s8.bf16 %v1480
    %v1541 = vunpack.c.l.s8.bf16 %v1481
    %v1542 = vunpack.c.h.s8.bf16 %v1478
    %v1543 = vunpack.c.h.s8.bf16 %v1479
    %v1544 = vunpack.c.h.s8.bf16 %v1480
    %v1545 = vunpack.c.h.s8.bf16 %v1481
    %1546 = vmatprep.subr.bf16.mxu0 %v1511
    %1547 = vmatpush1.bf16.msra.mxu0 %v1510
    %1548 = vmatprep.subr.bf16.mxu0 %v1507
    %1549 = vmatpush1.bf16.msra.mxu0 %v1506
    %1550 = vmatprep.subr.bf16.mxu0 %v1503
    %1551 = vmatpush1.bf16.msra.mxu0 %v1502
    %1552 = vmatprep.subr.bf16.mxu0 %v1499
    %1553 = vmatpush1.bf16.msra.mxu0 %v1498
    %1554 = vmatprep.subr.bf16.mxu0 %v1495
    %1555 = vmatpush1.bf16.msra.mxu0 %v1494
    %1556 = vmatprep.subr.bf16.mxu0 %v1491
    %1557 = vmatpush1.bf16.msra.mxu0 %v1490
    %1558 = vmatprep.subr.bf16.mxu0 %v1487
    %1559 = vmatpush1.bf16.msra.mxu0 %v1486
    %1560 = vmatprep.subr.bf16.mxu0 %v1483
    %1561 = vmatpush1.bf16.msra.mxu0 %v1482
    %1562 = vmatprep.subr.bf16.mxu0 %v1543
    %1563 = vmatpush2.bf16.msra.mxu0 %v1542
    %1564 = vmatprep.subr.bf16.mxu0 %v1539
    %1565 = vmatpush2.bf16.msra.mxu0 %v1538
    %1566 = vmatprep.subr.bf16.mxu0 %v1535
    %1567 = vmatpush2.bf16.msra.mxu0 %v1534
    %1568 = vmatprep.subr.bf16.mxu0 %v1531
    %1569 = vmatpush2.bf16.msra.mxu0 %v1530
    %1570 = vmatprep.subr.bf16.mxu0 %v1527
    %1571 = vmatpush2.bf16.msra.mxu0 %v1526
    %1572 = vmatprep.subr.bf16.mxu0 %v1523
    %1573 = vmatpush2.bf16.msra.mxu0 %v1522
    %1574 = vmatprep.subr.bf16.mxu0 %v1519
    %1575 = vmatpush2.bf16.msra.mxu0 %v1518
    %1576 = vmatprep.subr.bf16.mxu0 %v1515
    %1577 = vmatpush2.bf16.msra.mxu0 %v1514
    %1578 = vmatprep.mubr.bf16.mxu0 %v1449
    %1579 = vmatmul.mubr.bf16.gmra.mxu0 %v1448
    %v1580 = vpop.f32.mrf.mxu0
    %v1581 = vadd.f32 0.0, %v1580
    %v1582 = vpop.f32.mrf.mxu0
    %v1583 = vadd.f32 0.0, %v1582
    %v1584 = vpop.f32.mrf.mxu0
    %v1585 = vadd.f32 0.0, %v1584
    %v1586 = vpop.f32.mrf.mxu0
    %v1587 = vadd.f32 0.0, %v1586
    %1588 = vdwg.mxu0
    %1589 = vmatprep.subr.bf16.mxu0 %v1513
    %1590 = vmatpush1.bf16.msra.mxu0 %v1512
    %1591 = vmatprep.subr.bf16.mxu0 %v1509
    %1592 = vmatpush1.bf16.msra.mxu0 %v1508
    %1593 = vmatprep.subr.bf16.mxu0 %v1505
    %1594 = vmatpush1.bf16.msra.mxu0 %v1504
    %1595 = vmatprep.subr.bf16.mxu0 %v1501
    %1596 = vmatpush1.bf16.msra.mxu0 %v1500
    %1597 = vmatprep.subr.bf16.mxu0 %v1497
    %1598 = vmatpush1.bf16.msra.mxu0 %v1496
    %1599 = vmatprep.subr.bf16.mxu0 %v1493
    %1600 = vmatpush1.bf16.msra.mxu0 %v1492
    %1601 = vmatprep.subr.bf16.mxu0 %v1489
    %1602 = vmatpush1.bf16.msra.mxu0 %v1488
    %1603 = vmatprep.subr.bf16.mxu0 %v1485
    %1604 = vmatpush1.bf16.msra.mxu0 %v1484
    %1605 = vmatprep.subr.bf16.mxu0 %v1545
    %1606 = vmatpush2.bf16.msra.mxu0 %v1544
    %1607 = vmatprep.subr.bf16.mxu0 %v1541
    %1608 = vmatpush2.bf16.msra.mxu0 %v1540
    %1609 = vmatprep.subr.bf16.mxu0 %v1537
    %1610 = vmatpush2.bf16.msra.mxu0 %v1536
    %1611 = vmatprep.subr.bf16.mxu0 %v1533
    %1612 = vmatpush2.bf16.msra.mxu0 %v1532
    %1613 = vmatprep.subr.bf16.mxu0 %v1529
    %1614 = vmatpush2.bf16.msra.mxu0 %v1528
    %1615 = vmatprep.subr.bf16.mxu0 %v1525
    %1616 = vmatpush2.bf16.msra.mxu0 %v1524
    %1617 = vmatprep.subr.bf16.mxu0 %v1521
    %1618 = vmatpush2.bf16.msra.mxu0 %v1520
    %1619 = vmatprep.subr.bf16.mxu0 %v1517
    %1620 = vmatpush2.bf16.msra.mxu0 %v1516
    %1621 = vmatprep.mubr.bf16.mxu0 %v1449
    %1622 = vmatmul.mubr.bf16.gmra.mxu0 %v1448
    %v1623 = vpop.f32.mrf.mxu0
    %v1624 = vadd.f32 0.0, %v1623
    %v1625 = vpop.f32.mrf.mxu0
    %v1626 = vadd.f32 0.0, %v1625
    %v1627 = vpop.f32.mrf.mxu0
    %v1628 = vadd.f32 0.0, %v1627
    %v1629 = vpop.f32.mrf.mxu0
    %v1630 = vadd.f32 0.0, %v1629
    %1631 = vdwg.mxu0
    %v1633 = vlaneseq
    %v1634 = vshrl.u32 %v1633, 7
    %v1635 = vsub.s32 0, %v1634
    %v1636 = vrot.slane %v256, %v1635
    %v1637 = vlaneseq
    %v1638 = vshrl.u32 %v1637, 7
    %v1639 = vsub.s32 1, %v1638
    %v1640 = vrot.slane %v256, %v1639
    %v1641 = vlaneseq
    %v1642 = vshrl.u32 %v1641, 7
    %v1643 = vsub.s32 2, %v1642
    %v1644 = vrot.slane %v256, %v1643
    %v1645 = vlaneseq
    %v1646 = vshrl.u32 %v1645, 7
    %v1647 = vsub.s32 3, %v1646
    %v1648 = vrot.slane %v256, %v1647
    %v1653 = vmul.f32 %v1581, %v1636
    %v1654 = vmul.f32 %v1583, %v1640
    %v1655 = vmul.f32 %v1624, %v1644
    %v1656 = vmul.f32 %v1626, %v1648
    %v1657 = vmul.f32 %v1585, %v1636
    %v1658 = vmul.f32 %v1587, %v1640
    %v1659 = vmul.f32 %v1628, %v1644
    %v1660 = vmul.f32 %v1630, %v1648
    %v1662 = vlaneseq
    %v1663 = vshrl.u32 %v1662, 7
    %v1664 = vsub.s32 0, %v1663
    %v1665 = vrot.slane %v254, %v1664
    %v1666 = vlaneseq
    %v1667 = vshrl.u32 %v1666, 7
    %v1668 = vsub.s32 1, %v1667
    %v1669 = vrot.slane %v254, %v1668
    %v1670 = vlaneseq
    %v1671 = vshrl.u32 %v1670, 7
    %v1672 = vsub.s32 2, %v1671
    %v1673 = vrot.slane %v254, %v1672
    %v1674 = vlaneseq
    %v1675 = vshrl.u32 %v1674, 7
    %v1676 = vsub.s32 3, %v1675
    %v1677 = vrot.slane %v254, %v1676
    %v1682 = vadd.f32 %v1653, %v1665
    %v1683 = vadd.f32 %v1654, %v1669
    %v1684 = vadd.f32 %v1655, %v1673
    %v1685 = vadd.f32 %v1656, %v1677
    %v1686 = vadd.f32 %v1657, %v1665
    %v1687 = vadd.f32 %v1658, %v1669
    %v1688 = vadd.f32 %v1659, %v1673
    %v1689 = vadd.f32 %v1660, %v1677
    %v1690 = vmul.f32 %v1682, %v1682
    %v1691 = vmul.f32 %v1683, %v1683
    %v1692 = vmul.f32 %v1684, %v1684
    %v1693 = vmul.f32 %v1685, %v1685
    %v1694 = vmul.f32 %v1686, %v1686
    %v1695 = vmul.f32 %v1687, %v1687
    %v1696 = vmul.f32 %v1688, %v1688
    %v1697 = vmul.f32 %v1689, %v1689
    %v1698 = vmul.f32 %v1682, %v1690
    %v1699 = vmul.f32 %v1683, %v1691
    %v1700 = vmul.f32 %v1684, %v1692
    %v1701 = vmul.f32 %v1685, %v1693
    %v1702 = vmul.f32 %v1686, %v1694
    %v1703 = vmul.f32 %v1687, %v1695
    %v1704 = vmul.f32 %v1688, %v1696
    %v1705 = vmul.f32 %v1689, %v1697
    %v1706 = vmul.f32 %v1698, 0.044715
    %v1707 = vmul.f32 %v1699, 0.044715
    %v1708 = vmul.f32 %v1700, 0.044715
    %v1709 = vmul.f32 %v1701, 0.044715
    %v1710 = vmul.f32 %v1702, 0.044715
    %v1711 = vmul.f32 %v1703, 0.044715
    %v1712 = vmul.f32 %v1704, 0.044715
    %v1713 = vmul.f32 %v1705, 0.044715
    %v1714 = vadd.f32 %v1682, %v1706
    %v1715 = vadd.f32 %v1683, %v1707
    %v1716 = vadd.f32 %v1684, %v1708
    %v1717 = vadd.f32 %v1685, %v1709
    %v1718 = vadd.f32 %v1686, %v1710
    %v1719 = vadd.f32 %v1687, %v1711
    %v1720 = vadd.f32 %v1688, %v1712
    %v1721 = vadd.f32 %v1689, %v1713
    %v1722 = vmul.f32 %v1714, 0.7978846
    %v1723 = vmul.f32 %v1715, 0.7978846
    %v1724 = vmul.f32 %v1716, 0.7978846
    %v1725 = vmul.f32 %v1717, 0.7978846
    %v1726 = vmul.f32 %v1718, 0.7978846
    %v1727 = vmul.f32 %v1719, 0.7978846
    %v1728 = vmul.f32 %v1720, 0.7978846
    %v1729 = vmul.f32 %v1721, 0.7978846
    %v1730 = vtanh.pop %v1722
    %v1731 = vtanh.pop %v1723
    %v1732 = vtanh.pop %v1724
    %v1733 = vtanh.pop %v1725
    %v1734 = vtanh.pop %v1726
    %v1735 = vtanh.pop %v1727
    %v1736 = vtanh.pop %v1728
    %v1737 = vtanh.pop %v1729
    %v1738 = vadd.f32 %v1730, 1.0
    %v1739 = vadd.f32 %v1731, 1.0
    %v1740 = vadd.f32 %v1732, 1.0
    %v1741 = vadd.f32 %v1733, 1.0
    %v1742 = vadd.f32 %v1734, 1.0
    %v1743 = vadd.f32 %v1735, 1.0
    %v1744 = vadd.f32 %v1736, 1.0
    %v1745 = vadd.f32 %v1737, 1.0
    %v1746 = vmul.f32 %v1738, 0.5
    %v1747 = vmul.f32 %v1739, 0.5
    %v1748 = vmul.f32 %v1740, 0.5
    %v1749 = vmul.f32 %v1741, 0.5
    %v1750 = vmul.f32 %v1742, 0.5
    %v1751 = vmul.f32 %v1743, 0.5
    %v1752 = vmul.f32 %v1744, 0.5
    %v1753 = vmul.f32 %v1745, 0.5
    %v1754 = vmul.f32 %v1682, %v1746
    %v1755 = vmul.f32 %v1683, %v1747
    %v1756 = vmul.f32 %v1684, %v1748
    %v1757 = vmul.f32 %v1685, %v1749
    %v1758 = vmul.f32 %v1686, %v1750
    %v1759 = vmul.f32 %v1687, %v1751
    %v1760 = vmul.f32 %v1688, %v1752
    %v1761 = vmul.f32 %v1689, %v1753
    %v1762 = vpack.c.bf16 %v1758, %v1754
    %v1763 = vpack.c.bf16 %v1759, %v1755
    %v1764 = vpack.c.bf16 %v1760, %v1756
    %v1765 = vpack.c.bf16 %v1761, %v1757
    %v1766 = vld [vmem:[#allocation13] sm:$0xff]
    %v1767 = vld [vmem:[#allocation13 + $0x8] sm:$0xff]
    %v1768 = vld [vmem:[#allocation13 + $0x10] sm:$0xff]
    %v1769 = vld [vmem:[#allocation13 + $0x18] sm:$0xff]
    %v1770 = vld [vmem:[#allocation13 + $0x20] sm:$0xff]
    %v1771 = vld [vmem:[#allocation13 + $0x28] sm:$0xff]
    %v1772 = vld [vmem:[#allocation13 + $0x30] sm:$0xff]
    %v1773 = vld [vmem:[#allocation13 + $0x38] sm:$0xff]
    %v1774 = vld [vmem:[#allocation13 + $0x40] sm:$0xff]
    %v1775 = vld [vmem:[#allocation13 + $0x48] sm:$0xff]
    %v1776 = vld [vmem:[#allocation13 + $0x50] sm:$0xff]
    %v1777 = vld [vmem:[#allocation13 + $0x58] sm:$0xff]
    %v1778 = vld [vmem:[#allocation13 + $0x60] sm:$0xff]
    %v1779 = vld [vmem:[#allocation13 + $0x68] sm:$0xff]
    %v1780 = vld [vmem:[#allocation13 + $0x70] sm:$0xff]
    %v1781 = vld [vmem:[#allocation13 + $0x78] sm:$0xff]
    %v1782 = vld [vmem:[#allocation13 + $0x80] sm:$0xff]
    %v1783 = vld [vmem:[#allocation13 + $0x88] sm:$0xff]
    %v1784 = vld [vmem:[#allocation13 + $0x90] sm:$0xff]
    %v1785 = vld [vmem:[#allocation13 + $0x98] sm:$0xff]
    %v1786 = vld [vmem:[#allocation13 + $0xa0] sm:$0xff]
    %v1787 = vld [vmem:[#allocation13 + $0xa8] sm:$0xff]
    %v1788 = vld [vmem:[#allocation13 + $0xb0] sm:$0xff]
    %v1789 = vld [vmem:[#allocation13 + $0xb8] sm:$0xff]
    %v1790 = vld [vmem:[#allocation13 + $0xc0] sm:$0xff]
    %v1791 = vld [vmem:[#allocation13 + $0xc8] sm:$0xff]
    %v1792 = vld [vmem:[#allocation13 + $0xd0] sm:$0xff]
    %v1793 = vld [vmem:[#allocation13 + $0xd8] sm:$0xff]
    %v1794 = vld [vmem:[#allocation13 + $0xe0] sm:$0xff]
    %v1795 = vld [vmem:[#allocation13 + $0xe8] sm:$0xff]
    %v1796 = vld [vmem:[#allocation13 + $0xf0] sm:$0xff]
    %v1797 = vld [vmem:[#allocation13 + $0xf8] sm:$0xff]
    %v1798 = vunpack.c.l.s8.bf16 %v1766
    %v1799 = vunpack.c.l.s8.bf16 %v1767
    %v1800 = vunpack.c.h.s8.bf16 %v1766
    %v1801 = vunpack.c.h.s8.bf16 %v1767
    %v1802 = vunpack.c.l.s8.bf16 %v1768
    %v1803 = vunpack.c.l.s8.bf16 %v1769
    %v1804 = vunpack.c.h.s8.bf16 %v1768
    %v1805 = vunpack.c.h.s8.bf16 %v1769
    %v1806 = vunpack.c.l.s8.bf16 %v1770
    %v1807 = vunpack.c.l.s8.bf16 %v1771
    %v1808 = vunpack.c.h.s8.bf16 %v1770
    %v1809 = vunpack.c.h.s8.bf16 %v1771
    %v1810 = vunpack.c.l.s8.bf16 %v1772
    %v1811 = vunpack.c.l.s8.bf16 %v1773
    %v1812 = vunpack.c.h.s8.bf16 %v1772
    %v1813 = vunpack.c.h.s8.bf16 %v1773
    %v1814 = vunpack.c.l.s8.bf16 %v1774
    %v1815 = vunpack.c.l.s8.bf16 %v1775
    %v1816 = vunpack.c.h.s8.bf16 %v1774
    %v1817 = vunpack.c.h.s8.bf16 %v1775
    %v1818 = vunpack.c.l.s8.bf16 %v1776
    %v1819 = vunpack.c.l.s8.bf16 %v1777
    %v1820 = vunpack.c.h.s8.bf16 %v1776
    %v1821 = vunpack.c.h.s8.bf16 %v1777
    %v1822 = vunpack.c.l.s8.bf16 %v1778
    %v1823 = vunpack.c.l.s8.bf16 %v1779
    %v1824 = vunpack.c.h.s8.bf16 %v1778
    %v1825 = vunpack.c.h.s8.bf16 %v1779
    %v1826 = vunpack.c.l.s8.bf16 %v1780
    %v1827 = vunpack.c.l.s8.bf16 %v1781
    %v1828 = vunpack.c.h.s8.bf16 %v1780
    %v1829 = vunpack.c.h.s8.bf16 %v1781
    %v1830 = vunpack.c.l.s8.bf16 %v1782
    %v1831 = vunpack.c.l.s8.bf16 %v1783
    %v1832 = vunpack.c.h.s8.bf16 %v1782
    %v1833 = vunpack.c.h.s8.bf16 %v1783
    %v1834 = vunpack.c.l.s8.bf16 %v1784
    %v1835 = vunpack.c.l.s8.bf16 %v1785
    %v1836 = vunpack.c.h.s8.bf16 %v1784
    %v1837 = vunpack.c.h.s8.bf16 %v1785
    %v1838 = vunpack.c.l.s8.bf16 %v1786
    %v1839 = vunpack.c.l.s8.bf16 %v1787
    %v1840 = vunpack.c.h.s8.bf16 %v1786
    %v1841 = vunpack.c.h.s8.bf16 %v1787
    %v1842 = vunpack.c.l.s8.bf16 %v1788
    %v1843 = vunpack.c.l.s8.bf16 %v1789
    %v1844 = vunpack.c.h.s8.bf16 %v1788
    %v1845 = vunpack.c.h.s8.bf16 %v1789
    %v1846 = vunpack.c.l.s8.bf16 %v1790
    %v1847 = vunpack.c.l.s8.bf16 %v1791
    %v1848 = vunpack.c.h.s8.bf16 %v1790
    %v1849 = vunpack.c.h.s8.bf16 %v1791
    %v1850 = vunpack.c.l.s8.bf16 %v1792
    %v1851 = vunpack.c.l.s8.bf16 %v1793
    %v1852 = vunpack.c.h.s8.bf16 %v1792
    %v1853 = vunpack.c.h.s8.bf16 %v1793
    %v1854 = vunpack.c.l.s8.bf16 %v1794
    %v1855 = vunpack.c.l.s8.bf16 %v1795
    %v1856 = vunpack.c.h.s8.bf16 %v1794
    %v1857 = vunpack.c.h.s8.bf16 %v1795
    %v1858 = vunpack.c.l.s8.bf16 %v1796
    %v1859 = vunpack.c.l.s8.bf16 %v1797
    %v1860 = vunpack.c.h.s8.bf16 %v1796
    %v1861 = vunpack.c.h.s8.bf16 %v1797
    %1862 = vmatprep.subr.bf16.mxu0 %v1813
    %1863 = vmatpush1.bf16.msra.mxu0 %v1812
    %1864 = vmatprep.subr.bf16.mxu0 %v1811
    %1865 = vmatpush1.bf16.msra.mxu0 %v1810
    %1866 = vmatprep.subr.bf16.mxu0 %v1809
    %1867 = vmatpush1.bf16.msra.mxu0 %v1808
    %1868 = vmatprep.subr.bf16.mxu0 %v1807
    %1869 = vmatpush1.bf16.msra.mxu0 %v1806
    %1870 = vmatprep.subr.bf16.mxu0 %v1805
    %1871 = vmatpush1.bf16.msra.mxu0 %v1804
    %1872 = vmatprep.subr.bf16.mxu0 %v1803
    %1873 = vmatpush1.bf16.msra.mxu0 %v1802
    %1874 = vmatprep.subr.bf16.mxu0 %v1801
    %1875 = vmatpush1.bf16.msra.mxu0 %v1800
    %1876 = vmatprep.subr.bf16.mxu0 %v1799
    %1877 = vmatpush1.bf16.msra.mxu0 %v1798
    %1878 = vmatprep.subr.bf16.mxu0 %v1829
    %1879 = vmatpush2.bf16.msra.mxu0 %v1828
    %1880 = vmatprep.subr.bf16.mxu0 %v1827
    %1881 = vmatpush2.bf16.msra.mxu0 %v1826
    %1882 = vmatprep.subr.bf16.mxu0 %v1825
    %1883 = vmatpush2.bf16.msra.mxu0 %v1824
    %1884 = vmatprep.subr.bf16.mxu0 %v1823
    %1885 = vmatpush2.bf16.msra.mxu0 %v1822
    %1886 = vmatprep.subr.bf16.mxu0 %v1821
    %1887 = vmatpush2.bf16.msra.mxu0 %v1820
    %1888 = vmatprep.subr.bf16.mxu0 %v1819
    %1889 = vmatpush2.bf16.msra.mxu0 %v1818
    %1890 = vmatprep.subr.bf16.mxu0 %v1817
    %1891 = vmatpush2.bf16.msra.mxu0 %v1816
    %1892 = vmatprep.subr.bf16.mxu0 %v1815
    %1893 = vmatpush2.bf16.msra.mxu0 %v1814
    %1894 = vmatprep.mubr.bf16.mxu0 %v1763
    %1895 = vmatmul.mubr.bf16.gmra.mxu0 %v1762
    %v1896 = vpop.f32.mrf.mxu0
    %v1897 = vadd.f32 0.0, %v1896
    %v1898 = vpop.f32.mrf.mxu0
    %v1899 = vadd.f32 0.0, %v1898
    %v1900 = vpop.f32.mrf.mxu0
    %v1901 = vadd.f32 0.0, %v1900
    %v1902 = vpop.f32.mrf.mxu0
    %v1903 = vadd.f32 0.0, %v1902
    %1904 = vdwg.mxu0
    %1905 = vmatprep.subr.bf16.mxu0 %v1845
    %1906 = vmatpush1.bf16.msra.mxu0 %v1844
    %1907 = vmatprep.subr.bf16.mxu0 %v1843
    %1908 = vmatpush1.bf16.msra.mxu0 %v1842
    %1909 = vmatprep.subr.bf16.mxu0 %v1841
    %1910 = vmatpush1.bf16.msra.mxu0 %v1840
    %1911 = vmatprep.subr.bf16.mxu0 %v1839
    %1912 = vmatpush1.bf16.msra.mxu0 %v1838
    %1913 = vmatprep.subr.bf16.mxu0 %v1837
    %1914 = vmatpush1.bf16.msra.mxu0 %v1836
    %1915 = vmatprep.subr.bf16.mxu0 %v1835
    %1916 = vmatpush1.bf16.msra.mxu0 %v1834
    %1917 = vmatprep.subr.bf16.mxu0 %v1833
    %1918 = vmatpush1.bf16.msra.mxu0 %v1832
    %1919 = vmatprep.subr.bf16.mxu0 %v1831
    %1920 = vmatpush1.bf16.msra.mxu0 %v1830
    %1921 = vmatprep.subr.bf16.mxu0 %v1861
    %1922 = vmatpush2.bf16.msra.mxu0 %v1860
    %1923 = vmatprep.subr.bf16.mxu0 %v1859
    %1924 = vmatpush2.bf16.msra.mxu0 %v1858
    %1925 = vmatprep.subr.bf16.mxu0 %v1857
    %1926 = vmatpush2.bf16.msra.mxu0 %v1856
    %1927 = vmatprep.subr.bf16.mxu0 %v1855
    %1928 = vmatpush2.bf16.msra.mxu0 %v1854
    %1929 = vmatprep.subr.bf16.mxu0 %v1853
    %1930 = vmatpush2.bf16.msra.mxu0 %v1852
    %1931 = vmatprep.subr.bf16.mxu0 %v1851
    %1932 = vmatpush2.bf16.msra.mxu0 %v1850
    %1933 = vmatprep.subr.bf16.mxu0 %v1849
    %1934 = vmatpush2.bf16.msra.mxu0 %v1848
    %1935 = vmatprep.subr.bf16.mxu0 %v1847
    %1936 = vmatpush2.bf16.msra.mxu0 %v1846
    %1937 = vmatprep.mubr.bf16.mxu0 %v1765
    %1938 = vmatmul.mubr.bf16.gmra.mxu0 %v1764
    %v1939 = vpop.f32.mrf.mxu0
    %v1940 = vadd.f32 %v1897, %v1939
    %v1941 = vpop.f32.mrf.mxu0
    %v1942 = vadd.f32 %v1899, %v1941
    %v1943 = vpop.f32.mrf.mxu0
    %v1944 = vadd.f32 %v1901, %v1943
    %v1945 = vpop.f32.mrf.mxu0
    %v1946 = vadd.f32 %v1903, %v1945
    %1947 = vdwg.mxu0
    %v1949 = vlaneseq
    %v1950 = vshrl.u32 %v1949, 7
    %v1951 = vsub.s32 0, %v1950
    %v1952 = vrot.slane %v260, %v1951
    %v1953 = vlaneseq
    %v1954 = vshrl.u32 %v1953, 7
    %v1955 = vsub.s32 1, %v1954
    %v1956 = vrot.slane %v260, %v1955
    %v1959 = vmul.f32 %v1940, %v1952
    %v1960 = vmul.f32 %v1942, %v1956
    %v1961 = vmul.f32 %v1944, %v1952
    %v1962 = vmul.f32 %v1946, %v1956
    %v1964 = vlaneseq
    %v1965 = vshrl.u32 %v1964, 7
    %v1966 = vsub.s32 0, %v1965
    %v1967 = vrot.slane %v258, %v1966
    %v1968 = vlaneseq
    %v1969 = vshrl.u32 %v1968, 7
    %v1970 = vsub.s32 1, %v1969
    %v1971 = vrot.slane %v258, %v1970
    %v1974 = vadd.f32 %v1959, %v1967
    %v1975 = vadd.f32 %v1960, %v1971
    %v1976 = vadd.f32 %v1961, %v1967
    %v1977 = vadd.f32 %v1962, %v1971
    %v1978 = vadd.f32 %v1444, %v1974
    %v1979 = vadd.f32 %v1445, %v1975
    %v1980 = vadd.f32 %v1446, %v1976
    %v1981 = vadd.f32 %v1447, %v1977
    %v1982 = vadd.f32 %v1978, %v1979
    %1983 = vadd.xlane.f32.xlu0 %v1982
    %v1984 = vpop.xlane.xlu0 %1983
    %v1985 = vadd.f32 %v1980, %v1981
    %1986 = vadd.xlane.f32.xlu0 %v1985
    %v1987 = vpop.xlane.xlu0 %1986
    %v1988 = vmul.f32 %v1984, %v175
    %v1989 = vmul.f32 %v1987, %v175
    %v1990 = vmul.f32 %v1978, %v1978
    %v1991 = vmul.f32 %v1979, %v1979
    %v1992 = vmul.f32 %v1980, %v1980
    %v1993 = vmul.f32 %v1981, %v1981
    %v1994 = vadd.f32 %v1990, %v1991
    %1995 = vadd.xlane.f32.xlu0 %v1994
    %v1996 = vpop.xlane.xlu0 %1995
    %v1997 = vadd.f32 %v1992, %v1993
    %1998 = vadd.xlane.f32.xlu0 %v1997
    %v1999 = vpop.xlane.xlu0 %1998
    %v2000 = vmul.f32 %v1996, %v175
    %v2001 = vmul.f32 %v1999, %v175
    %v2002 = vmul.f32 %v1988, %v1988
    %v2003 = vmul.f32 %v1989, %v1989
    %v2004 = vsub.f32 %v2000, %v2002
    %v2005 = vsub.f32 %v2001, %v2003
    %v2006 = vsub.f32 %v1978, %v1988
    %v2007 = vsub.f32 %v1979, %v1988
    %v2008 = vsub.f32 %v1980, %v1989
    %v2009 = vsub.f32 %v1981, %v1989
    %v2010 = vadd.f32 %v2004, 1e-12
    %v2011 = vadd.f32 %v2005, 1e-12
    %v2012 = vrsqrt.pop %v2010
    %v2013 = vrsqrt.pop %v2011
    %v2014 = vmul.f32 %v2006, %v2012
    %v2015 = vmul.f32 %v2007, %v2012
    %v2016 = vmul.f32 %v2008, %v2013
    %v2017 = vmul.f32 %v2009, %v2013
    %v2019 = vlaneseq
    %v2020 = vshrl.u32 %v2019, 7
    %v2021 = vsub.s32 0, %v2020
    %v2022 = vrot.slane %v262, %v2021
    %v2023 = vlaneseq
    %v2024 = vshrl.u32 %v2023, 7
    %v2025 = vsub.s32 1, %v2024
    %v2026 = vrot.slane %v262, %v2025
    %v2029 = vmul.f32 %v2014, %v2022
    %v2030 = vmul.f32 %v2015, %v2026
    %v2031 = vmul.f32 %v2016, %v2022
    %v2032 = vmul.f32 %v2017, %v2026
    %v2034 = vlaneseq
    %v2035 = vshrl.u32 %v2034, 7
    %v2036 = vsub.s32 0, %v2035
    %v2037 = vrot.slane %v264, %v2036
    %v2038 = vlaneseq
    %v2039 = vshrl.u32 %v2038, 7
    %v2040 = vsub.s32 1, %v2039
    %v2041 = vrot.slane %v264, %v2040
    %v2044 = vadd.f32 %v2029, %v2037
    %v2045 = vadd.f32 %v2030, %v2041
    %v2046 = vadd.f32 %v2031, %v2037
    %v2047 = vadd.f32 %v2032, %v2041
    %s2048 = scalar_lea.vmem [#allocation14], 1
    %v2049 = vld [vmem:[%s2048] ss:$2 sm:$0x3f]
    %s2050 = scalar_lea.vmem [#allocation14], 13
    %v2051 = vld [vmem:[%s2050] ss:$2 sm:$0x3f]
    %s2052 = scalar_lea.vmem [#allocation14], 25
    %v2053 = vld [vmem:[%s2052] ss:$2 sm:$0x3]
    %s2054 = scalar_lea.vmem [#allocation14], 29
    %v2055 = vld [vmem:[%s2054] ss:$2 sm:$0x3]
    %s2056 = scalar_lea.vmem [#allocation14], 33
    %v2057 = vld [vmem:[%s2056] ss:$2 sm:$0x3]
    %s2058 = scalar_lea.vmem [#allocation14], 37
    %v2059 = vld [vmem:[%s2058] ss:$2 sm:$0x3]
    %s2060 = scalar_lea.vmem [#allocation14], 41
    %v2061 = vld [vmem:[%s2060] ss:$2 sm:$0xf]
    %s2062 = scalar_lea.vmem [#allocation14], 49
    %v2063 = vld [vmem:[%s2062] ss:$2 sm:$0xf]
    %s2064 = scalar_lea.vmem [#allocation14], 57
    %v2065 = vld [vmem:[%s2064] ss:$2 sm:$0x3]
    %s2066 = scalar_lea.vmem [#allocation14], 61
    %v2067 = vld [vmem:[%s2066] ss:$2 sm:$0x3]
    %s2068 = scalar_lea.vmem [#allocation14], 65
    %v2069 = vld [vmem:[%s2068] ss:$2 sm:$0x3]
    %s2070 = scalar_lea.vmem [#allocation14], 69
    %v2071 = vld [vmem:[%s2070] ss:$2 sm:$0x3]
    %v2072 = vpack.c.bf16 %v2046, %v2044
    %v2073 = vpack.c.bf16 %v2047, %v2045
    %s2074 = scalar_lea.vmem [#allocation8], 384
    %v2075 = vld [vmem:[%s2074] sm:$0xff]
    %v2076 = vld [vmem:[%s2074 + $0x8] sm:$0xff]
    %v2077 = vld [vmem:[%s2074 + $0x10] sm:$0xff]
    %v2078 = vld [vmem:[%s2074 + $0x18] sm:$0xff]
    %v2079 = vld [vmem:[%s2074 + $0x20] sm:$0xff]
    %v2080 = vld [vmem:[%s2074 + $0x28] sm:$0xff]
    %v2081 = vld [vmem:[%s2074 + $0x30] sm:$0xff]
    %v2082 = vld [vmem:[%s2074 + $0x38] sm:$0xff]
    %v2083 = vld [vmem:[%s2074 + $0x40] sm:$0xff]
    %v2084 = vld [vmem:[%s2074 + $0x48] sm:$0xff]
    %v2085 = vld [vmem:[%s2074 + $0x50] sm:$0xff]
    %v2086 = vld [vmem:[%s2074 + $0x58] sm:$0xff]
    %v2087 = vld [vmem:[%s2074 + $0x60] sm:$0xff]
    %v2088 = vld [vmem:[%s2074 + $0x68] sm:$0xff]
    %v2089 = vld [vmem:[%s2074 + $0x70] sm:$0xff]
    %v2090 = vld [vmem:[%s2074 + $0x78] sm:$0xff]
    %v2091 = vld [vmem:[%s2074 + $0x80] sm:$0xff]
    %v2092 = vld [vmem:[%s2074 + $0x88] sm:$0xff]
    %v2093 = vld [vmem:[%s2074 + $0x90] sm:$0xff]
    %v2094 = vld [vmem:[%s2074 + $0x98] sm:$0xff]
    %v2095 = vld [vmem:[%s2074 + $0xa0] sm:$0xff]
    %v2096 = vld [vmem:[%s2074 + $0xa8] sm:$0xff]
    %v2097 = vld [vmem:[%s2074 + $0xb0] sm:$0xff]
    %v2098 = vld [vmem:[%s2074 + $0xb8] sm:$0xff]
    %v2099 = vld [vmem:[%s2074 + $0xc0] sm:$0xff]
    %v2100 = vld [vmem:[%s2074 + $0xc8] sm:$0xff]
    %v2101 = vld [vmem:[%s2074 + $0xd0] sm:$0xff]
    %v2102 = vld [vmem:[%s2074 + $0xd8] sm:$0xff]
    %v2103 = vld [vmem:[%s2074 + $0xe0] sm:$0xff]
    %v2104 = vld [vmem:[%s2074 + $0xe8] sm:$0xff]
    %v2105 = vld [vmem:[%s2074 + $0xf0] sm:$0xff]
    %v2106 = vld [vmem:[%s2074 + $0xf8] sm:$0xff]
    %v2107 = vld [vmem:[%s2074 + $0x100] sm:$0xff]
    %v2108 = vld [vmem:[%s2074 + $0x108] sm:$0xff]
    %v2109 = vld [vmem:[%s2074 + $0x110] sm:$0xff]
    %v2110 = vld [vmem:[%s2074 + $0x118] sm:$0xff]
    %v2111 = vld [vmem:[%s2074 + $0x120] sm:$0xff]
    %v2112 = vld [vmem:[%s2074 + $0x128] sm:$0xff]
    %v2113 = vld [vmem:[%s2074 + $0x130] sm:$0xff]
    %v2114 = vld [vmem:[%s2074 + $0x138] sm:$0xff]
    %v2115 = vld [vmem:[%s2074 + $0x140] sm:$0xff]
    %v2116 = vld [vmem:[%s2074 + $0x148] sm:$0xff]
    %v2117 = vld [vmem:[%s2074 + $0x150] sm:$0xff]
    %v2118 = vld [vmem:[%s2074 + $0x158] sm:$0xff]
    %v2119 = vld [vmem:[%s2074 + $0x160] sm:$0xff]
    %v2120 = vld [vmem:[%s2074 + $0x168] sm:$0xff]
    %v2121 = vld [vmem:[%s2074 + $0x170] sm:$0xff]
    %v2122 = vld [vmem:[%s2074 + $0x178] sm:$0xff]
    %v2123 = vunpack.c.l.s8.bf16 %v2075
    %v2124 = vunpack.c.l.s8.bf16 %v2076
    %v2125 = vunpack.c.l.s8.bf16 %v2077
    %v2126 = vunpack.c.l.s8.bf16 %v2078
    %v2127 = vunpack.c.l.s8.bf16 %v2079
    %v2128 = vunpack.c.l.s8.bf16 %v2080
    %v2129 = vunpack.c.h.s8.bf16 %v2075
    %v2130 = vunpack.c.h.s8.bf16 %v2076
    %v2131 = vunpack.c.h.s8.bf16 %v2077
    %v2132 = vunpack.c.h.s8.bf16 %v2078
    %v2133 = vunpack.c.h.s8.bf16 %v2079
    %v2134 = vunpack.c.h.s8.bf16 %v2080
    %v2135 = vunpack.c.l.s8.bf16 %v2081
    %v2136 = vunpack.c.l.s8.bf16 %v2082
    %v2137 = vunpack.c.l.s8.bf16 %v2083
    %v2138 = vunpack.c.l.s8.bf16 %v2084
    %v2139 = vunpack.c.l.s8.bf16 %v2085
    %v2140 = vunpack.c.l.s8.bf16 %v2086
    %v2141 = vunpack.c.h.s8.bf16 %v2081
    %v2142 = vunpack.c.h.s8.bf16 %v2082
    %v2143 = vunpack.c.h.s8.bf16 %v2083
    %v2144 = vunpack.c.h.s8.bf16 %v2084
    %v2145 = vunpack.c.h.s8.bf16 %v2085
    %v2146 = vunpack.c.h.s8.bf16 %v2086
    %v2147 = vunpack.c.l.s8.bf16 %v2087
    %v2148 = vunpack.c.l.s8.bf16 %v2088
    %v2149 = vunpack.c.l.s8.bf16 %v2089
    %v2150 = vunpack.c.l.s8.bf16 %v2090
    %v2151 = vunpack.c.l.s8.bf16 %v2091
    %v2152 = vunpack.c.l.s8.bf16 %v2092
    %v2153 = vunpack.c.h.s8.bf16 %v2087
    %v2154 = vunpack.c.h.s8.bf16 %v2088
    %v2155 = vunpack.c.h.s8.bf16 %v2089
    %v2156 = vunpack.c.h.s8.bf16 %v2090
    %v2157 = vunpack.c.h.s8.bf16 %v2091
    %v2158 = vunpack.c.h.s8.bf16 %v2092
    %v2159 = vunpack.c.l.s8.bf16 %v2093
    %v2160 = vunpack.c.l.s8.bf16 %v2094
    %v2161 = vunpack.c.l.s8.bf16 %v2095
    %v2162 = vunpack.c.l.s8.bf16 %v2096
    %v2163 = vunpack.c.l.s8.bf16 %v2097
    %v2164 = vunpack.c.l.s8.bf16 %v2098
    %v2165 = vunpack.c.h.s8.bf16 %v2093
    %v2166 = vunpack.c.h.s8.bf16 %v2094
    %v2167 = vunpack.c.h.s8.bf16 %v2095
    %v2168 = vunpack.c.h.s8.bf16 %v2096
    %v2169 = vunpack.c.h.s8.bf16 %v2097
    %v2170 = vunpack.c.h.s8.bf16 %v2098
    %v2171 = vunpack.c.l.s8.bf16 %v2099
    %v2172 = vunpack.c.l.s8.bf16 %v2100
    %v2173 = vunpack.c.l.s8.bf16 %v2101
    %v2174 = vunpack.c.l.s8.bf16 %v2102
    %v2175 = vunpack.c.l.s8.bf16 %v2103
    %v2176 = vunpack.c.l.s8.bf16 %v2104
    %v2177 = vunpack.c.h.s8.bf16 %v2099
    %v2178 = vunpack.c.h.s8.bf16 %v2100
    %v2179 = vunpack.c.h.s8.bf16 %v2101
    %v2180 = vunpack.c.h.s8.bf16 %v2102
    %v2181 = vunpack.c.h.s8.bf16 %v2103
    %v2182 = vunpack.c.h.s8.bf16 %v2104
    %v2183 = vunpack.c.l.s8.bf16 %v2105
    %v2184 = vunpack.c.l.s8.bf16 %v2106
    %v2185 = vunpack.c.l.s8.bf16 %v2107
    %v2186 = vunpack.c.l.s8.bf16 %v2108
    %v2187 = vunpack.c.l.s8.bf16 %v2109
    %v2188 = vunpack.c.l.s8.bf16 %v2110
    %v2189 = vunpack.c.h.s8.bf16 %v2105
    %v2190 = vunpack.c.h.s8.bf16 %v2106
    %v2191 = vunpack.c.h.s8.bf16 %v2107
    %v2192 = vunpack.c.h.s8.bf16 %v2108
    %v2193 = vunpack.c.h.s8.bf16 %v2109
    %v2194 = vunpack.c.h.s8.bf16 %v2110
    %v2195 = vunpack.c.l.s8.bf16 %v2111
    %v2196 = vunpack.c.l.s8.bf16 %v2112
    %v2197 = vunpack.c.l.s8.bf16 %v2113
    %v2198 = vunpack.c.l.s8.bf16 %v2114
    %v2199 = vunpack.c.l.s8.bf16 %v2115
    %v2200 = vunpack.c.l.s8.bf16 %v2116
    %v2201 = vunpack.c.h.s8.bf16 %v2111
    %v2202 = vunpack.c.h.s8.bf16 %v2112
    %v2203 = vunpack.c.h.s8.bf16 %v2113
    %v2204 = vunpack.c.h.s8.bf16 %v2114
    %v2205 = vunpack.c.h.s8.bf16 %v2115
    %v2206 = vunpack.c.h.s8.bf16 %v2116
    %v2207 = vunpack.c.l.s8.bf16 %v2117
    %v2208 = vunpack.c.l.s8.bf16 %v2118
    %v2209 = vunpack.c.l.s8.bf16 %v2119
    %v2210 = vunpack.c.l.s8.bf16 %v2120
    %v2211 = vunpack.c.l.s8.bf16 %v2121
    %v2212 = vunpack.c.l.s8.bf16 %v2122
    %v2213 = vunpack.c.h.s8.bf16 %v2117
    %v2214 = vunpack.c.h.s8.bf16 %v2118
    %v2215 = vunpack.c.h.s8.bf16 %v2119
    %v2216 = vunpack.c.h.s8.bf16 %v2120
    %v2217 = vunpack.c.h.s8.bf16 %v2121
    %v2218 = vunpack.c.h.s8.bf16 %v2122
    %2219 = vmatprep.subr.bf16.mxu0 %v2166
    %2220 = vmatpush1.bf16.msra.mxu0 %v2165
    %2221 = vmatprep.subr.bf16.mxu0 %v2160
    %2222 = vmatpush1.bf16.msra.mxu0 %v2159
    %2223 = vmatprep.subr.bf16.mxu0 %v2154
    %2224 = vmatpush1.bf16.msra.mxu0 %v2153
    %2225 = vmatprep.subr.bf16.mxu0 %v2148
    %2226 = vmatpush1.bf16.msra.mxu0 %v2147
    %2227 = vmatprep.subr.bf16.mxu0 %v2142
    %2228 = vmatpush1.bf16.msra.mxu0 %v2141
    %2229 = vmatprep.subr.bf16.mxu0 %v2136
    %2230 = vmatpush1.bf16.msra.mxu0 %v2135
    %2231 = vmatprep.subr.bf16.mxu0 %v2130
    %2232 = vmatpush1.bf16.msra.mxu0 %v2129
    %2233 = vmatprep.subr.bf16.mxu0 %v2124
    %2234 = vmatpush1.bf16.msra.mxu0 %v2123
    %2235 = vmatprep.subr.bf16.mxu0 %v2214
    %2236 = vmatpush2.bf16.msra.mxu0 %v2213
    %2237 = vmatprep.subr.bf16.mxu0 %v2208
    %2238 = vmatpush2.bf16.msra.mxu0 %v2207
    %2239 = vmatprep.subr.bf16.mxu0 %v2202
    %2240 = vmatpush2.bf16.msra.mxu0 %v2201
    %2241 = vmatprep.subr.bf16.mxu0 %v2196
    %2242 = vmatpush2.bf16.msra.mxu0 %v2195
    %2243 = vmatprep.subr.bf16.mxu0 %v2190
    %2244 = vmatpush2.bf16.msra.mxu0 %v2189
    %2245 = vmatprep.subr.bf16.mxu0 %v2184
    %2246 = vmatpush2.bf16.msra.mxu0 %v2183
    %2247 = vmatprep.subr.bf16.mxu0 %v2178
    %2248 = vmatpush2.bf16.msra.mxu0 %v2177
    %2249 = vmatprep.subr.bf16.mxu0 %v2172
    %2250 = vmatpush2.bf16.msra.mxu0 %v2171
    %2251 = vmatprep.mubr.bf16.mxu0 %v2073
    %2252 = vmatmul.mubr.bf16.gmra.mxu0 %v2072
    %v2253 = vpop.f32.mrf.mxu0
    %v2254 = vadd.f32 0.0, %v2253
    %v2255 = vpop.f32.mrf.mxu0
    %v2256 = vadd.f32 0.0, %v2255
    %v2257 = vpop.f32.mrf.mxu0
    %v2258 = vadd.f32 0.0, %v2257
    %v2259 = vpop.f32.mrf.mxu0
    %v2260 = vadd.f32 0.0, %v2259
    %2261 = vdwg.mxu0
    %2262 = vmatprep.subr.bf16.mxu0 %v2168
    %2263 = vmatpush1.bf16.msra.mxu0 %v2167
    %2264 = vmatprep.subr.bf16.mxu0 %v2162
    %2265 = vmatpush1.bf16.msra.mxu0 %v2161
    %2266 = vmatprep.subr.bf16.mxu0 %v2156
    %2267 = vmatpush1.bf16.msra.mxu0 %v2155
    %2268 = vmatprep.subr.bf16.mxu0 %v2150
    %2269 = vmatpush1.bf16.msra.mxu0 %v2149
    %2270 = vmatprep.subr.bf16.mxu0 %v2144
    %2271 = vmatpush1.bf16.msra.mxu0 %v2143
    %2272 = vmatprep.subr.bf16.mxu0 %v2138
    %2273 = vmatpush1.bf16.msra.mxu0 %v2137
    %2274 = vmatprep.subr.bf16.mxu0 %v2132
    %2275 = vmatpush1.bf16.msra.mxu0 %v2131
    %2276 = vmatprep.subr.bf16.mxu0 %v2126
    %2277 = vmatpush1.bf16.msra.mxu0 %v2125
    %2278 = vmatprep.subr.bf16.mxu0 %v2216
    %2279 = vmatpush2.bf16.msra.mxu0 %v2215
    %2280 = vmatprep.subr.bf16.mxu0 %v2210
    %2281 = vmatpush2.bf16.msra.mxu0 %v2209
    %2282 = vmatprep.subr.bf16.mxu0 %v2204
    %2283 = vmatpush2.bf16.msra.mxu0 %v2203
    %2284 = vmatprep.subr.bf16.mxu0 %v2198
    %2285 = vmatpush2.bf16.msra.mxu0 %v2197
    %2286 = vmatprep.subr.bf16.mxu0 %v2192
    %2287 = vmatpush2.bf16.msra.mxu0 %v2191
    %2288 = vmatprep.subr.bf16.mxu0 %v2186
    %2289 = vmatpush2.bf16.msra.mxu0 %v2185
    %2290 = vmatprep.subr.bf16.mxu0 %v2180
    %2291 = vmatpush2.bf16.msra.mxu0 %v2179
    %2292 = vmatprep.subr.bf16.mxu0 %v2174
    %2293 = vmatpush2.bf16.msra.mxu0 %v2173
    %2294 = vmatprep.mubr.bf16.mxu0 %v2073
    %2295 = vmatmul.mubr.bf16.gmra.mxu0 %v2072
    %v2296 = vpop.f32.mrf.mxu0
    %v2297 = vadd.f32 0.0, %v2296
    %v2298 = vpop.f32.mrf.mxu0
    %v2299 = vadd.f32 0.0, %v2298
    %v2300 = vpop.f32.mrf.mxu0
    %v2301 = vadd.f32 0.0, %v2300
    %v2302 = vpop.f32.mrf.mxu0
    %v2303 = vadd.f32 0.0, %v2302
    %2304 = vdwg.mxu0
    %2305 = vmatprep.subr.bf16.mxu0 %v2170
    %2306 = vmatpush1.bf16.msra.mxu0 %v2169
    %2307 = vmatprep.subr.bf16.mxu0 %v2164
    %2308 = vmatpush1.bf16.msra.mxu0 %v2163
    %2309 = vmatprep.subr.bf16.mxu0 %v2158
    %2310 = vmatpush1.bf16.msra.mxu0 %v2157
    %2311 = vmatprep.subr.bf16.mxu0 %v2152
    %2312 = vmatpush1.bf16.msra.mxu0 %v2151
    %2313 = vmatprep.subr.bf16.mxu0 %v2146
    %2314 = vmatpush1.bf16.msra.mxu0 %v2145
    %2315 = vmatprep.subr.bf16.mxu0 %v2140
    %2316 = vmatpush1.bf16.msra.mxu0 %v2139
    %2317 = vmatprep.subr.bf16.mxu0 %v2134
    %2318 = vmatpush1.bf16.msra.mxu0 %v2133
    %2319 = vmatprep.subr.bf16.mxu0 %v2128
    %2320 = vmatpush1.bf16.msra.mxu0 %v2127
    %2321 = vmatprep.subr.bf16.mxu0 %v2218
    %2322 = vmatpush2.bf16.msra.mxu0 %v2217
    %2323 = vmatprep.subr.bf16.mxu0 %v2212
    %2324 = vmatpush2.bf16.msra.mxu0 %v2211
    %2325 = vmatprep.subr.bf16.mxu0 %v2206
    %2326 = vmatpush2.bf16.msra.mxu0 %v2205
    %2327 = vmatprep.subr.bf16.mxu0 %v2200
    %2328 = vmatpush2.bf16.msra.mxu0 %v2199
    %2329 = vmatprep.subr.bf16.mxu0 %v2194
    %2330 = vmatpush2.bf16.msra.mxu0 %v2193
    %2331 = vmatprep.subr.bf16.mxu0 %v2188
    %2332 = vmatpush2.bf16.msra.mxu0 %v2187
    %2333 = vmatprep.subr.bf16.mxu0 %v2182
    %2334 = vmatpush2.bf16.msra.mxu0 %v2181
    %2335 = vmatprep.subr.bf16.mxu0 %v2176
    %2336 = vmatpush2.bf16.msra.mxu0 %v2175
    %2337 = vmatprep.mubr.bf16.mxu0 %v2073
    %2338 = vmatmul.mubr.bf16.gmra.mxu0 %v2072
    %v2339 = vpop.f32.mrf.mxu0
    %v2340 = vadd.f32 0.0, %v2339
    %v2341 = vpop.f32.mrf.mxu0
    %v2342 = vadd.f32 0.0, %v2341
    %v2343 = vpop.f32.mrf.mxu0
    %v2344 = vadd.f32 0.0, %v2343
    %v2345 = vpop.f32.mrf.mxu0
    %v2346 = vadd.f32 0.0, %v2345
    %2347 = vdwg.mxu0
    %v2349 = vlaneseq
    %v2350 = vshrl.u32 %v2349, 7
    %v2351 = vsub.s32 0, %v2350
    %v2352 = vrot.slane %v2051, %v2351
    %v2353 = vlaneseq
    %v2354 = vshrl.u32 %v2353, 7
    %v2355 = vsub.s32 1, %v2354
    %v2356 = vrot.slane %v2051, %v2355
    %v2357 = vlaneseq
    %v2358 = vshrl.u32 %v2357, 7
    %v2359 = vsub.s32 2, %v2358
    %v2360 = vrot.slane %v2051, %v2359
    %v2361 = vlaneseq
    %v2362 = vshrl.u32 %v2361, 7
    %v2363 = vsub.s32 3, %v2362
    %v2364 = vrot.slane %v2051, %v2363
    %v2365 = vlaneseq
    %v2366 = vshrl.u32 %v2365, 7
    %v2367 = vsub.s32 4, %v2366
    %v2368 = vrot.slane %v2051, %v2367
    %v2369 = vlaneseq
    %v2370 = vshrl.u32 %v2369, 7
    %v2371 = vsub.s32 5, %v2370
    %v2372 = vrot.slane %v2051, %v2371
    %v2379 = vmul.f32 %v2254, %v2352
    %v2380 = vmul.f32 %v2256, %v2356
    %v2381 = vmul.f32 %v2297, %v2360
    %v2382 = vmul.f32 %v2299, %v2364
    %v2383 = vmul.f32 %v2340, %v2368
    %v2384 = vmul.f32 %v2342, %v2372
    %v2385 = vmul.f32 %v2258, %v2352
    %v2386 = vmul.f32 %v2260, %v2356
    %v2387 = vmul.f32 %v2301, %v2360
    %v2388 = vmul.f32 %v2303, %v2364
    %v2389 = vmul.f32 %v2344, %v2368
    %v2390 = vmul.f32 %v2346, %v2372
    %v2392 = vlaneseq
    %v2393 = vshrl.u32 %v2392, 7
    %v2394 = vsub.s32 0, %v2393
    %v2395 = vrot.slane %v2049, %v2394
    %v2396 = vlaneseq
    %v2397 = vshrl.u32 %v2396, 7
    %v2398 = vsub.s32 1, %v2397
    %v2399 = vrot.slane %v2049, %v2398
    %v2400 = vlaneseq
    %v2401 = vshrl.u32 %v2400, 7
    %v2402 = vsub.s32 2, %v2401
    %v2403 = vrot.slane %v2049, %v2402
    %v2404 = vlaneseq
    %v2405 = vshrl.u32 %v2404, 7
    %v2406 = vsub.s32 3, %v2405
    %v2407 = vrot.slane %v2049, %v2406
    %v2408 = vlaneseq
    %v2409 = vshrl.u32 %v2408, 7
    %v2410 = vsub.s32 4, %v2409
    %v2411 = vrot.slane %v2049, %v2410
    %v2412 = vlaneseq
    %v2413 = vshrl.u32 %v2412, 7
    %v2414 = vsub.s32 5, %v2413
    %v2415 = vrot.slane %v2049, %v2414
    %v2422 = vadd.f32 %v2379, %v2395
    %v2423 = vadd.f32 %v2380, %v2399
    %v2424 = vadd.f32 %v2381, %v2403
    %v2425 = vadd.f32 %v2382, %v2407
    %v2426 = vadd.f32 %v2383, %v2411
    %v2427 = vadd.f32 %v2384, %v2415
    %v2428 = vadd.f32 %v2385, %v2395
    %v2429 = vadd.f32 %v2386, %v2399
    %v2430 = vadd.f32 %v2387, %v2403
    %v2431 = vadd.f32 %v2388, %v2407
    %v2432 = vadd.f32 %v2389, %v2411
    %v2433 = vadd.f32 %v2390, %v2415
    %2434 = vmatprep.subr.mxu0 0.0
    %2435 = vmatpush1.xpose.msra.mxu0 0.0
    %2436 = vmatprep.subr.mxu0 0.0
    %2437 = vmatpush1.xpose.msra.mxu0 0.0
    %2438 = vmatprep.subr.mxu0 0.0
    %2439 = vmatpush1.xpose.msra.mxu0 0.0
    %2440 = vmatprep.subr.mxu0 0.0
    %2441 = vmatpush1.xpose.msra.mxu0 0.0
    %2442 = vmatprep.subr.mxu0 0.0
    %2443 = vmatpush1.xpose.msra.mxu0 0.0
    %2444 = vmatprep.subr.mxu0 0.0
    %2445 = vmatpush1.xpose.msra.mxu0 0.0
    %2446 = vmatprep.subr.mxu0 0.0
    %2447 = vmatpush1.xpose.msra.mxu0 0.0
    %2448 = vmatprep.subr.mxu0 0.0
    %2449 = vmatpush1.xpose.msra.mxu0 0.0
    %2450 = vmatprep.subr.mxu0 0.0
    %2451 = vmatpush1.xpose.msra.mxu0 0.0
    %2452 = vmatprep.subr.mxu0 0.0
    %2453 = vmatpush1.xpose.msra.mxu0 0.0
    %2454 = vmatprep.subr.mxu0 0.0
    %2455 = vmatpush1.xpose.msra.mxu0 0.0
    %2456 = vmatprep.subr.mxu0 0.0
    %2457 = vmatpush1.xpose.msra.mxu0 0.0
    %2458 = vmatprep.subr.mxu0 0.0
    %2459 = vmatpush1.xpose.msra.mxu0 0.0
    %2460 = vmatprep.subr.mxu0 0.0
    %2461 = vmatpush1.xpose.msra.mxu0 0.0
    %2462 = vmatprep.subr.mxu0 0.0
    %2463 = vmatpush1.xpose.msra.mxu0 0.0
    %2464 = vmatprep.subr.mxu0 0.0
    %2465 = vmatpush1.xpose.msra.mxu0 %v2424
    %2466 = vmatprep.subr.mxu0 0.0
    %2467 = vmatpush2.xpose.msra.mxu0 0.0
    %2468 = vmatprep.subr.mxu0 0.0
    %2469 = vmatpush2.xpose.msra.mxu0 0.0
    %2470 = vmatprep.subr.mxu0 0.0
    %2471 = vmatpush2.xpose.msra.mxu0 0.0
    %2472 = vmatprep.subr.mxu0 0.0
    %2473 = vmatpush2.xpose.msra.mxu0 0.0
    %2474 = vmatprep.subr.mxu0 0.0
    %2475 = vmatpush2.xpose.msra.mxu0 0.0
    %2476 = vmatprep.subr.mxu0 0.0
    %2477 = vmatpush2.xpose.msra.mxu0 0.0
    %2478 = vmatprep.subr.mxu0 0.0
    %2479 = vmatpush2.xpose.msra.mxu0 0.0
    %2480 = vmatprep.subr.mxu0 0.0
    %2481 = vmatpush2.xpose.msra.mxu0 0.0
    %2482 = vmatprep.subr.mxu0 0.0
    %2483 = vmatpush2.xpose.msra.mxu0 0.0
    %2484 = vmatprep.subr.mxu0 0.0
    %2485 = vmatpush2.xpose.msra.mxu0 0.0
    %2486 = vmatprep.subr.mxu0 0.0
    %2487 = vmatpush2.xpose.msra.mxu0 0.0
    %2488 = vmatprep.subr.mxu0 0.0
    %2489 = vmatpush2.xpose.msra.mxu0 0.0
    %2490 = vmatprep.subr.mxu0 0.0
    %2491 = vmatpush2.xpose.msra.mxu0 0.0
    %2492 = vmatprep.subr.mxu0 0.0
    %2493 = vmatpush2.xpose.msra.mxu0 0.0
    %2494 = vmatprep.subr.mxu0 0.0
    %2495 = vmatpush2.xpose.msra.mxu0 0.0
    %2496 = vmatprep.subr.mxu0 0.0
    %2497 = vmatpush2.xpose.msra.mxu0 0.0
    %2498 = vmatprep.mubr.f32.mxu0 0.0
    %2499 = vmatmul.mubr.f32.gmra.mxu0 %v2422
    %v2500 = vpop.f32.mrf.mxu0
    %v2501 = vadd.f32 %v631, %v2500
    %v2502 = vpop.f32.mrf.mxu0
    %2503 = vdwg.mxu0
    %2504 = vmatprep.subr.mxu0 0.0
    %2505 = vmatpush1.xpose.msra.mxu0 0.0
    %2506 = vmatprep.subr.mxu0 0.0
    %2507 = vmatpush1.xpose.msra.mxu0 0.0
    %2508 = vmatprep.subr.mxu0 0.0
    %2509 = vmatpush1.xpose.msra.mxu0 0.0
    %2510 = vmatprep.subr.mxu0 0.0
    %2511 = vmatpush1.xpose.msra.mxu0 0.0
    %2512 = vmatprep.subr.mxu0 0.0
    %2513 = vmatpush1.xpose.msra.mxu0 0.0
    %2514 = vmatprep.subr.mxu0 0.0
    %2515 = vmatpush1.xpose.msra.mxu0 0.0
    %2516 = vmatprep.subr.mxu0 0.0
    %2517 = vmatpush1.xpose.msra.mxu0 0.0
    %2518 = vmatprep.subr.mxu0 0.0
    %2519 = vmatpush1.xpose.msra.mxu0 0.0
    %2520 = vmatprep.subr.mxu0 0.0
    %2521 = vmatpush1.xpose.msra.mxu0 0.0
    %2522 = vmatprep.subr.mxu0 0.0
    %2523 = vmatpush1.xpose.msra.mxu0 0.0
    %2524 = vmatprep.subr.mxu0 0.0
    %2525 = vmatpush1.xpose.msra.mxu0 0.0
    %2526 = vmatprep.subr.mxu0 0.0
    %2527 = vmatpush1.xpose.msra.mxu0 0.0
    %2528 = vmatprep.subr.mxu0 0.0
    %2529 = vmatpush1.xpose.msra.mxu0 0.0
    %2530 = vmatprep.subr.mxu0 0.0
    %2531 = vmatpush1.xpose.msra.mxu0 0.0
    %2532 = vmatprep.subr.mxu0 0.0
    %2533 = vmatpush1.xpose.msra.mxu0 0.0
    %2534 = vmatprep.subr.mxu0 0.0
    %2535 = vmatpush1.xpose.msra.mxu0 %v2430
    %2536 = vmatprep.subr.mxu0 0.0
    %2537 = vmatpush2.xpose.msra.mxu0 0.0
    %2538 = vmatprep.subr.mxu0 0.0
    %2539 = vmatpush2.xpose.msra.mxu0 0.0
    %2540 = vmatprep.subr.mxu0 0.0
    %2541 = vmatpush2.xpose.msra.mxu0 0.0
    %2542 = vmatprep.subr.mxu0 0.0
    %2543 = vmatpush2.xpose.msra.mxu0 0.0
    %2544 = vmatprep.subr.mxu0 0.0
    %2545 = vmatpush2.xpose.msra.mxu0 0.0
    %2546 = vmatprep.subr.mxu0 0.0
    %2547 = vmatpush2.xpose.msra.mxu0 0.0
    %2548 = vmatprep.subr.mxu0 0.0
    %2549 = vmatpush2.xpose.msra.mxu0 0.0
    %2550 = vmatprep.subr.mxu0 0.0
    %2551 = vmatpush2.xpose.msra.mxu0 0.0
    %2552 = vmatprep.subr.mxu0 0.0
    %2553 = vmatpush2.xpose.msra.mxu0 0.0
    %2554 = vmatprep.subr.mxu0 0.0
    %2555 = vmatpush2.xpose.msra.mxu0 0.0
    %2556 = vmatprep.subr.mxu0 0.0
    %2557 = vmatpush2.xpose.msra.mxu0 0.0
    %2558 = vmatprep.subr.mxu0 0.0
    %2559 = vmatpush2.xpose.msra.mxu0 0.0
    %2560 = vmatprep.subr.mxu0 0.0
    %2561 = vmatpush2.xpose.msra.mxu0 0.0
    %2562 = vmatprep.subr.mxu0 0.0
    %2563 = vmatpush2.xpose.msra.mxu0 0.0
    %2564 = vmatprep.subr.mxu0 0.0
    %2565 = vmatpush2.xpose.msra.mxu0 0.0
    %2566 = vmatprep.subr.mxu0 0.0
    %2567 = vmatpush2.xpose.msra.mxu0 0.0
    %2568 = vmatprep.mubr.f32.mxu0 0.0
    %2569 = vmatmul.mubr.f32.gmra.mxu0 %v2428
    %v2570 = vpop.f32.mrf.mxu0
    %v2571 = vadd.f32 %v635, %v2570
    %v2572 = vpop.f32.mrf.mxu0
    %2573 = vdwg.mxu0
    %v2574 = vsel %vm778, %v2501, -inf
    %2575 = vmax.xlane.f32.xlu0 %v2574
    %v2576 = vpop.xlane.xlu0 %2575
    %v2577 = vsel %vm778, %v2571, -inf
    %2578 = vmax.xlane.f32.xlu0 %v2577
    %v2579 = vpop.xlane.xlu0 %2578
    %v2580 = vsub.f32 %v2501, %v2576
    %v2581 = vsub.f32 %v2571, %v2579
    %v2582 = vmul.f32 %v2580, 1.442695
    %v2583 = vpow.pop %v2582
    %v2584 = vmul.f32 %v2581, 1.442695
    %v2585 = vpow.pop %v2584
    %v2586 = vsel %vm778, %v2583, 0.0
    %2587 = vadd.xlane.f32.xlu0 %v2586
    %v2588 = vpop.xlane.xlu0 %2587
    %v2589 = vsel %vm778, %v2585, 0.0
    %2590 = vadd.xlane.f32.xlu0 %v2589
    %v2591 = vpop.xlane.xlu0 %2590
    %v2592 = vrcp.pop %v2588
    %v2593 = vrcp.pop %v2591
    %v2594 = vmul.f32 %v2583, %v2592
    %v2595 = vmul.f32 %v2585, %v2593
    %v2597 = vsel %vm778, %v2594, 0
    %2599 = vmatprep.subr.mxu0 0.0
    %2600 = vmatpush1.msra.mxu0 0.0
    %2601 = vmatprep.subr.mxu0 0.0
    %2602 = vmatpush1.msra.mxu0 0.0
    %2603 = vmatprep.subr.mxu0 0.0
    %2604 = vmatpush1.msra.mxu0 0.0
    %2605 = vmatprep.subr.mxu0 0.0
    %2606 = vmatpush1.msra.mxu0 0.0
    %2607 = vmatprep.subr.mxu0 0.0
    %2608 = vmatpush1.msra.mxu0 0.0
    %2609 = vmatprep.subr.mxu0 0.0
    %2610 = vmatpush1.msra.mxu0 0.0
    %2611 = vmatprep.subr.mxu0 0.0
    %2612 = vmatpush1.msra.mxu0 0.0
    %2613 = vmatprep.subr.mxu0 0.0
    %2614 = vmatpush1.msra.mxu0 0.0
    %2615 = vmatprep.subr.mxu0 0.0
    %2616 = vmatpush1.msra.mxu0 0.0
    %2617 = vmatprep.subr.mxu0 0.0
    %2618 = vmatpush1.msra.mxu0 0.0
    %2619 = vmatprep.subr.mxu0 0.0
    %2620 = vmatpush1.msra.mxu0 0.0
    %2621 = vmatprep.subr.mxu0 0.0
    %2622 = vmatpush1.msra.mxu0 0.0
    %2623 = vmatprep.subr.mxu0 0.0
    %2624 = vmatpush1.msra.mxu0 0.0
    %2625 = vmatprep.subr.mxu0 0.0
    %2626 = vmatpush1.msra.mxu0 0.0
    %2627 = vmatprep.subr.mxu0 0.0
    %2628 = vmatpush1.msra.mxu0 0.0
    %2629 = vmatprep.subr.mxu0 0.0
    %2630 = vmatpush1.msra.mxu0 %v2426
    %2631 = vmatprep.subr.mxu0 0.0
    %2632 = vmatpush2.msra.mxu0 0.0
    %2633 = vmatprep.subr.mxu0 0.0
    %2634 = vmatpush2.msra.mxu0 0.0
    %2635 = vmatprep.subr.mxu0 0.0
    %2636 = vmatpush2.msra.mxu0 0.0
    %2637 = vmatprep.subr.mxu0 0.0
    %2638 = vmatpush2.msra.mxu0 0.0
    %2639 = vmatprep.subr.mxu0 0.0
    %2640 = vmatpush2.msra.mxu0 0.0
    %2641 = vmatprep.subr.mxu0 0.0
    %2642 = vmatpush2.msra.mxu0 0.0
    %2643 = vmatprep.subr.mxu0 0.0
    %2644 = vmatpush2.msra.mxu0 0.0
    %2645 = vmatprep.subr.mxu0 0.0
    %2646 = vmatpush2.msra.mxu0 0.0
    %2647 = vmatprep.subr.mxu0 0.0
    %2648 = vmatpush2.msra.mxu0 0.0
    %2649 = vmatprep.subr.mxu0 0.0
    %2650 = vmatpush2.msra.mxu0 0.0
    %2651 = vmatprep.subr.mxu0 0.0
    %2652 = vmatpush2.msra.mxu0 0.0
    %2653 = vmatprep.subr.mxu0 0.0
    %2654 = vmatpush2.msra.mxu0 0.0
    %2655 = vmatprep.subr.mxu0 0.0
    %2656 = vmatpush2.msra.mxu0 0.0
    %2657 = vmatprep.subr.mxu0 0.0
    %2658 = vmatpush2.msra.mxu0 0.0
    %2659 = vmatprep.subr.mxu0 0.0
    %2660 = vmatpush2.msra.mxu0 0.0
    %2661 = vmatprep.subr.mxu0 0.0
    %2662 = vmatpush2.msra.mxu0 0.0
    %2663 = vmatprep.mubr.f32.mxu0 0.0
    %2664 = vmatmul.mubr.f32.gmra.mxu0 %v2597
    %v2665 = vpop.f32.mrf.mxu0
    %v2666 = vadd.f32 0.0, %v2665
    %v2667 = vpop.f32.mrf.mxu0
    %2668 = vdwg.mxu0
    %v2670 = vsel %vm778, %v2595, 0
    %2672 = vmatprep.subr.mxu0 0.0
    %2673 = vmatpush1.msra.mxu0 0.0
    %2674 = vmatprep.subr.mxu0 0.0
    %2675 = vmatpush1.msra.mxu0 0.0
    %2676 = vmatprep.subr.mxu0 0.0
    %2677 = vmatpush1.msra.mxu0 0.0
    %2678 = vmatprep.subr.mxu0 0.0
    %2679 = vmatpush1.msra.mxu0 0.0
    %2680 = vmatprep.subr.mxu0 0.0
    %2681 = vmatpush1.msra.mxu0 0.0
    %2682 = vmatprep.subr.mxu0 0.0
    %2683 = vmatpush1.msra.mxu0 0.0
    %2684 = vmatprep.subr.mxu0 0.0
    %2685 = vmatpush1.msra.mxu0 0.0
    %2686 = vmatprep.subr.mxu0 0.0
    %2687 = vmatpush1.msra.mxu0 0.0
    %2688 = vmatprep.subr.mxu0 0.0
    %2689 = vmatpush1.msra.mxu0 0.0
    %2690 = vmatprep.subr.mxu0 0.0
    %2691 = vmatpush1.msra.mxu0 0.0
    %2692 = vmatprep.subr.mxu0 0.0
    %2693 = vmatpush1.msra.mxu0 0.0
    %2694 = vmatprep.subr.mxu0 0.0
    %2695 = vmatpush1.msra.mxu0 0.0
    %2696 = vmatprep.subr.mxu0 0.0
    %2697 = vmatpush1.msra.mxu0 0.0
    %2698 = vmatprep.subr.mxu0 0.0
    %2699 = vmatpush1.msra.mxu0 0.0
    %2700 = vmatprep.subr.mxu0 0.0
    %2701 = vmatpush1.msra.mxu0 0.0
    %2702 = vmatprep.subr.mxu0 0.0
    %2703 = vmatpush1.msra.mxu0 %v2432
    %2704 = vmatprep.subr.mxu0 0.0
    %2705 = vmatpush2.msra.mxu0 0.0
    %2706 = vmatprep.subr.mxu0 0.0
    %2707 = vmatpush2.msra.mxu0 0.0
    %2708 = vmatprep.subr.mxu0 0.0
    %2709 = vmatpush2.msra.mxu0 0.0
    %2710 = vmatprep.subr.mxu0 0.0
    %2711 = vmatpush2.msra.mxu0 0.0
    %2712 = vmatprep.subr.mxu0 0.0
    %2713 = vmatpush2.msra.mxu0 0.0
    %2714 = vmatprep.subr.mxu0 0.0
    %2715 = vmatpush2.msra.mxu0 0.0
    %2716 = vmatprep.subr.mxu0 0.0
    %2717 = vmatpush2.msra.mxu0 0.0
    %2718 = vmatprep.subr.mxu0 0.0
    %2719 = vmatpush2.msra.mxu0 0.0
    %2720 = vmatprep.subr.mxu0 0.0
    %2721 = vmatpush2.msra.mxu0 0.0
    %2722 = vmatprep.subr.mxu0 0.0
    %2723 = vmatpush2.msra.mxu0 0.0
    %2724 = vmatprep.subr.mxu0 0.0
    %2725 = vmatpush2.msra.mxu0 0.0
    %2726 = vmatprep.subr.mxu0 0.0
    %2727 = vmatpush2.msra.mxu0 0.0
    %2728 = vmatprep.subr.mxu0 0.0
    %2729 = vmatpush2.msra.mxu0 0.0
    %2730 = vmatprep.subr.mxu0 0.0
    %2731 = vmatpush2.msra.mxu0 0.0
    %2732 = vmatprep.subr.mxu0 0.0
    %2733 = vmatpush2.msra.mxu0 0.0
    %2734 = vmatprep.subr.mxu0 0.0
    %2735 = vmatpush2.msra.mxu0 0.0
    %2736 = vmatprep.mubr.f32.mxu0 0.0
    %2737 = vmatmul.mubr.f32.gmra.mxu0 %v2670
    %v2738 = vpop.f32.mrf.mxu0
    %v2739 = vadd.f32 0.0, %v2738
    %v2740 = vpop.f32.mrf.mxu0
    %2741 = vdwg.mxu0
    %2742 = vmatprep.subr.mxu0 0.0
    %2743 = vmatpush1.xpose.msra.mxu0 0.0
    %2744 = vmatprep.subr.mxu0 0.0
    %2745 = vmatpush1.xpose.msra.mxu0 0.0
    %2746 = vmatprep.subr.mxu0 0.0
    %2747 = vmatpush1.xpose.msra.mxu0 0.0
    %2748 = vmatprep.subr.mxu0 0.0
    %2749 = vmatpush1.xpose.msra.mxu0 0.0
    %2750 = vmatprep.subr.mxu0 0.0
    %2751 = vmatpush1.xpose.msra.mxu0 0.0
    %2752 = vmatprep.subr.mxu0 0.0
    %2753 = vmatpush1.xpose.msra.mxu0 0.0
    %2754 = vmatprep.subr.mxu0 0.0
    %2755 = vmatpush1.xpose.msra.mxu0 0.0
    %2756 = vmatprep.subr.mxu0 0.0
    %2757 = vmatpush1.xpose.msra.mxu0 0.0
    %2758 = vmatprep.subr.mxu0 0.0
    %2759 = vmatpush1.xpose.msra.mxu0 0.0
    %2760 = vmatprep.subr.mxu0 0.0
    %2761 = vmatpush1.xpose.msra.mxu0 0.0
    %2762 = vmatprep.subr.mxu0 0.0
    %2763 = vmatpush1.xpose.msra.mxu0 0.0
    %2764 = vmatprep.subr.mxu0 0.0
    %2765 = vmatpush1.xpose.msra.mxu0 0.0
    %2766 = vmatprep.subr.mxu0 0.0
    %2767 = vmatpush1.xpose.msra.mxu0 0.0
    %2768 = vmatprep.subr.mxu0 0.0
    %2769 = vmatpush1.xpose.msra.mxu0 0.0
    %2770 = vmatprep.subr.mxu0 0.0
    %2771 = vmatpush1.xpose.msra.mxu0 0.0
    %2772 = vmatprep.subr.mxu0 0.0
    %2773 = vmatpush1.xpose.msra.mxu0 %v2425
    %2774 = vmatprep.subr.mxu0 0.0
    %2775 = vmatpush2.xpose.msra.mxu0 0.0
    %2776 = vmatprep.subr.mxu0 0.0
    %2777 = vmatpush2.xpose.msra.mxu0 0.0
    %2778 = vmatprep.subr.mxu0 0.0
    %2779 = vmatpush2.xpose.msra.mxu0 0.0
    %2780 = vmatprep.subr.mxu0 0.0
    %2781 = vmatpush2.xpose.msra.mxu0 0.0
    %2782 = vmatprep.subr.mxu0 0.0
    %2783 = vmatpush2.xpose.msra.mxu0 0.0
    %2784 = vmatprep.subr.mxu0 0.0
    %2785 = vmatpush2.xpose.msra.mxu0 0.0
    %2786 = vmatprep.subr.mxu0 0.0
    %2787 = vmatpush2.xpose.msra.mxu0 0.0
    %2788 = vmatprep.subr.mxu0 0.0
    %2789 = vmatpush2.xpose.msra.mxu0 0.0
    %2790 = vmatprep.subr.mxu0 0.0
    %2791 = vmatpush2.xpose.msra.mxu0 0.0
    %2792 = vmatprep.subr.mxu0 0.0
    %2793 = vmatpush2.xpose.msra.mxu0 0.0
    %2794 = vmatprep.subr.mxu0 0.0
    %2795 = vmatpush2.xpose.msra.mxu0 0.0
    %2796 = vmatprep.subr.mxu0 0.0
    %2797 = vmatpush2.xpose.msra.mxu0 0.0
    %2798 = vmatprep.subr.mxu0 0.0
    %2799 = vmatpush2.xpose.msra.mxu0 0.0
    %2800 = vmatprep.subr.mxu0 0.0
    %2801 = vmatpush2.xpose.msra.mxu0 0.0
    %2802 = vmatprep.subr.mxu0 0.0
    %2803 = vmatpush2.xpose.msra.mxu0 0.0
    %2804 = vmatprep.subr.mxu0 0.0
    %2805 = vmatpush2.xpose.msra.mxu0 0.0
    %2806 = vmatprep.mubr.f32.mxu0 0.0
    %2807 = vmatmul.mubr.f32.gmra.mxu0 %v2423
    %v2808 = vpop.f32.mrf.mxu0
    %v2809 = vadd.f32 %v631, %v2808
    %v2810 = vpop.f32.mrf.mxu0
    %2811 = vdwg.mxu0
    %2812 = vmatprep.subr.mxu0 0.0
    %2813 = vmatpush1.xpose.msra.mxu0 0.0
    %2814 = vmatprep.subr.mxu0 0.0
    %2815 = vmatpush1.xpose.msra.mxu0 0.0
    %2816 = vmatprep.subr.mxu0 0.0
    %2817 = vmatpush1.xpose.msra.mxu0 0.0
    %2818 = vmatprep.subr.mxu0 0.0
    %2819 = vmatpush1.xpose.msra.mxu0 0.0
    %2820 = vmatprep.subr.mxu0 0.0
    %2821 = vmatpush1.xpose.msra.mxu0 0.0
    %2822 = vmatprep.subr.mxu0 0.0
    %2823 = vmatpush1.xpose.msra.mxu0 0.0
    %2824 = vmatprep.subr.mxu0 0.0
    %2825 = vmatpush1.xpose.msra.mxu0 0.0
    %2826 = vmatprep.subr.mxu0 0.0
    %2827 = vmatpush1.xpose.msra.mxu0 0.0
    %2828 = vmatprep.subr.mxu0 0.0
    %2829 = vmatpush1.xpose.msra.mxu0 0.0
    %2830 = vmatprep.subr.mxu0 0.0
    %2831 = vmatpush1.xpose.msra.mxu0 0.0
    %2832 = vmatprep.subr.mxu0 0.0
    %2833 = vmatpush1.xpose.msra.mxu0 0.0
    %2834 = vmatprep.subr.mxu0 0.0
    %2835 = vmatpush1.xpose.msra.mxu0 0.0
    %2836 = vmatprep.subr.mxu0 0.0
    %2837 = vmatpush1.xpose.msra.mxu0 0.0
    %2838 = vmatprep.subr.mxu0 0.0
    %2839 = vmatpush1.xpose.msra.mxu0 0.0
    %2840 = vmatprep.subr.mxu0 0.0
    %2841 = vmatpush1.xpose.msra.mxu0 0.0
    %2842 = vmatprep.subr.mxu0 0.0
    %2843 = vmatpush1.xpose.msra.mxu0 %v2431
    %2844 = vmatprep.subr.mxu0 0.0
    %2845 = vmatpush2.xpose.msra.mxu0 0.0
    %2846 = vmatprep.subr.mxu0 0.0
    %2847 = vmatpush2.xpose.msra.mxu0 0.0
    %2848 = vmatprep.subr.mxu0 0.0
    %2849 = vmatpush2.xpose.msra.mxu0 0.0
    %2850 = vmatprep.subr.mxu0 0.0
    %2851 = vmatpush2.xpose.msra.mxu0 0.0
    %2852 = vmatprep.subr.mxu0 0.0
    %2853 = vmatpush2.xpose.msra.mxu0 0.0
    %2854 = vmatprep.subr.mxu0 0.0
    %2855 = vmatpush2.xpose.msra.mxu0 0.0
    %2856 = vmatprep.subr.mxu0 0.0
    %2857 = vmatpush2.xpose.msra.mxu0 0.0
    %2858 = vmatprep.subr.mxu0 0.0
    %2859 = vmatpush2.xpose.msra.mxu0 0.0
    %2860 = vmatprep.subr.mxu0 0.0
    %2861 = vmatpush2.xpose.msra.mxu0 0.0
    %2862 = vmatprep.subr.mxu0 0.0
    %2863 = vmatpush2.xpose.msra.mxu0 0.0
    %2864 = vmatprep.subr.mxu0 0.0
    %2865 = vmatpush2.xpose.msra.mxu0 0.0
    %2866 = vmatprep.subr.mxu0 0.0
    %2867 = vmatpush2.xpose.msra.mxu0 0.0
    %2868 = vmatprep.subr.mxu0 0.0
    %2869 = vmatpush2.xpose.msra.mxu0 0.0
    %2870 = vmatprep.subr.mxu0 0.0
    %2871 = vmatpush2.xpose.msra.mxu0 0.0
    %2872 = vmatprep.subr.mxu0 0.0
    %2873 = vmatpush2.xpose.msra.mxu0 0.0
    %2874 = vmatprep.subr.mxu0 0.0
    %2875 = vmatpush2.xpose.msra.mxu0 0.0
    %2876 = vmatprep.mubr.f32.mxu0 0.0
    %2877 = vmatmul.mubr.f32.gmra.mxu0 %v2429
    %v2878 = vpop.f32.mrf.mxu0
    %v2879 = vadd.f32 %v635, %v2878
    %v2880 = vpop.f32.mrf.mxu0
    %2881 = vdwg.mxu0
    %v2882 = vsel %vm778, %v2809, -inf
    %2883 = vmax.xlane.f32.xlu0 %v2882
    %v2884 = vpop.xlane.xlu0 %2883
    %v2885 = vsel %vm778, %v2879, -inf
    %2886 = vmax.xlane.f32.xlu0 %v2885
    %v2887 = vpop.xlane.xlu0 %2886
    %v2888 = vsub.f32 %v2809, %v2884
    %v2889 = vsub.f32 %v2879, %v2887
    %v2890 = vmul.f32 %v2888, 1.442695
    %v2891 = vpow.pop %v2890
    %v2892 = vmul.f32 %v2889, 1.442695
    %v2893 = vpow.pop %v2892
    %v2894 = vsel %vm778, %v2891, 0.0
    %2895 = vadd.xlane.f32.xlu0 %v2894
    %v2896 = vpop.xlane.xlu0 %2895
    %v2897 = vsel %vm778, %v2893, 0.0
    %2898 = vadd.xlane.f32.xlu0 %v2897
    %v2899 = vpop.xlane.xlu0 %2898
    %v2900 = vrcp.pop %v2896
    %v2901 = vrcp.pop %v2899
    %v2902 = vmul.f32 %v2891, %v2900
    %v2903 = vmul.f32 %v2893, %v2901
    %v2905 = vsel %vm778, %v2902, 0
    %2907 = vmatprep.subr.mxu0 0.0
    %2908 = vmatpush1.msra.mxu0 0.0
    %2909 = vmatprep.subr.mxu0 0.0
    %2910 = vmatpush1.msra.mxu0 0.0
    %2911 = vmatprep.subr.mxu0 0.0
    %2912 = vmatpush1.msra.mxu0 0.0
    %2913 = vmatprep.subr.mxu0 0.0
    %2914 = vmatpush1.msra.mxu0 0.0
    %2915 = vmatprep.subr.mxu0 0.0
    %2916 = vmatpush1.msra.mxu0 0.0
    %2917 = vmatprep.subr.mxu0 0.0
    %2918 = vmatpush1.msra.mxu0 0.0
    %2919 = vmatprep.subr.mxu0 0.0
    %2920 = vmatpush1.msra.mxu0 0.0
    %2921 = vmatprep.subr.mxu0 0.0
    %2922 = vmatpush1.msra.mxu0 0.0
    %2923 = vmatprep.subr.mxu0 0.0
    %2924 = vmatpush1.msra.mxu0 0.0
    %2925 = vmatprep.subr.mxu0 0.0
    %2926 = vmatpush1.msra.mxu0 0.0
    %2927 = vmatprep.subr.mxu0 0.0
    %2928 = vmatpush1.msra.mxu0 0.0
    %2929 = vmatprep.subr.mxu0 0.0
    %2930 = vmatpush1.msra.mxu0 0.0
    %2931 = vmatprep.subr.mxu0 0.0
    %2932 = vmatpush1.msra.mxu0 0.0
    %2933 = vmatprep.subr.mxu0 0.0
    %2934 = vmatpush1.msra.mxu0 0.0
    %2935 = vmatprep.subr.mxu0 0.0
    %2936 = vmatpush1.msra.mxu0 0.0
    %2937 = vmatprep.subr.mxu0 0.0
    %2938 = vmatpush1.msra.mxu0 %v2427
    %2939 = vmatprep.subr.mxu0 0.0
    %2940 = vmatpush2.msra.mxu0 0.0
    %2941 = vmatprep.subr.mxu0 0.0
    %2942 = vmatpush2.msra.mxu0 0.0
    %2943 = vmatprep.subr.mxu0 0.0
    %2944 = vmatpush2.msra.mxu0 0.0
    %2945 = vmatprep.subr.mxu0 0.0
    %2946 = vmatpush2.msra.mxu0 0.0
    %2947 = vmatprep.subr.mxu0 0.0
    %2948 = vmatpush2.msra.mxu0 0.0
    %2949 = vmatprep.subr.mxu0 0.0
    %2950 = vmatpush2.msra.mxu0 0.0
    %2951 = vmatprep.subr.mxu0 0.0
    %2952 = vmatpush2.msra.mxu0 0.0
    %2953 = vmatprep.subr.mxu0 0.0
    %2954 = vmatpush2.msra.mxu0 0.0
    %2955 = vmatprep.subr.mxu0 0.0
    %2956 = vmatpush2.msra.mxu0 0.0
    %2957 = vmatprep.subr.mxu0 0.0
    %2958 = vmatpush2.msra.mxu0 0.0
    %2959 = vmatprep.subr.mxu0 0.0
    %2960 = vmatpush2.msra.mxu0 0.0
    %2961 = vmatprep.subr.mxu0 0.0
    %2962 = vmatpush2.msra.mxu0 0.0
    %2963 = vmatprep.subr.mxu0 0.0
    %2964 = vmatpush2.msra.mxu0 0.0
    %2965 = vmatprep.subr.mxu0 0.0
    %2966 = vmatpush2.msra.mxu0 0.0
    %2967 = vmatprep.subr.mxu0 0.0
    %2968 = vmatpush2.msra.mxu0 0.0
    %2969 = vmatprep.subr.mxu0 0.0
    %2970 = vmatpush2.msra.mxu0 0.0
    %2971 = vmatprep.mubr.f32.mxu0 0.0
    %2972 = vmatmul.mubr.f32.gmra.mxu0 %v2905
    %v2973 = vpop.f32.mrf.mxu0
    %v2974 = vadd.f32 0.0, %v2973
    %v2975 = vpop.f32.mrf.mxu0
    %2976 = vdwg.mxu0
    %v2978 = vsel %vm778, %v2903, 0
    %2980 = vmatprep.subr.mxu0 0.0
    %2981 = vmatpush1.msra.mxu0 0.0
    %2982 = vmatprep.subr.mxu0 0.0
    %2983 = vmatpush1.msra.mxu0 0.0
    %2984 = vmatprep.subr.mxu0 0.0
    %2985 = vmatpush1.msra.mxu0 0.0
    %2986 = vmatprep.subr.mxu0 0.0
    %2987 = vmatpush1.msra.mxu0 0.0
    %2988 = vmatprep.subr.mxu0 0.0
    %2989 = vmatpush1.msra.mxu0 0.0
    %2990 = vmatprep.subr.mxu0 0.0
    %2991 = vmatpush1.msra.mxu0 0.0
    %2992 = vmatprep.subr.mxu0 0.0
    %2993 = vmatpush1.msra.mxu0 0.0
    %2994 = vmatprep.subr.mxu0 0.0
    %2995 = vmatpush1.msra.mxu0 0.0
    %2996 = vmatprep.subr.mxu0 0.0
    %2997 = vmatpush1.msra.mxu0 0.0
    %2998 = vmatprep.subr.mxu0 0.0
    %2999 = vmatpush1.msra.mxu0 0.0
    %3000 = vmatprep.subr.mxu0 0.0
    %3001 = vmatpush1.msra.mxu0 0.0
    %3002 = vmatprep.subr.mxu0 0.0
    %3003 = vmatpush1.msra.mxu0 0.0
    %3004 = vmatprep.subr.mxu0 0.0
    %3005 = vmatpush1.msra.mxu0 0.0
    %3006 = vmatprep.subr.mxu0 0.0
    %3007 = vmatpush1.msra.mxu0 0.0
    %3008 = vmatprep.subr.mxu0 0.0
    %3009 = vmatpush1.msra.mxu0 0.0
    %3010 = vmatprep.subr.mxu0 0.0
    %3011 = vmatpush1.msra.mxu0 %v2433
    %3012 = vmatprep.subr.mxu0 0.0
    %3013 = vmatpush2.msra.mxu0 0.0
    %3014 = vmatprep.subr.mxu0 0.0
    %3015 = vmatpush2.msra.mxu0 0.0
    %3016 = vmatprep.subr.mxu0 0.0
    %3017 = vmatpush2.msra.mxu0 0.0
    %3018 = vmatprep.subr.mxu0 0.0
    %3019 = vmatpush2.msra.mxu0 0.0
    %3020 = vmatprep.subr.mxu0 0.0
    %3021 = vmatpush2.msra.mxu0 0.0
    %3022 = vmatprep.subr.mxu0 0.0
    %3023 = vmatpush2.msra.mxu0 0.0
    %3024 = vmatprep.subr.mxu0 0.0
    %3025 = vmatpush2.msra.mxu0 0.0
    %3026 = vmatprep.subr.mxu0 0.0
    %3027 = vmatpush2.msra.mxu0 0.0
    %3028 = vmatprep.subr.mxu0 0.0
    %3029 = vmatpush2.msra.mxu0 0.0
    %3030 = vmatprep.subr.mxu0 0.0
    %3031 = vmatpush2.msra.mxu0 0.0
    %3032 = vmatprep.subr.mxu0 0.0
    %3033 = vmatpush2.msra.mxu0 0.0
    %3034 = vmatprep.subr.mxu0 0.0
    %3035 = vmatpush2.msra.mxu0 0.0
    %3036 = vmatprep.subr.mxu0 0.0
    %3037 = vmatpush2.msra.mxu0 0.0
    %3038 = vmatprep.subr.mxu0 0.0
    %3039 = vmatpush2.msra.mxu0 0.0
    %3040 = vmatprep.subr.mxu0 0.0
    %3041 = vmatpush2.msra.mxu0 0.0
    %3042 = vmatprep.subr.mxu0 0.0
    %3043 = vmatpush2.msra.mxu0 0.0
    %3044 = vmatprep.mubr.f32.mxu0 0.0
    %3045 = vmatmul.mubr.f32.gmra.mxu0 %v2978
    %v3046 = vpop.f32.mrf.mxu0
    %v3047 = vadd.f32 0.0, %v3046
    %v3048 = vpop.f32.mrf.mxu0
    %3049 = vdwg.mxu0
    %v3050 = vpack.c.bf16 %v2739, %v2666
    %v3051 = vpack.c.bf16 %v3047, %v2974
    %s3052 = scalar_lea.vmem [#allocation10], 128
    %v3053 = vld [vmem:[%s3052] sm:$0xff]
    %v3054 = vld [vmem:[%s3052 + $0x8] sm:$0xff]
    %v3055 = vld [vmem:[%s3052 + $0x10] sm:$0xff]
    %v3056 = vld [vmem:[%s3052 + $0x18] sm:$0xff]
    %v3057 = vld [vmem:[%s3052 + $0x20] sm:$0xff]
    %v3058 = vld [vmem:[%s3052 + $0x28] sm:$0xff]
    %v3059 = vld [vmem:[%s3052 + $0x30] sm:$0xff]
    %v3060 = vld [vmem:[%s3052 + $0x38] sm:$0xff]
    %v3061 = vld [vmem:[%s3052 + $0x40] sm:$0xff]
    %v3062 = vld [vmem:[%s3052 + $0x48] sm:$0xff]
    %v3063 = vld [vmem:[%s3052 + $0x50] sm:$0xff]
    %v3064 = vld [vmem:[%s3052 + $0x58] sm:$0xff]
    %v3065 = vld [vmem:[%s3052 + $0x60] sm:$0xff]
    %v3066 = vld [vmem:[%s3052 + $0x68] sm:$0xff]
    %v3067 = vld [vmem:[%s3052 + $0x70] sm:$0xff]
    %v3068 = vld [vmem:[%s3052 + $0x78] sm:$0xff]
    %v3069 = vunpack.c.l.s8.bf16 %v3053
    %v3070 = vunpack.c.l.s8.bf16 %v3054
    %v3071 = vunpack.c.h.s8.bf16 %v3053
    %v3072 = vunpack.c.h.s8.bf16 %v3054
    %v3073 = vunpack.c.l.s8.bf16 %v3055
    %v3074 = vunpack.c.l.s8.bf16 %v3056
    %v3075 = vunpack.c.h.s8.bf16 %v3055
    %v3076 = vunpack.c.h.s8.bf16 %v3056
    %v3077 = vunpack.c.l.s8.bf16 %v3057
    %v3078 = vunpack.c.l.s8.bf16 %v3058
    %v3079 = vunpack.c.h.s8.bf16 %v3057
    %v3080 = vunpack.c.h.s8.bf16 %v3058
    %v3081 = vunpack.c.l.s8.bf16 %v3059
    %v3082 = vunpack.c.l.s8.bf16 %v3060
    %v3083 = vunpack.c.h.s8.bf16 %v3059
    %v3084 = vunpack.c.h.s8.bf16 %v3060
    %v3085 = vunpack.c.l.s8.bf16 %v3061
    %v3086 = vunpack.c.l.s8.bf16 %v3062
    %v3087 = vunpack.c.h.s8.bf16 %v3061
    %v3088 = vunpack.c.h.s8.bf16 %v3062
    %v3089 = vunpack.c.l.s8.bf16 %v3063
    %v3090 = vunpack.c.l.s8.bf16 %v3064
    %v3091 = vunpack.c.h.s8.bf16 %v3063
    %v3092 = vunpack.c.h.s8.bf16 %v3064
    %v3093 = vunpack.c.l.s8.bf16 %v3065
    %v3094 = vunpack.c.l.s8.bf16 %v3066
    %v3095 = vunpack.c.h.s8.bf16 %v3065
    %v3096 = vunpack.c.h.s8.bf16 %v3066
    %v3097 = vunpack.c.l.s8.bf16 %v3067
    %v3098 = vunpack.c.l.s8.bf16 %v3068
    %v3099 = vunpack.c.h.s8.bf16 %v3067
    %v3100 = vunpack.c.h.s8.bf16 %v3068
    %3101 = vmatprep.subr.bf16.mxu0 %v3084
    %3102 = vmatpush1.bf16.msra.mxu0 %v3083
    %3103 = vmatprep.subr.bf16.mxu0 %v3082
    %3104 = vmatpush1.bf16.msra.mxu0 %v3081
    %3105 = vmatprep.subr.bf16.mxu0 %v3080
    %3106 = vmatpush1.bf16.msra.mxu0 %v3079
    %3107 = vmatprep.subr.bf16.mxu0 %v3078
    %3108 = vmatpush1.bf16.msra.mxu0 %v3077
    %3109 = vmatprep.subr.bf16.mxu0 %v3076
    %3110 = vmatpush1.bf16.msra.mxu0 %v3075
    %3111 = vmatprep.subr.bf16.mxu0 %v3074
    %3112 = vmatpush1.bf16.msra.mxu0 %v3073
    %3113 = vmatprep.subr.bf16.mxu0 %v3072
    %3114 = vmatpush1.bf16.msra.mxu0 %v3071
    %3115 = vmatprep.subr.bf16.mxu0 %v3070
    %3116 = vmatpush1.bf16.msra.mxu0 %v3069
    %3117 = vmatprep.subr.bf16.mxu0 %v3100
    %3118 = vmatpush2.bf16.msra.mxu0 %v3099
    %3119 = vmatprep.subr.bf16.mxu0 %v3098
    %3120 = vmatpush2.bf16.msra.mxu0 %v3097
    %3121 = vmatprep.subr.bf16.mxu0 %v3096
    %3122 = vmatpush2.bf16.msra.mxu0 %v3095
    %3123 = vmatprep.subr.bf16.mxu0 %v3094
    %3124 = vmatpush2.bf16.msra.mxu0 %v3093
    %3125 = vmatprep.subr.bf16.mxu0 %v3092
    %3126 = vmatpush2.bf16.msra.mxu0 %v3091
    %3127 = vmatprep.subr.bf16.mxu0 %v3090
    %3128 = vmatpush2.bf16.msra.mxu0 %v3089
    %3129 = vmatprep.subr.bf16.mxu0 %v3088
    %3130 = vmatpush2.bf16.msra.mxu0 %v3087
    %3131 = vmatprep.subr.bf16.mxu0 %v3086
    %3132 = vmatpush2.bf16.msra.mxu0 %v3085
    %3133 = vmatprep.mubr.bf16.mxu0 %v3051
    %3134 = vmatmul.mubr.bf16.gmra.mxu0 %v3050
    %v3135 = vpop.f32.mrf.mxu0
    %v3136 = vadd.f32 0.0, %v3135
    %v3137 = vpop.f32.mrf.mxu0
    %v3138 = vadd.f32 0.0, %v3137
    %v3139 = vpop.f32.mrf.mxu0
    %v3140 = vadd.f32 0.0, %v3139
    %v3141 = vpop.f32.mrf.mxu0
    %v3142 = vadd.f32 0.0, %v3141
    %3143 = vdwg.mxu0
    %v3145 = vlaneseq
    %v3146 = vshrl.u32 %v3145, 7
    %v3147 = vsub.s32 0, %v3146
    %v3148 = vrot.slane %v2055, %v3147
    %v3149 = vlaneseq
    %v3150 = vshrl.u32 %v3149, 7
    %v3151 = vsub.s32 1, %v3150
    %v3152 = vrot.slane %v2055, %v3151
    %v3155 = vmul.f32 %v3136, %v3148
    %v3156 = vmul.f32 %v3138, %v3152
    %v3157 = vmul.f32 %v3140, %v3148
    %v3158 = vmul.f32 %v3142, %v3152
    %v3160 = vlaneseq
    %v3161 = vshrl.u32 %v3160, 7
    %v3162 = vsub.s32 0, %v3161
    %v3163 = vrot.slane %v2053, %v3162
    %v3164 = vlaneseq
    %v3165 = vshrl.u32 %v3164, 7
    %v3166 = vsub.s32 1, %v3165
    %v3167 = vrot.slane %v2053, %v3166
    %v3170 = vadd.f32 %v3155, %v3163
    %v3171 = vadd.f32 %v3156, %v3167
    %v3172 = vadd.f32 %v3157, %v3163
    %v3173 = vadd.f32 %v3158, %v3167
    %v3174 = vadd.f32 %v2044, %v3170
    %v3175 = vadd.f32 %v2045, %v3171
    %v3176 = vadd.f32 %v2046, %v3172
    %v3177 = vadd.f32 %v2047, %v3173
    %v3178 = vadd.f32 %v3174, %v3175
    %3179 = vadd.xlane.f32.xlu0 %v3178
    %v3180 = vpop.xlane.xlu0 %3179
    %v3181 = vadd.f32 %v3176, %v3177
    %3182 = vadd.xlane.f32.xlu0 %v3181
    %v3183 = vpop.xlane.xlu0 %3182
    %v3184 = vmul.f32 %v3180, %v175
    %v3185 = vmul.f32 %v3183, %v175
    %v3186 = vmul.f32 %v3174, %v3174
    %v3187 = vmul.f32 %v3175, %v3175
    %v3188 = vmul.f32 %v3176, %v3176
    %v3189 = vmul.f32 %v3177, %v3177
    %v3190 = vadd.f32 %v3186, %v3187
    %3191 = vadd.xlane.f32.xlu0 %v3190
    %v3192 = vpop.xlane.xlu0 %3191
    %v3193 = vadd.f32 %v3188, %v3189
    %3194 = vadd.xlane.f32.xlu0 %v3193
    %v3195 = vpop.xlane.xlu0 %3194
    %v3196 = vmul.f32 %v3192, %v175
    %v3197 = vmul.f32 %v3195, %v175
    %v3198 = vmul.f32 %v3184, %v3184
    %v3199 = vmul.f32 %v3185, %v3185
    %v3200 = vsub.f32 %v3196, %v3198
    %v3201 = vsub.f32 %v3197, %v3199
    %v3202 = vsub.f32 %v3174, %v3184
    %v3203 = vsub.f32 %v3175, %v3184
    %v3204 = vsub.f32 %v3176, %v3185
    %v3205 = vsub.f32 %v3177, %v3185
    %v3206 = vadd.f32 %v3200, 1e-12
    %v3207 = vadd.f32 %v3201, 1e-12
    %v3208 = vrsqrt.pop %v3206
    %v3209 = vrsqrt.pop %v3207
    %v3210 = vmul.f32 %v3202, %v3208
    %v3211 = vmul.f32 %v3203, %v3208
    %v3212 = vmul.f32 %v3204, %v3209
    %v3213 = vmul.f32 %v3205, %v3209
    %v3215 = vlaneseq
    %v3216 = vshrl.u32 %v3215, 7
    %v3217 = vsub.s32 0, %v3216
    %v3218 = vrot.slane %v2057, %v3217
    %v3219 = vlaneseq
    %v3220 = vshrl.u32 %v3219, 7
    %v3221 = vsub.s32 1, %v3220
    %v3222 = vrot.slane %v2057, %v3221
    %v3225 = vmul.f32 %v3210, %v3218
    %v3226 = vmul.f32 %v3211, %v3222
    %v3227 = vmul.f32 %v3212, %v3218
    %v3228 = vmul.f32 %v3213, %v3222
    %v3230 = vlaneseq
    %v3231 = vshrl.u32 %v3230, 7
    %v3232 = vsub.s32 0, %v3231
    %v3233 = vrot.slane %v2059, %v3232
    %v3234 = vlaneseq
    %v3235 = vshrl.u32 %v3234, 7
    %v3236 = vsub.s32 1, %v3235
    %v3237 = vrot.slane %v2059, %v3236
    %v3240 = vadd.f32 %v3225, %v3233
    %v3241 = vadd.f32 %v3226, %v3237
    %v3242 = vadd.f32 %v3227, %v3233
    %v3243 = vadd.f32 %v3228, %v3237
    %v3244 = vpack.c.bf16 %v3242, %v3240
    %v3245 = vpack.c.bf16 %v3243, %v3241
    %s3246 = scalar_lea.vmem [#allocation11], 256
    %v3247 = vld [vmem:[%s3246] sm:$0xff]
    %v3248 = vld [vmem:[%s3246 + $0x8] sm:$0xff]
    %v3249 = vld [vmem:[%s3246 + $0x10] sm:$0xff]
    %v3250 = vld [vmem:[%s3246 + $0x18] sm:$0xff]
    %v3251 = vld [vmem:[%s3246 + $0x20] sm:$0xff]
    %v3252 = vld [vmem:[%s3246 + $0x28] sm:$0xff]
    %v3253 = vld [vmem:[%s3246 + $0x30] sm:$0xff]
    %v3254 = vld [vmem:[%s3246 + $0x38] sm:$0xff]
    %v3255 = vld [vmem:[%s3246 + $0x40] sm:$0xff]
    %v3256 = vld [vmem:[%s3246 + $0x48] sm:$0xff]
    %v3257 = vld [vmem:[%s3246 + $0x50] sm:$0xff]
    %v3258 = vld [vmem:[%s3246 + $0x58] sm:$0xff]
    %v3259 = vld [vmem:[%s3246 + $0x60] sm:$0xff]
    %v3260 = vld [vmem:[%s3246 + $0x68] sm:$0xff]
    %v3261 = vld [vmem:[%s3246 + $0x70] sm:$0xff]
    %v3262 = vld [vmem:[%s3246 + $0x78] sm:$0xff]
    %v3263 = vld [vmem:[%s3246 + $0x80] sm:$0xff]
    %v3264 = vld [vmem:[%s3246 + $0x88] sm:$0xff]
    %v3265 = vld [vmem:[%s3246 + $0x90] sm:$0xff]
    %v3266 = vld [vmem:[%s3246 + $0x98] sm:$0xff]
    %v3267 = vld [vmem:[%s3246 + $0xa0] sm:$0xff]
    %v3268 = vld [vmem:[%s3246 + $0xa8] sm:$0xff]
    %v3269 = vld [vmem:[%s3246 + $0xb0] sm:$0xff]
    %v3270 = vld [vmem:[%s3246 + $0xb8] sm:$0xff]
    %v3271 = vld [vmem:[%s3246 + $0xc0] sm:$0xff]
    %v3272 = vld [vmem:[%s3246 + $0xc8] sm:$0xff]
    %v3273 = vld [vmem:[%s3246 + $0xd0] sm:$0xff]
    %v3274 = vld [vmem:[%s3246 + $0xd8] sm:$0xff]
    %v3275 = vld [vmem:[%s3246 + $0xe0] sm:$0xff]
    %v3276 = vld [vmem:[%s3246 + $0xe8] sm:$0xff]
    %v3277 = vld [vmem:[%s3246 + $0xf0] sm:$0xff]
    %v3278 = vld [vmem:[%s3246 + $0xf8] sm:$0xff]
    %v3279 = vunpack.c.l.s8.bf16 %v3247
    %v3280 = vunpack.c.l.s8.bf16 %v3248
    %v3281 = vunpack.c.l.s8.bf16 %v3249
    %v3282 = vunpack.c.l.s8.bf16 %v3250
    %v3283 = vunpack.c.h.s8.bf16 %v3247
    %v3284 = vunpack.c.h.s8.bf16 %v3248
    %v3285 = vunpack.c.h.s8.bf16 %v3249
    %v3286 = vunpack.c.h.s8.bf16 %v3250
    %v3287 = vunpack.c.l.s8.bf16 %v3251
    %v3288 = vunpack.c.l.s8.bf16 %v3252
    %v3289 = vunpack.c.l.s8.bf16 %v3253
    %v3290 = vunpack.c.l.s8.bf16 %v3254
    %v3291 = vunpack.c.h.s8.bf16 %v3251
    %v3292 = vunpack.c.h.s8.bf16 %v3252
    %v3293 = vunpack.c.h.s8.bf16 %v3253
    %v3294 = vunpack.c.h.s8.bf16 %v3254
    %v3295 = vunpack.c.l.s8.bf16 %v3255
    %v3296 = vunpack.c.l.s8.bf16 %v3256
    %v3297 = vunpack.c.l.s8.bf16 %v3257
    %v3298 = vunpack.c.l.s8.bf16 %v3258
    %v3299 = vunpack.c.h.s8.bf16 %v3255
    %v3300 = vunpack.c.h.s8.bf16 %v3256
    %v3301 = vunpack.c.h.s8.bf16 %v3257
    %v3302 = vunpack.c.h.s8.bf16 %v3258
    %v3303 = vunpack.c.l.s8.bf16 %v3259
    %v3304 = vunpack.c.l.s8.bf16 %v3260
    %v3305 = vunpack.c.l.s8.bf16 %v3261
    %v3306 = vunpack.c.l.s8.bf16 %v3262
    %v3307 = vunpack.c.h.s8.bf16 %v3259
    %v3308 = vunpack.c.h.s8.bf16 %v3260
    %v3309 = vunpack.c.h.s8.bf16 %v3261
    %v3310 = vunpack.c.h.s8.bf16 %v3262
    %v3311 = vunpack.c.l.s8.bf16 %v3263
    %v3312 = vunpack.c.l.s8.bf16 %v3264
    %v3313 = vunpack.c.l.s8.bf16 %v3265
    %v3314 = vunpack.c.l.s8.bf16 %v3266
    %v3315 = vunpack.c.h.s8.bf16 %v3263
    %v3316 = vunpack.c.h.s8.bf16 %v3264
    %v3317 = vunpack.c.h.s8.bf16 %v3265
    %v3318 = vunpack.c.h.s8.bf16 %v3266
    %v3319 = vunpack.c.l.s8.bf16 %v3267
    %v3320 = vunpack.c.l.s8.bf16 %v3268
    %v3321 = vunpack.c.l.s8.bf16 %v3269
    %v3322 = vunpack.c.l.s8.bf16 %v3270
    %v3323 = vunpack.c.h.s8.bf16 %v3267
    %v3324 = vunpack.c.h.s8.bf16 %v3268
    %v3325 = vunpack.c.h.s8.bf16 %v3269
    %v3326 = vunpack.c.h.s8.bf16 %v3270
    %v3327 = vunpack.c.l.s8.bf16 %v3271
    %v3328 = vunpack.c.l.s8.bf16 %v3272
    %v3329 = vunpack.c.l.s8.bf16 %v3273
    %v3330 = vunpack.c.l.s8.bf16 %v3274
    %v3331 = vunpack.c.h.s8.bf16 %v3271
    %v3332 = vunpack.c.h.s8.bf16 %v3272
    %v3333 = vunpack.c.h.s8.bf16 %v3273
    %v3334 = vunpack.c.h.s8.bf16 %v3274
    %v3335 = vunpack.c.l.s8.bf16 %v3275
    %v3336 = vunpack.c.l.s8.bf16 %v3276
    %v3337 = vunpack.c.l.s8.bf16 %v3277
    %v3338 = vunpack.c.l.s8.bf16 %v3278
    %v3339 = vunpack.c.h.s8.bf16 %v3275
    %v3340 = vunpack.c.h.s8.bf16 %v3276
    %v3341 = vunpack.c.h.s8.bf16 %v3277
    %v3342 = vunpack.c.h.s8.bf16 %v3278
    %3343 = vmatprep.subr.bf16.mxu0 %v3308
    %3344 = vmatpush1.bf16.msra.mxu0 %v3307
    %3345 = vmatprep.subr.bf16.mxu0 %v3304
    %3346 = vmatpush1.bf16.msra.mxu0 %v3303
    %3347 = vmatprep.subr.bf16.mxu0 %v3300
    %3348 = vmatpush1.bf16.msra.mxu0 %v3299
    %3349 = vmatprep.subr.bf16.mxu0 %v3296
    %3350 = vmatpush1.bf16.msra.mxu0 %v3295
    %3351 = vmatprep.subr.bf16.mxu0 %v3292
    %3352 = vmatpush1.bf16.msra.mxu0 %v3291
    %3353 = vmatprep.subr.bf16.mxu0 %v3288
    %3354 = vmatpush1.bf16.msra.mxu0 %v3287
    %3355 = vmatprep.subr.bf16.mxu0 %v3284
    %3356 = vmatpush1.bf16.msra.mxu0 %v3283
    %3357 = vmatprep.subr.bf16.mxu0 %v3280
    %3358 = vmatpush1.bf16.msra.mxu0 %v3279
    %3359 = vmatprep.subr.bf16.mxu0 %v3340
    %3360 = vmatpush2.bf16.msra.mxu0 %v3339
    %3361 = vmatprep.subr.bf16.mxu0 %v3336
    %3362 = vmatpush2.bf16.msra.mxu0 %v3335
    %3363 = vmatprep.subr.bf16.mxu0 %v3332
    %3364 = vmatpush2.bf16.msra.mxu0 %v3331
    %3365 = vmatprep.subr.bf16.mxu0 %v3328
    %3366 = vmatpush2.bf16.msra.mxu0 %v3327
    %3367 = vmatprep.subr.bf16.mxu0 %v3324
    %3368 = vmatpush2.bf16.msra.mxu0 %v3323
    %3369 = vmatprep.subr.bf16.mxu0 %v3320
    %3370 = vmatpush2.bf16.msra.mxu0 %v3319
    %3371 = vmatprep.subr.bf16.mxu0 %v3316
    %3372 = vmatpush2.bf16.msra.mxu0 %v3315
    %3373 = vmatprep.subr.bf16.mxu0 %v3312
    %3374 = vmatpush2.bf16.msra.mxu0 %v3311
    %3375 = vmatprep.mubr.bf16.mxu0 %v3245
    %3376 = vmatmul.mubr.bf16.gmra.mxu0 %v3244
    %v3377 = vpop.f32.mrf.mxu0
    %v3378 = vadd.f32 0.0, %v3377
    %v3379 = vpop.f32.mrf.mxu0
    %v3380 = vadd.f32 0.0, %v3379
    %v3381 = vpop.f32.mrf.mxu0
    %v3382 = vadd.f32 0.0, %v3381
    %v3383 = vpop.f32.mrf.mxu0
    %v3384 = vadd.f32 0.0, %v3383
    %3385 = vdwg.mxu0
    %3386 = vmatprep.subr.bf16.mxu0 %v3310
    %3387 = vmatpush1.bf16.msra.mxu0 %v3309
    %3388 = vmatprep.subr.bf16.mxu0 %v3306
    %3389 = vmatpush1.bf16.msra.mxu0 %v3305
    %3390 = vmatprep.subr.bf16.mxu0 %v3302
    %3391 = vmatpush1.bf16.msra.mxu0 %v3301
    %3392 = vmatprep.subr.bf16.mxu0 %v3298
    %3393 = vmatpush1.bf16.msra.mxu0 %v3297
    %3394 = vmatprep.subr.bf16.mxu0 %v3294
    %3395 = vmatpush1.bf16.msra.mxu0 %v3293
    %3396 = vmatprep.subr.bf16.mxu0 %v3290
    %3397 = vmatpush1.bf16.msra.mxu0 %v3289
    %3398 = vmatprep.subr.bf16.mxu0 %v3286
    %3399 = vmatpush1.bf16.msra.mxu0 %v3285
    %3400 = vmatprep.subr.bf16.mxu0 %v3282
    %3401 = vmatpush1.bf16.msra.mxu0 %v3281
    %3402 = vmatprep.subr.bf16.mxu0 %v3342
    %3403 = vmatpush2.bf16.msra.mxu0 %v3341
    %3404 = vmatprep.subr.bf16.mxu0 %v3338
    %3405 = vmatpush2.bf16.msra.mxu0 %v3337
    %3406 = vmatprep.subr.bf16.mxu0 %v3334
    %3407 = vmatpush2.bf16.msra.mxu0 %v3333
    %3408 = vmatprep.subr.bf16.mxu0 %v3330
    %3409 = vmatpush2.bf16.msra.mxu0 %v3329
    %3410 = vmatprep.subr.bf16.mxu0 %v3326
    %3411 = vmatpush2.bf16.msra.mxu0 %v3325
    %3412 = vmatprep.subr.bf16.mxu0 %v3322
    %3413 = vmatpush2.bf16.msra.mxu0 %v3321
    %3414 = vmatprep.subr.bf16.mxu0 %v3318
    %3415 = vmatpush2.bf16.msra.mxu0 %v3317
    %3416 = vmatprep.subr.bf16.mxu0 %v3314
    %3417 = vmatpush2.bf16.msra.mxu0 %v3313
    %3418 = vmatprep.mubr.bf16.mxu0 %v3245
    %3419 = vmatmul.mubr.bf16.gmra.mxu0 %v3244
    %v3420 = vpop.f32.mrf.mxu0
    %v3421 = vadd.f32 0.0, %v3420
    %v3422 = vpop.f32.mrf.mxu0
    %v3423 = vadd.f32 0.0, %v3422
    %v3424 = vpop.f32.mrf.mxu0
    %v3425 = vadd.f32 0.0, %v3424
    %v3426 = vpop.f32.mrf.mxu0
    %v3427 = vadd.f32 0.0, %v3426
    %3428 = vdwg.mxu0
    %v3430 = vlaneseq
    %v3431 = vshrl.u32 %v3430, 7
    %v3432 = vsub.s32 0, %v3431
    %v3433 = vrot.slane %v2063, %v3432
    %v3434 = vlaneseq
    %v3435 = vshrl.u32 %v3434, 7
    %v3436 = vsub.s32 1, %v3435
    %v3437 = vrot.slane %v2063, %v3436
    %v3438 = vlaneseq
    %v3439 = vshrl.u32 %v3438, 7
    %v3440 = vsub.s32 2, %v3439
    %v3441 = vrot.slane %v2063, %v3440
    %v3442 = vlaneseq
    %v3443 = vshrl.u32 %v3442, 7
    %v3444 = vsub.s32 3, %v3443
    %v3445 = vrot.slane %v2063, %v3444
    %v3450 = vmul.f32 %v3378, %v3433
    %v3451 = vmul.f32 %v3380, %v3437
    %v3452 = vmul.f32 %v3421, %v3441
    %v3453 = vmul.f32 %v3423, %v3445
    %v3454 = vmul.f32 %v3382, %v3433
    %v3455 = vmul.f32 %v3384, %v3437
    %v3456 = vmul.f32 %v3425, %v3441
    %v3457 = vmul.f32 %v3427, %v3445
    %v3459 = vlaneseq
    %v3460 = vshrl.u32 %v3459, 7
    %v3461 = vsub.s32 0, %v3460
    %v3462 = vrot.slane %v2061, %v3461
    %v3463 = vlaneseq
    %v3464 = vshrl.u32 %v3463, 7
    %v3465 = vsub.s32 1, %v3464
    %v3466 = vrot.slane %v2061, %v3465
    %v3467 = vlaneseq
    %v3468 = vshrl.u32 %v3467, 7
    %v3469 = vsub.s32 2, %v3468
    %v3470 = vrot.slane %v2061, %v3469
    %v3471 = vlaneseq
    %v3472 = vshrl.u32 %v3471, 7
    %v3473 = vsub.s32 3, %v3472
    %v3474 = vrot.slane %v2061, %v3473
    %v3479 = vadd.f32 %v3450, %v3462
    %v3480 = vadd.f32 %v3451, %v3466
    %v3481 = vadd.f32 %v3452, %v3470
    %v3482 = vadd.f32 %v3453, %v3474
    %v3483 = vadd.f32 %v3454, %v3462
    %v3484 = vadd.f32 %v3455, %v3466
    %v3485 = vadd.f32 %v3456, %v3470
    %v3486 = vadd.f32 %v3457, %v3474
    %v3487 = vmul.f32 %v3479, %v3479
    %v3488 = vmul.f32 %v3480, %v3480
    %v3489 = vmul.f32 %v3481, %v3481
    %v3490 = vmul.f32 %v3482, %v3482
    %v3491 = vmul.f32 %v3483, %v3483
    %v3492 = vmul.f32 %v3484, %v3484
    %v3493 = vmul.f32 %v3485, %v3485
    %v3494 = vmul.f32 %v3486, %v3486
    %v3495 = vmul.f32 %v3479, %v3487
    %v3496 = vmul.f32 %v3480, %v3488
    %v3497 = vmul.f32 %v3481, %v3489
    %v3498 = vmul.f32 %v3482, %v3490
    %v3499 = vmul.f32 %v3483, %v3491
    %v3500 = vmul.f32 %v3484, %v3492
    %v3501 = vmul.f32 %v3485, %v3493
    %v3502 = vmul.f32 %v3486, %v3494
    %v3503 = vmul.f32 %v3495, 0.044715
    %v3504 = vmul.f32 %v3496, 0.044715
    %v3505 = vmul.f32 %v3497, 0.044715
    %v3506 = vmul.f32 %v3498, 0.044715
    %v3507 = vmul.f32 %v3499, 0.044715
    %v3508 = vmul.f32 %v3500, 0.044715
    %v3509 = vmul.f32 %v3501, 0.044715
    %v3510 = vmul.f32 %v3502, 0.044715
    %v3511 = vadd.f32 %v3479, %v3503
    %v3512 = vadd.f32 %v3480, %v3504
    %v3513 = vadd.f32 %v3481, %v3505
    %v3514 = vadd.f32 %v3482, %v3506
    %v3515 = vadd.f32 %v3483, %v3507
    %v3516 = vadd.f32 %v3484, %v3508
    %v3517 = vadd.f32 %v3485, %v3509
    %v3518 = vadd.f32 %v3486, %v3510
    %v3519 = vmul.f32 %v3511, 0.7978846
    %v3520 = vmul.f32 %v3512, 0.7978846
    %v3521 = vmul.f32 %v3513, 0.7978846
    %v3522 = vmul.f32 %v3514, 0.7978846
    %v3523 = vmul.f32 %v3515, 0.7978846
    %v3524 = vmul.f32 %v3516, 0.7978846
    %v3525 = vmul.f32 %v3517, 0.7978846
    %v3526 = vmul.f32 %v3518, 0.7978846
    %v3527 = vtanh.pop %v3519
    %v3528 = vtanh.pop %v3520
    %v3529 = vtanh.pop %v3521
    %v3530 = vtanh.pop %v3522
    %v3531 = vtanh.pop %v3523
    %v3532 = vtanh.pop %v3524
    %v3533 = vtanh.pop %v3525
    %v3534 = vtanh.pop %v3526
    %v3535 = vadd.f32 %v3527, 1.0
    %v3536 = vadd.f32 %v3528, 1.0
    %v3537 = vadd.f32 %v3529, 1.0
    %v3538 = vadd.f32 %v3530, 1.0
    %v3539 = vadd.f32 %v3531, 1.0
    %v3540 = vadd.f32 %v3532, 1.0
    %v3541 = vadd.f32 %v3533, 1.0
    %v3542 = vadd.f32 %v3534, 1.0
    %v3543 = vmul.f32 %v3535, 0.5
    %v3544 = vmul.f32 %v3536, 0.5
    %v3545 = vmul.f32 %v3537, 0.5
    %v3546 = vmul.f32 %v3538, 0.5
    %v3547 = vmul.f32 %v3539, 0.5
    %v3548 = vmul.f32 %v3540, 0.5
    %v3549 = vmul.f32 %v3541, 0.5
    %v3550 = vmul.f32 %v3542, 0.5
    %v3551 = vmul.f32 %v3479, %v3543
    %v3552 = vmul.f32 %v3480, %v3544
    %v3553 = vmul.f32 %v3481, %v3545
    %v3554 = vmul.f32 %v3482, %v3546
    %v3555 = vmul.f32 %v3483, %v3547
    %v3556 = vmul.f32 %v3484, %v3548
    %v3557 = vmul.f32 %v3485, %v3549
    %v3558 = vmul.f32 %v3486, %v3550
    %v3559 = vpack.c.bf16 %v3555, %v3551
    %v3560 = vpack.c.bf16 %v3556, %v3552
    %v3561 = vpack.c.bf16 %v3557, %v3553
    %v3562 = vpack.c.bf16 %v3558, %v3554
    %s3563 = scalar_lea.vmem [#allocation13], 256
    %v3564 = vld [vmem:[%s3563] sm:$0xff]
    %v3565 = vld [vmem:[%s3563 + $0x8] sm:$0xff]
    %v3566 = vld [vmem:[%s3563 + $0x10] sm:$0xff]
    %v3567 = vld [vmem:[%s3563 + $0x18] sm:$0xff]
    %v3568 = vld [vmem:[%s3563 + $0x20] sm:$0xff]
    %v3569 = vld [vmem:[%s3563 + $0x28] sm:$0xff]
    %v3570 = vld [vmem:[%s3563 + $0x30] sm:$0xff]
    %v3571 = vld [vmem:[%s3563 + $0x38] sm:$0xff]
    %v3572 = vld [vmem:[%s3563 + $0x40] sm:$0xff]
    %v3573 = vld [vmem:[%s3563 + $0x48] sm:$0xff]
    %v3574 = vld [vmem:[%s3563 + $0x50] sm:$0xff]
    %v3575 = vld [vmem:[%s3563 + $0x58] sm:$0xff]
    %v3576 = vld [vmem:[%s3563 + $0x60] sm:$0xff]
    %v3577 = vld [vmem:[%s3563 + $0x68] sm:$0xff]
    %v3578 = vld [vmem:[%s3563 + $0x70] sm:$0xff]
    %v3579 = vld [vmem:[%s3563 + $0x78] sm:$0xff]
    %v3580 = vld [vmem:[%s3563 + $0x80] sm:$0xff]
    %v3581 = vld [vmem:[%s3563 + $0x88] sm:$0xff]
    %v3582 = vld [vmem:[%s3563 + $0x90] sm:$0xff]
    %v3583 = vld [vmem:[%s3563 + $0x98] sm:$0xff]
    %v3584 = vld [vmem:[%s3563 + $0xa0] sm:$0xff]
    %v3585 = vld [vmem:[%s3563 + $0xa8] sm:$0xff]
    %v3586 = vld [vmem:[%s3563 + $0xb0] sm:$0xff]
    %v3587 = vld [vmem:[%s3563 + $0xb8] sm:$0xff]
    %v3588 = vld [vmem:[%s3563 + $0xc0] sm:$0xff]
    %v3589 = vld [vmem:[%s3563 + $0xc8] sm:$0xff]
    %v3590 = vld [vmem:[%s3563 + $0xd0] sm:$0xff]
    %v3591 = vld [vmem:[%s3563 + $0xd8] sm:$0xff]
    %v3592 = vld [vmem:[%s3563 + $0xe0] sm:$0xff]
    %v3593 = vld [vmem:[%s3563 + $0xe8] sm:$0xff]
    %v3594 = vld [vmem:[%s3563 + $0xf0] sm:$0xff]
    %v3595 = vld [vmem:[%s3563 + $0xf8] sm:$0xff]
    %v3596 = vunpack.c.l.s8.bf16 %v3564
    %v3597 = vunpack.c.l.s8.bf16 %v3565
    %v3598 = vunpack.c.h.s8.bf16 %v3564
    %v3599 = vunpack.c.h.s8.bf16 %v3565
    %v3600 = vunpack.c.l.s8.bf16 %v3566
    %v3601 = vunpack.c.l.s8.bf16 %v3567
    %v3602 = vunpack.c.h.s8.bf16 %v3566
    %v3603 = vunpack.c.h.s8.bf16 %v3567
    %v3604 = vunpack.c.l.s8.bf16 %v3568
    %v3605 = vunpack.c.l.s8.bf16 %v3569
    %v3606 = vunpack.c.h.s8.bf16 %v3568
    %v3607 = vunpack.c.h.s8.bf16 %v3569
    %v3608 = vunpack.c.l.s8.bf16 %v3570
    %v3609 = vunpack.c.l.s8.bf16 %v3571
    %v3610 = vunpack.c.h.s8.bf16 %v3570
    %v3611 = vunpack.c.h.s8.bf16 %v3571
    %v3612 = vunpack.c.l.s8.bf16 %v3572
    %v3613 = vunpack.c.l.s8.bf16 %v3573
    %v3614 = vunpack.c.h.s8.bf16 %v3572
    %v3615 = vunpack.c.h.s8.bf16 %v3573
    %v3616 = vunpack.c.l.s8.bf16 %v3574
    %v3617 = vunpack.c.l.s8.bf16 %v3575
    %v3618 = vunpack.c.h.s8.bf16 %v3574
    %v3619 = vunpack.c.h.s8.bf16 %v3575
    %v3620 = vunpack.c.l.s8.bf16 %v3576
    %v3621 = vunpack.c.l.s8.bf16 %v3577
    %v3622 = vunpack.c.h.s8.bf16 %v3576
    %v3623 = vunpack.c.h.s8.bf16 %v3577
    %v3624 = vunpack.c.l.s8.bf16 %v3578
    %v3625 = vunpack.c.l.s8.bf16 %v3579
    %v3626 = vunpack.c.h.s8.bf16 %v3578
    %v3627 = vunpack.c.h.s8.bf16 %v3579
    %v3628 = vunpack.c.l.s8.bf16 %v3580
    %v3629 = vunpack.c.l.s8.bf16 %v3581
    %v3630 = vunpack.c.h.s8.bf16 %v3580
    %v3631 = vunpack.c.h.s8.bf16 %v3581
    %v3632 = vunpack.c.l.s8.bf16 %v3582
    %v3633 = vunpack.c.l.s8.bf16 %v3583
    %v3634 = vunpack.c.h.s8.bf16 %v3582
    %v3635 = vunpack.c.h.s8.bf16 %v3583
    %v3636 = vunpack.c.l.s8.bf16 %v3584
    %v3637 = vunpack.c.l.s8.bf16 %v3585
    %v3638 = vunpack.c.h.s8.bf16 %v3584
    %v3639 = vunpack.c.h.s8.bf16 %v3585
    %v3640 = vunpack.c.l.s8.bf16 %v3586
    %v3641 = vunpack.c.l.s8.bf16 %v3587
    %v3642 = vunpack.c.h.s8.bf16 %v3586
    %v3643 = vunpack.c.h.s8.bf16 %v3587
    %v3644 = vunpack.c.l.s8.bf16 %v3588
    %v3645 = vunpack.c.l.s8.bf16 %v3589
    %v3646 = vunpack.c.h.s8.bf16 %v3588
    %v3647 = vunpack.c.h.s8.bf16 %v3589
    %v3648 = vunpack.c.l.s8.bf16 %v3590
    %v3649 = vunpack.c.l.s8.bf16 %v3591
    %v3650 = vunpack.c.h.s8.bf16 %v3590
    %v3651 = vunpack.c.h.s8.bf16 %v3591
    %v3652 = vunpack.c.l.s8.bf16 %v3592
    %v3653 = vunpack.c.l.s8.bf16 %v3593
    %v3654 = vunpack.c.h.s8.bf16 %v3592
    %v3655 = vunpack.c.h.s8.bf16 %v3593
    %v3656 = vunpack.c.l.s8.bf16 %v3594
    %v3657 = vunpack.c.l.s8.bf16 %v3595
    %v3658 = vunpack.c.h.s8.bf16 %v3594
    %v3659 = vunpack.c.h.s8.bf16 %v3595
    %3660 = vmatprep.subr.bf16.mxu0 %v3611
    %3661 = vmatpush1.bf16.msra.mxu0 %v3610
    %3662 = vmatprep.subr.bf16.mxu0 %v3609
    %3663 = vmatpush1.bf16.msra.mxu0 %v3608
    %3664 = vmatprep.subr.bf16.mxu0 %v3607
    %3665 = vmatpush1.bf16.msra.mxu0 %v3606
    %3666 = vmatprep.subr.bf16.mxu0 %v3605
    %3667 = vmatpush1.bf16.msra.mxu0 %v3604
    %3668 = vmatprep.subr.bf16.mxu0 %v3603
    %3669 = vmatpush1.bf16.msra.mxu0 %v3602
    %3670 = vmatprep.subr.bf16.mxu0 %v3601
    %3671 = vmatpush1.bf16.msra.mxu0 %v3600
    %3672 = vmatprep.subr.bf16.mxu0 %v3599
    %3673 = vmatpush1.bf16.msra.mxu0 %v3598
    %3674 = vmatprep.subr.bf16.mxu0 %v3597
    %3675 = vmatpush1.bf16.msra.mxu0 %v3596
    %3676 = vmatprep.subr.bf16.mxu0 %v3627
    %3677 = vmatpush2.bf16.msra.mxu0 %v3626
    %3678 = vmatprep.subr.bf16.mxu0 %v3625
    %3679 = vmatpush2.bf16.msra.mxu0 %v3624
    %3680 = vmatprep.subr.bf16.mxu0 %v3623
    %3681 = vmatpush2.bf16.msra.mxu0 %v3622
    %3682 = vmatprep.subr.bf16.mxu0 %v3621
    %3683 = vmatpush2.bf16.msra.mxu0 %v3620
    %3684 = vmatprep.subr.bf16.mxu0 %v3619
    %3685 = vmatpush2.bf16.msra.mxu0 %v3618
    %3686 = vmatprep.subr.bf16.mxu0 %v3617
    %3687 = vmatpush2.bf16.msra.mxu0 %v3616
    %3688 = vmatprep.subr.bf16.mxu0 %v3615
    %3689 = vmatpush2.bf16.msra.mxu0 %v3614
    %3690 = vmatprep.subr.bf16.mxu0 %v3613
    %3691 = vmatpush2.bf16.msra.mxu0 %v3612
    %3692 = vmatprep.mubr.bf16.mxu0 %v3560
    %3693 = vmatmul.mubr.bf16.gmra.mxu0 %v3559
    %v3694 = vpop.f32.mrf.mxu0
    %v3695 = vadd.f32 0.0, %v3694
    %v3696 = vpop.f32.mrf.mxu0
    %v3697 = vadd.f32 0.0, %v3696
    %v3698 = vpop.f32.mrf.mxu0
    %v3699 = vadd.f32 0.0, %v3698
    %v3700 = vpop.f32.mrf.mxu0
    %v3701 = vadd.f32 0.0, %v3700
    %3702 = vdwg.mxu0
    %3703 = vmatprep.subr.bf16.mxu0 %v3643
    %3704 = vmatpush1.bf16.msra.mxu0 %v3642
    %3705 = vmatprep.subr.bf16.mxu0 %v3641
    %3706 = vmatpush1.bf16.msra.mxu0 %v3640
    %3707 = vmatprep.subr.bf16.mxu0 %v3639
    %3708 = vmatpush1.bf16.msra.mxu0 %v3638
    %3709 = vmatprep.subr.bf16.mxu0 %v3637
    %3710 = vmatpush1.bf16.msra.mxu0 %v3636
    %3711 = vmatprep.subr.bf16.mxu0 %v3635
    %3712 = vmatpush1.bf16.msra.mxu0 %v3634
    %3713 = vmatprep.subr.bf16.mxu0 %v3633
    %3714 = vmatpush1.bf16.msra.mxu0 %v3632
    %3715 = vmatprep.subr.bf16.mxu0 %v3631
    %3716 = vmatpush1.bf16.msra.mxu0 %v3630
    %3717 = vmatprep.subr.bf16.mxu0 %v3629
    %3718 = vmatpush1.bf16.msra.mxu0 %v3628
    %3719 = vmatprep.subr.bf16.mxu0 %v3659
    %3720 = vmatpush2.bf16.msra.mxu0 %v3658
    %3721 = vmatprep.subr.bf16.mxu0 %v3657
    %3722 = vmatpush2.bf16.msra.mxu0 %v3656
    %3723 = vmatprep.subr.bf16.mxu0 %v3655
    %3724 = vmatpush2.bf16.msra.mxu0 %v3654
    %3725 = vmatprep.subr.bf16.mxu0 %v3653
    %3726 = vmatpush2.bf16.msra.mxu0 %v3652
    %3727 = vmatprep.subr.bf16.mxu0 %v3651
    %3728 = vmatpush2.bf16.msra.mxu0 %v3650
    %3729 = vmatprep.subr.bf16.mxu0 %v3649
    %3730 = vmatpush2.bf16.msra.mxu0 %v3648
    %3731 = vmatprep.subr.bf16.mxu0 %v3647
    %3732 = vmatpush2.bf16.msra.mxu0 %v3646
    %3733 = vmatprep.subr.bf16.mxu0 %v3645
    %3734 = vmatpush2.bf16.msra.mxu0 %v3644
    %3735 = vmatprep.mubr.bf16.mxu0 %v3562
    %3736 = vmatmul.mubr.bf16.gmra.mxu0 %v3561
    %v3737 = vpop.f32.mrf.mxu0
    %v3738 = vadd.f32 %v3695, %v3737
    %v3739 = vpop.f32.mrf.mxu0
    %v3740 = vadd.f32 %v3697, %v3739
    %v3741 = vpop.f32.mrf.mxu0
    %v3742 = vadd.f32 %v3699, %v3741
    %v3743 = vpop.f32.mrf.mxu0
    %v3744 = vadd.f32 %v3701, %v3743
    %3745 = vdwg.mxu0
    %v3747 = vlaneseq
    %v3748 = vshrl.u32 %v3747, 7
    %v3749 = vsub.s32 0, %v3748
    %v3750 = vrot.slane %v2067, %v3749
    %v3751 = vlaneseq
    %v3752 = vshrl.u32 %v3751, 7
    %v3753 = vsub.s32 1, %v3752
    %v3754 = vrot.slane %v2067, %v3753
    %v3757 = vmul.f32 %v3738, %v3750
    %v3758 = vmul.f32 %v3740, %v3754
    %v3759 = vmul.f32 %v3742, %v3750
    %v3760 = vmul.f32 %v3744, %v3754
    %v3762 = vlaneseq
    %v3763 = vshrl.u32 %v3762, 7
    %v3764 = vsub.s32 0, %v3763
    %v3765 = vrot.slane %v2065, %v3764
    %v3766 = vlaneseq
    %v3767 = vshrl.u32 %v3766, 7
    %v3768 = vsub.s32 1, %v3767
    %v3769 = vrot.slane %v2065, %v3768
    %v3772 = vadd.f32 %v3757, %v3765
    %v3773 = vadd.f32 %v3758, %v3769
    %v3774 = vadd.f32 %v3759, %v3765
    %v3775 = vadd.f32 %v3760, %v3769
    %v3776 = vadd.f32 %v3240, %v3772
    %v3777 = vadd.f32 %v3241, %v3773
    %v3778 = vadd.f32 %v3242, %v3774
    %v3779 = vadd.f32 %v3243, %v3775
    %v3780 = vadd.f32 %v3776, %v3777
    %3781 = vadd.xlane.f32.xlu0 %v3780
    %v3782 = vpop.xlane.xlu0 %3781
    %v3783 = vadd.f32 %v3778, %v3779
    %3784 = vadd.xlane.f32.xlu0 %v3783
    %v3785 = vpop.xlane.xlu0 %3784
    %v3786 = vmul.f32 %v3782, %v175
    %v3787 = vmul.f32 %v3785, %v175
    %v3788 = vmul.f32 %v3776, %v3776
    %v3789 = vmul.f32 %v3777, %v3777
    %v3790 = vmul.f32 %v3778, %v3778
    %v3791 = vmul.f32 %v3779, %v3779
    %v3792 = vadd.f32 %v3788, %v3789
    %3793 = vadd.xlane.f32.xlu0 %v3792
    %v3794 = vpop.xlane.xlu0 %3793
    %v3795 = vadd.f32 %v3790, %v3791
    %3796 = vadd.xlane.f32.xlu0 %v3795
    %v3797 = vpop.xlane.xlu0 %3796
    %v3798 = vmul.f32 %v3794, %v175
    %v3799 = vmul.f32 %v3797, %v175
    %v3800 = vmul.f32 %v3786, %v3786
    %v3801 = vmul.f32 %v3787, %v3787
    %v3802 = vsub.f32 %v3798, %v3800
    %v3803 = vsub.f32 %v3799, %v3801
    %v3804 = vsub.f32 %v3776, %v3786
    %v3805 = vsub.f32 %v3777, %v3786
    %v3806 = vsub.f32 %v3778, %v3787
    %v3807 = vsub.f32 %v3779, %v3787
    %v3808 = vadd.f32 %v3802, 1e-12
    %v3809 = vadd.f32 %v3803, 1e-12
    %v3810 = vrsqrt.pop %v3808
    %v3811 = vrsqrt.pop %v3809
    %v3812 = vmul.f32 %v3804, %v3810
    %v3813 = vmul.f32 %v3805, %v3810
    %v3814 = vmul.f32 %v3806, %v3811
    %v3815 = vmul.f32 %v3807, %v3811
    %v3817 = vlaneseq
    %v3818 = vshrl.u32 %v3817, 7
    %v3819 = vsub.s32 0, %v3818
    %v3820 = vrot.slane %v2069, %v3819
    %v3821 = vlaneseq
    %v3822 = vshrl.u32 %v3821, 7
    %v3823 = vsub.s32 1, %v3822
    %v3824 = vrot.slane %v2069, %v3823
    %v3827 = vmul.f32 %v3812, %v3820
    %v3828 = vmul.f32 %v3813, %v3824
    %v3829 = vmul.f32 %v3814, %v3820
    %v3830 = vmul.f32 %v3815, %v3824
    %v3832 = vlaneseq
    %v3833 = vshrl.u32 %v3832, 7
    %v3834 = vsub.s32 0, %v3833
    %v3835 = vrot.slane %v2071, %v3834
    %v3836 = vlaneseq
    %v3837 = vshrl.u32 %v3836, 7
    %v3838 = vsub.s32 1, %v3837
    %v3839 = vrot.slane %v2071, %v3838
    %v3842 = vadd.f32 %v3827, %v3835
    %v3843 = vadd.f32 %v3828, %v3839
    %v3844 = vadd.f32 %v3829, %v3835
    %v3845 = vadd.f32 %v3830, %v3839
    %v3846 = vld [vmem:[%s12 + $0x2] ss:$0 sm:$0xff]
    %v3847 = vld [vmem:[%s12 + $0x3] ss:$0 sm:$0xff]
    %v3848 = vld [vmem:[%s12 + $0x4] ss:$0 sm:$0xff]
    %v3849 = vpack.c.bf16 %v3842, %v3842
    %v3850 = vpack.c.bf16 %v3843, %v3843
    %v3851 = vpack.c.bf16 %v3844, %v3844
    %v3852 = vpack.c.bf16 %v3845, %v3845
    %v3853 = vld [vmem:[%s8] sm:$0xf]
    %v3854 = vld [vmem:[%s8 + $0x4] sm:$0xf]
    %v3855 = vld [vmem:[%s8 + $0x8] sm:$0xf]
    %v3856 = vld [vmem:[%s8 + $0xc] sm:$0xf]
    %v3857 = vld [vmem:[%s8 + $0x10] sm:$0xf]
    %v3858 = vld [vmem:[%s8 + $0x14] sm:$0xf]
    %v3859 = vld [vmem:[%s8 + $0x18] sm:$0xf]
    %v3860 = vld [vmem:[%s8 + $0x1c] sm:$0xf]
    %v3861 = vld [vmem:[%s8 + $0x20] sm:$0xf]
    %v3862 = vld [vmem:[%s8 + $0x24] sm:$0xf]
    %v3863 = vld [vmem:[%s8 + $0x28] sm:$0xf]
    %v3864 = vld [vmem:[%s8 + $0x2c] sm:$0xf]
    %v3865 = vld [vmem:[%s8 + $0x30] sm:$0xf]
    %v3866 = vld [vmem:[%s8 + $0x34] sm:$0xf]
    %v3867 = vld [vmem:[%s8 + $0x38] sm:$0xf]
    %v3868 = vld [vmem:[%s8 + $0x3c] sm:$0xf]
    %v3869 = vld [vmem:[%s8 + $0x40] sm:$0xf]
    %v3870 = vld [vmem:[%s8 + $0x44] sm:$0xf]
    %v3871 = vld [vmem:[%s8 + $0x48] sm:$0xf]
    %v3872 = vld [vmem:[%s8 + $0x4c] sm:$0xf]
    %v3873 = vld [vmem:[%s8 + $0x50] sm:$0xf]
    %v3874 = vld [vmem:[%s8 + $0x54] sm:$0xf]
    %v3875 = vld [vmem:[%s8 + $0x58] sm:$0xf]
    %v3876 = vld [vmem:[%s8 + $0x5c] sm:$0xf]
    %v3877 = vld [vmem:[%s8 + $0x60] sm:$0xf]
    %v3878 = vld [vmem:[%s8 + $0x64] sm:$0xf]
    %v3879 = vld [vmem:[%s8 + $0x68] sm:$0xf]
    %v3880 = vld [vmem:[%s8 + $0x6c] sm:$0xf]
    %v3881 = vld [vmem:[%s8 + $0x70] sm:$0xf]
    %v3882 = vld [vmem:[%s8 + $0x74] sm:$0xf]
    %v3883 = vld [vmem:[%s8 + $0x78] sm:$0xf]
    %v3884 = vld [vmem:[%s8 + $0x7c] sm:$0xf]
    %v3889 = vunpack.c.l.b16 %v3849
    %v3890 = vunpack.c.l.b16 %v3850
    %v3891 = vunpack.c.l.b16 %v3851
    %v3892 = vunpack.c.l.b16 %v3852
    %v3893 = vrot.slane %v3891, 7
    %vm3894 = vcmask 1041409
    %v3895 = vsel %vm3894, %v3893, %v3889
    %v3896 = vrot.slane %v3892, 7
    %v3897 = vsel %vm3894, %v3896, %v3890
    %v3898 = vpack.c.b16 %v3895, %v3895
    %v3899 = vpack.c.b16 %v3897, %v3897
    %v3934 = vunpack.c.l.b16 %v3853
    %v3935 = vunpack.c.l.b16 %v3854
    %v3936 = vunpack.c.l.b16 %v3855
    %v3937 = vunpack.c.l.b16 %v3856
    %v3938 = vunpack.c.l.b16 %v3857
    %v3939 = vunpack.c.l.b16 %v3858
    %v3940 = vunpack.c.l.b16 %v3859
    %v3941 = vunpack.c.l.b16 %v3860
    %v3942 = vunpack.c.l.b16 %v3861
    %v3943 = vunpack.c.l.b16 %v3862
    %v3944 = vunpack.c.l.b16 %v3863
    %v3945 = vunpack.c.l.b16 %v3864
    %v3946 = vunpack.c.l.b16 %v3865
    %v3947 = vunpack.c.l.b16 %v3866
    %v3948 = vunpack.c.l.b16 %v3867
    %v3949 = vunpack.c.l.b16 %v3868
    %v3950 = vunpack.c.l.b16 %v3869
    %v3951 = vunpack.c.l.b16 %v3870
    %v3952 = vunpack.c.l.b16 %v3871
    %v3953 = vunpack.c.l.b16 %v3872
    %v3954 = vunpack.c.l.b16 %v3873
    %v3955 = vunpack.c.l.b16 %v3874
    %v3956 = vunpack.c.l.b16 %v3875
    %v3957 = vunpack.c.l.b16 %v3876
    %v3958 = vunpack.c.l.b16 %v3877
    %v3959 = vunpack.c.l.b16 %v3878
    %v3960 = vunpack.c.l.b16 %v3879
    %v3961 = vunpack.c.l.b16 %v3880
    %v3962 = vunpack.c.l.b16 %v3881
    %v3963 = vunpack.c.l.b16 %v3882
    %v3964 = vunpack.c.l.b16 %v3883
    %v3965 = vunpack.c.l.b16 %v3884
    %v3966 = vpack.c.b16 %v3935, %v3934
    %v3967 = vpack.c.b16 %v3937, %v3936
    %v3968 = vpack.c.b16 %v3939, %v3938
    %v3969 = vpack.c.b16 %v3941, %v3940
    %v3970 = vpack.c.b16 %v3943, %v3942
    %v3971 = vpack.c.b16 %v3945, %v3944
    %v3972 = vpack.c.b16 %v3947, %v3946
    %v3973 = vpack.c.b16 %v3949, %v3948
    %v3974 = vpack.c.b16 %v3951, %v3950
    %v3975 = vpack.c.b16 %v3953, %v3952
    %v3976 = vpack.c.b16 %v3955, %v3954
    %v3977 = vpack.c.b16 %v3957, %v3956
    %v3978 = vpack.c.b16 %v3959, %v3958
    %v3979 = vpack.c.b16 %v3961, %v3960
    %v3980 = vpack.c.b16 %v3963, %v3962
    %v3981 = vpack.c.b16 %v3965, %v3964
    %3998 = vmatprep.subr.bf16.mxu0 0
    %3999 = vmatpush1.bf16.msra.mxu0 %v3973
    %4000 = vmatprep.subr.bf16.mxu0 0
    %4001 = vmatpush1.bf16.msra.mxu0 %v3972
    %4002 = vmatprep.subr.bf16.mxu0 0
    %4003 = vmatpush1.bf16.msra.mxu0 %v3971
    %4004 = vmatprep.subr.bf16.mxu0 0
    %4005 = vmatpush1.bf16.msra.mxu0 %v3970
    %4006 = vmatprep.subr.bf16.mxu0 0
    %4007 = vmatpush1.bf16.msra.mxu0 %v3969
    %4008 = vmatprep.subr.bf16.mxu0 0
    %4009 = vmatpush1.bf16.msra.mxu0 %v3968
    %4010 = vmatprep.subr.bf16.mxu0 0
    %4011 = vmatpush1.bf16.msra.mxu0 %v3967
    %4012 = vmatprep.subr.bf16.mxu0 0
    %4013 = vmatpush1.bf16.msra.mxu0 %v3966
    %4014 = vmatprep.subr.bf16.mxu0 0
    %4015 = vmatpush2.bf16.msra.mxu0 %v3981
    %4016 = vmatprep.subr.bf16.mxu0 0
    %4017 = vmatpush2.bf16.msra.mxu0 %v3980
    %4018 = vmatprep.subr.bf16.mxu0 0
    %4019 = vmatpush2.bf16.msra.mxu0 %v3979
    %4020 = vmatprep.subr.bf16.mxu0 0
    %4021 = vmatpush2.bf16.msra.mxu0 %v3978
    %4022 = vmatprep.subr.bf16.mxu0 0
    %4023 = vmatpush2.bf16.msra.mxu0 %v3977
    %4024 = vmatprep.subr.bf16.mxu0 0
    %4025 = vmatpush2.bf16.msra.mxu0 %v3976
    %4026 = vmatprep.subr.bf16.mxu0 0
    %4027 = vmatpush2.bf16.msra.mxu0 %v3975
    %4028 = vmatprep.subr.bf16.mxu0 0
    %4029 = vmatpush2.bf16.msra.mxu0 %v3974
    %4030 = vmatprep.mubr.bf16.mxu0 %v3899
    %4031 = vmatmul.mubr.bf16.gmra.mxu0 %v3898
    %v4032 = vpop.f32.mrf.mxu0
    %v4033 = vadd.f32 %v3846, %v4032
    %v4034 = vpop.f32.mrf.mxu0
    %v4035 = vpop.f32.mrf.mxu0
    %v4036 = vpop.f32.mrf.mxu0
    %4037 = vdwg.mxu0
    %v4038 = vmax.f32 %v4033, 0.0
    %v4039 = vpack.c.bf16 %v4038, %v4038
    %v4040 = vld [vmem:[%s9] sm:$0xf]
    %v4041 = vld [vmem:[%s9 + $0x4] sm:$0xf]
    %v4042 = vld [vmem:[%s9 + $0x8] sm:$0xf]
    %v4043 = vld [vmem:[%s9 + $0xc] sm:$0xf]
    %v4044 = vld [vmem:[%s9 + $0x10] sm:$0xf]
    %v4045 = vld [vmem:[%s9 + $0x14] sm:$0xf]
    %v4046 = vld [vmem:[%s9 + $0x18] sm:$0xf]
    %v4047 = vld [vmem:[%s9 + $0x1c] sm:$0xf]
    %v4048 = vld [vmem:[%s9 + $0x20] sm:$0xf]
    %v4049 = vld [vmem:[%s9 + $0x24] sm:$0xf]
    %v4050 = vld [vmem:[%s9 + $0x28] sm:$0xf]
    %v4051 = vld [vmem:[%s9 + $0x2c] sm:$0xf]
    %v4052 = vld [vmem:[%s9 + $0x30] sm:$0xf]
    %v4053 = vld [vmem:[%s9 + $0x34] sm:$0xf]
    %v4054 = vld [vmem:[%s9 + $0x38] sm:$0xf]
    %v4055 = vld [vmem:[%s9 + $0x3c] sm:$0xf]
    %v4056 = vld [vmem:[#allocation7] sm:$0x3]
    %v4057 = vpack.c.bf16 %v4056, %v4056
    %v4058 = vld [vmem:[#allocation16] sm:$0xf]
    %v4060 = vsel %vm778, %v4057, 0
    %vm4062 = vcmask 1043456
    %v4064 = vsel %vm4062, %v4058, 0
    %4066 = vmatprep.subr.bf16.mxu0 0
    %4067 = vmatpush1.bf16.msra.mxu0 0
    %4068 = vmatprep.subr.bf16.mxu0 0
    %4069 = vmatpush1.bf16.msra.mxu0 0
    %4070 = vmatprep.subr.bf16.mxu0 0
    %4071 = vmatpush1.bf16.msra.mxu0 0
    %4072 = vmatprep.subr.bf16.mxu0 0
    %4073 = vmatpush1.bf16.msra.mxu0 0
    %4074 = vmatprep.subr.bf16.mxu0 0
    %4075 = vmatpush1.bf16.msra.mxu0 0
    %4076 = vmatprep.subr.bf16.mxu0 0
    %4077 = vmatpush1.bf16.msra.mxu0 0
    %4078 = vmatprep.subr.bf16.mxu0 0
    %4079 = vmatpush1.bf16.msra.mxu0 0
    %4080 = vmatprep.subr.bf16.mxu0 0
    %4081 = vmatpush1.bf16.msra.mxu0 %v4064
    %4082 = vmatprep.subr.bf16.mxu0 0
    %4083 = vmatpush2.bf16.msra.mxu0 0
    %4084 = vmatprep.subr.bf16.mxu0 0
    %4085 = vmatpush2.bf16.msra.mxu0 0
    %4086 = vmatprep.subr.bf16.mxu0 0
    %4087 = vmatpush2.bf16.msra.mxu0 0
    %4088 = vmatprep.subr.bf16.mxu0 0
    %4089 = vmatpush2.bf16.msra.mxu0 0
    %4090 = vmatprep.subr.bf16.mxu0 0
    %4091 = vmatpush2.bf16.msra.mxu0 0
    %4092 = vmatprep.subr.bf16.mxu0 0
    %4093 = vmatpush2.bf16.msra.mxu0 0
    %4094 = vmatprep.subr.bf16.mxu0 0
    %4095 = vmatpush2.bf16.msra.mxu0 0
    %4096 = vmatprep.subr.bf16.mxu0 0
    %4097 = vmatpush2.bf16.msra.mxu0 0
    %4098 = vmatprep.mubr.bf16.mxu0 0
    %4099 = vmatmul.mubr.bf16.gmra.mxu0 %v4060
    %v4100 = vpop.f32.mrf.mxu0
    %v4101 = vadd.f32 0.0, %v4100
    %v4102 = vpop.f32.mrf.mxu0
    %v4103 = vpop.f32.mrf.mxu0
    %v4104 = vpop.f32.mrf.mxu0
    %4105 = vdwg.mxu0
    %v4122 = vunpack.c.l.b16 %v4040
    %v4123 = vunpack.c.l.b16 %v4041
    %v4124 = vunpack.c.l.b16 %v4042
    %v4125 = vunpack.c.l.b16 %v4043
    %v4126 = vunpack.c.l.b16 %v4044
    %v4127 = vunpack.c.l.b16 %v4045
    %v4128 = vunpack.c.l.b16 %v4046
    %v4129 = vunpack.c.l.b16 %v4047
    %v4130 = vunpack.c.l.b16 %v4048
    %v4131 = vunpack.c.l.b16 %v4049
    %v4132 = vunpack.c.l.b16 %v4050
    %v4133 = vunpack.c.l.b16 %v4051
    %v4134 = vunpack.c.l.b16 %v4052
    %v4135 = vunpack.c.l.b16 %v4053
    %v4136 = vunpack.c.l.b16 %v4054
    %v4137 = vunpack.c.l.b16 %v4055
    %v4138 = vpack.c.b16 %v4123, %v4122
    %v4139 = vpack.c.b16 %v4125, %v4124
    %v4140 = vpack.c.b16 %v4127, %v4126
    %v4141 = vpack.c.b16 %v4129, %v4128
    %v4142 = vpack.c.b16 %v4131, %v4130
    %v4143 = vpack.c.b16 %v4133, %v4132
    %v4144 = vpack.c.b16 %v4135, %v4134
    %v4145 = vpack.c.b16 %v4137, %v4136
    %4154 = vmatprep.subr.bf16.mxu0 0
    %4155 = vmatpush1.bf16.msra.mxu0 %v4145
    %4156 = vmatprep.subr.bf16.mxu0 0
    %4157 = vmatpush1.bf16.msra.mxu0 %v4144
    %4158 = vmatprep.subr.bf16.mxu0 0
    %4159 = vmatpush1.bf16.msra.mxu0 %v4143
    %4160 = vmatprep.subr.bf16.mxu0 0
    %4161 = vmatpush1.bf16.msra.mxu0 %v4142
    %4162 = vmatprep.subr.bf16.mxu0 0
    %4163 = vmatpush1.bf16.msra.mxu0 %v4141
    %4164 = vmatprep.subr.bf16.mxu0 0
    %4165 = vmatpush1.bf16.msra.mxu0 %v4140
    %4166 = vmatprep.subr.bf16.mxu0 0
    %4167 = vmatpush1.bf16.msra.mxu0 %v4139
    %4168 = vmatprep.subr.bf16.mxu0 0
    %4169 = vmatpush1.bf16.msra.mxu0 %v4138
    %4170 = vmatprep.subr.bf16.mxu0 0
    %4171 = vmatpush2.bf16.msra.mxu0 0
    %4172 = vmatprep.subr.bf16.mxu0 0
    %4173 = vmatpush2.bf16.msra.mxu0 0
    %4174 = vmatprep.subr.bf16.mxu0 0
    %4175 = vmatpush2.bf16.msra.mxu0 0
    %4176 = vmatprep.subr.bf16.mxu0 0
    %4177 = vmatpush2.bf16.msra.mxu0 0
    %4178 = vmatprep.subr.bf16.mxu0 0
    %4179 = vmatpush2.bf16.msra.mxu0 0
    %4180 = vmatprep.subr.bf16.mxu0 0
    %4181 = vmatpush2.bf16.msra.mxu0 0
    %4182 = vmatprep.subr.bf16.mxu0 0
    %4183 = vmatpush2.bf16.msra.mxu0 0
    %4184 = vmatprep.subr.bf16.mxu0 0
    %4185 = vmatpush2.bf16.msra.mxu0 0
    %4186 = vmatprep.mubr.bf16.mxu0 0
    %4187 = vmatmul.mubr.bf16.gmra.mxu0 %v4039
    %v4188 = vpop.f32.mrf.mxu0
    %v4189 = vadd.f32 %v4101, %v4188
    %v4190 = vpop.f32.mrf.mxu0
    %v4191 = vpop.f32.mrf.mxu0
    %v4192 = vpop.f32.mrf.mxu0
    %4193 = vdwg.mxu0
    %v4194 = vadd.f32 %v4189, %v3847
    %v4195 = vmax.f32 %v4194, 0.0
    %v4196 = vpack.c.bf16 %v4195, %v4195
    %v4197 = vld [vmem:[%s11] sm:$0xf]
    %v4198 = vld [vmem:[%s11 + $0x4] sm:$0xf]
    %v4199 = vld [vmem:[%s11 + $0x8] sm:$0xf]
    %v4200 = vld [vmem:[%s11 + $0xc] sm:$0xf]
    %v4201 = vld [vmem:[%s11 + $0x10] sm:$0xf]
    %v4202 = vld [vmem:[%s11 + $0x14] sm:$0xf]
    %v4203 = vld [vmem:[%s11 + $0x18] sm:$0xf]
    %v4204 = vld [vmem:[%s11 + $0x1c] sm:$0xf]
    %v4213 = vunpack.c.l.b16 %v4197
    %v4214 = vunpack.c.l.b16 %v4198
    %v4215 = vunpack.c.l.b16 %v4199
    %v4216 = vunpack.c.l.b16 %v4200
    %v4217 = vunpack.c.l.b16 %v4201
    %v4218 = vunpack.c.l.b16 %v4202
    %v4219 = vunpack.c.l.b16 %v4203
    %v4220 = vunpack.c.l.b16 %v4204
    %v4221 = vpack.c.b16 %v4214, %v4213
    %v4222 = vpack.c.b16 %v4216, %v4215
    %v4223 = vpack.c.b16 %v4218, %v4217
    %v4224 = vpack.c.b16 %v4220, %v4219
    %vm4229 = vcmask 523264
    %v4231 = vsel %vm4229, %v4196, 0
    %4233 = vmatprep.subr.bf16.mxu0 0
    %4234 = vmatpush1.bf16.msra.mxu0 0
    %4235 = vmatprep.subr.bf16.mxu0 0
    %4236 = vmatpush1.bf16.msra.mxu0 0
    %4237 = vmatprep.subr.bf16.mxu0 0
    %4238 = vmatpush1.bf16.msra.mxu0 0
    %4239 = vmatprep.subr.bf16.mxu0 0
    %4240 = vmatpush1.bf16.msra.mxu0 0
    %4241 = vmatprep.subr.bf16.mxu0 0
    %4242 = vmatpush1.bf16.msra.mxu0 %v4224
    %4243 = vmatprep.subr.bf16.mxu0 0
    %4244 = vmatpush1.bf16.msra.mxu0 %v4223
    %4245 = vmatprep.subr.bf16.mxu0 0
    %4246 = vmatpush1.bf16.msra.mxu0 %v4222
    %4247 = vmatprep.subr.bf16.mxu0 0
    %4248 = vmatpush1.bf16.msra.mxu0 %v4221
    %4249 = vmatprep.subr.bf16.mxu0 0
    %4250 = vmatpush2.bf16.msra.mxu0 0
    %4251 = vmatprep.subr.bf16.mxu0 0
    %4252 = vmatpush2.bf16.msra.mxu0 0
    %4253 = vmatprep.subr.bf16.mxu0 0
    %4254 = vmatpush2.bf16.msra.mxu0 0
    %4255 = vmatprep.subr.bf16.mxu0 0
    %4256 = vmatpush2.bf16.msra.mxu0 0
    %4257 = vmatprep.subr.bf16.mxu0 0
    %4258 = vmatpush2.bf16.msra.mxu0 0
    %4259 = vmatprep.subr.bf16.mxu0 0
    %4260 = vmatpush2.bf16.msra.mxu0 0
    %4261 = vmatprep.subr.bf16.mxu0 0
    %4262 = vmatpush2.bf16.msra.mxu0 0
    %4263 = vmatprep.subr.bf16.mxu0 0
    %4264 = vmatpush2.bf16.msra.mxu0 0
    %4265 = vmatprep.mubr.bf16.mxu0 0
    %4266 = vmatmul.mubr.bf16.gmra.mxu0 %v4231
    %v4267 = vpop.f32.mrf.mxu0
    %v4268 = vadd.f32 %v3848, %v4267
    %v4269 = vpop.f32.mrf.mxu0
    %v4270 = vpop.f32.mrf.mxu0
    %v4271 = vpop.f32.mrf.mxu0
    %4272 = vdwg.mxu0
    %4274 = vset.pattern.permute.xlu0 0
    %4275 = vperm.xlu0 %4274, %v4268
    %v4276 = vpop.permute.xlu0 %4275
    %4278 = vst [vmem:[#allocation17] sm:$0x3] %v4276
    // Predicated region
    $region90: #{tpu_custom_call.1} parent=1 // pred_check
      _
    $region91: #{tpu_custom_call.1} parent=1 // pred_check_branch
      %4280 = sbr.rel (0) target = $region93
    $region92: #{tpu_custom_call.1} parent=1 // pred_region
      %s4282 = ssub.s32 32, 32
      %4283 = vsyncadd [#allocation4], %s4282
      %s4285 = sshll.u32 [#allocation17], 4
      %s4286 = int_to_ptr.vmem [resolvable:$true] %s4285
      %4288 = dma.vmem_to_hbm [thread:$0]  %s4286, 32, %s13, [#allocation4]
    $region93: #{tpu_custom_call.1} parent=1 // pred_fallthru
      _
    // Predicated region
    $region94: #{tpu_custom_call.1} parent=1 // pred_check
      _
    $region95: #{tpu_custom_call.1} parent=1 // pred_check_branch
      %4290 = sbr.rel (0) target = $region97
    $region96: #{tpu_custom_call.1} parent=1 // pred_region
      %4291 = dma.done [#allocation4], 32
    $region97: #{tpu_custom_call.1} parent=1 // pred_fallthru
      _
    %4292 = vsyncpa [#allocation3], 1
    %4293 = vsyncpa [#allocation6], 1
    %4294 = vsyncpa [#allocation9], 1
    %4295 = vsyncpa [#allocation12], 1
    %4296 = vsyncpa [#allocation15], 1
    %4297 = vsyncpa [#allocation4], 1

</llo_original>
